<compile_context>
chip_gen: v6e
topology: v6e:2x2x1
jax: 0.10.0
libtpu: 0.0.40
codegen_flags: <defaults>
</compile_context>

<pallas_src>
import functools

import jax
import jax.numpy as jnp
from jax import lax
from jax.experimental import pallas as pl
from jax.experimental.pallas import tpu as pltpu


# ------------------------- hyper-parameters (`hp`) -------------------------
class hp:
    feat_dim = 16          # mel dim (original: 80), kept small for the demo
    pre_output_size = 32   # PreLinear output size
    hidden_dim = 32        # LSTM hidden size
    num_layer = 1          # TODO(synk): original hp.num_layer unknown; single bi-LSTM layer used
    cnn_channels = 8       # ResNet output channels -> value of get_len()
    speaker_dim = 16


# ------------------------------ fused kernel ------------------------------
def _speaker_encoder_kernel(
        x_ref, pre_w_ref, pre_b_ref, w_ih_ref, b_g_ref, w_hh_ref,
        m1_ref, b1_ref, m2_ref, b2_ref, mskip_ref, bskip_ref,
        pp_ref, pb_ref, out_ref,
        gates_sc, ypad_sc, a1pad_sc,
        *, T, Bp, B, H, C):
    f32 = jnp.float32
    bf16 = jnp.bfloat16
    CH = C * H
    R = T * Bp
    Sp = out_ref.shape[-1]

    # ---- zero the scratch accumulators / halo rows once ----
    ypad_sc[...] = jnp.zeros((T + 2, Bp, H), f32)          # y accumulated in-place
    a1pad_sc[0, :, :] = jnp.zeros((Bp, CH), f32)           # conv halo rows only
    a1pad_sc[T + 1, :, :] = jnp.zeros((Bp, CH), f32)

    # ---- prenet + hoisted input-to-hidden gate projection (bf16 MXU, f32 acc) ----
    pre = jnp.maximum(
        jnp.dot(x_ref[...], pre_w_ref[...], preferred_element_type=f32)
        + pre_b_ref[...], 0.0)                                          # (R, D) f32
    gates_sc[...] = (jnp.dot(pre.astype(bf16), w_ih_ref[...],
                             preferred_element_type=f32) + b_g_ref[...])  # (R, 8H) f32

    w_hh = w_hh_ref[...]                                    # (2H, 8H) bf16, block-diag

    def lstm_cell(g, c):
        # torch gate order i, f, g, o  (state kept in f32)
        i = jax.nn.sigmoid(g[:, 0:H])
        f = jax.nn.sigmoid(g[:, H:2 * H])
        gg = jnp.tanh(g[:, 2 * H:3 * H])
        o = jax.nn.sigmoid(g[:, 3 * H:4 * H])
        c_new = f * c + i * gg
        h_new = o * jnp.tanh(c_new)
        return h_new, c_new

    # ---- bidirectional LSTM: fwd step s and bwd step T-1-s share one 256-wide
    #      recurrent matmul; y[t] = h_f[t] + h_b[t] accumulated into ypad scratch ----
    # NOTE: at Bp >= 128 re-profile the EUP (sigmoid/tanh) slot in this loop.
    h_f = jnp.zeros((Bp, H), f32); c_f = jnp.zeros((Bp, H), f32)
    h_b = jnp.zeros((Bp, H), f32); c_b = jnp.zeros((Bp, H), f32)
    for s in range(T):
        r = T - 1 - s
        gp = gates_sc[pl.ds(s * Bp, Bp), :]                 # (Bp, 8H) f32
        gr = gates_sc[pl.ds(r * Bp, Bp), :]
        g_pre = jnp.concatenate([gp[:, 0:4 * H], gr[:, 4 * H:8 * H]], axis=1)
        h_cat = jnp.concatenate([h_f, h_b], axis=1).astype(bf16)        # (Bp, 2H)
        g = g_pre + jnp.dot(h_cat, w_hh, preferred_element_type=f32)    # f32 accum
        h_f, c_f = lstm_cell(g[:, 0:4 * H], c_f)
        h_b, c_b = lstm_cell(g[:, 4 * H:8 * H], c_b)
        ypad_sc[1 + s, :, :] = ypad_sc[1 + s, :, :] + h_f
        ypad_sc[1 + r, :, :] = ypad_sc[1 + r, :, :] + h_b

    # ---- conv1 3x3 (1->C): 3 row-shifted banded bf16 matmuls (lane-dense N=256) ----
    a1 = jnp.zeros((R, CH), f32)
    for di in range(3):
        xs = ypad_sc[pl.ds(di, T), :, :].reshape(R, H).astype(bf16)
        a1 = a1 + jnp.dot(xs, m1_ref[di], preferred_element_type=f32)
    a1 = jnp.maximum(a1 + b1_ref[...], 0.0)                             # (R, C*H)
    a1pad_sc[pl.ds(1, T), :, :] = a1.reshape(T, Bp, CH)

    # ---- conv2 3x3 (C->C) + 1x1 skip, residual add + relu ----
    a2 = jnp.zeros((R, CH), f32)
    for di in range(3):
        xs = a1pad_sc[pl.ds(di, T), :, :].reshape(R, CH).astype(bf16)
        a2 = a2 + jnp.dot(xs, m2_ref[di], preferred_element_type=f32)
    y_mid = ypad_sc[pl.ds(1, T), :, :].reshape(R, H).astype(bf16)
    sk = jnp.dot(y_mid, mskip_ref[...], preferred_element_type=f32) + bskip_ref[...]
    res = jnp.maximum(a2 + b2_ref[...] + sk, 0.0)                       # (R, C*H) f32

    # ---- fused (avg-pool @ projection): one lane-dense K=256, N=128 matmul ----
    z_rows = jnp.dot(res.astype(bf16), pp_ref[...], preferred_element_type=f32)
    z = jnp.sum(z_rows.reshape(T, Bp, Sp), axis=0) + pb_ref[...]        # (Bp, 128)

    # ---- x / ||x||_F over the real batch (padded rows/lanes are zero) ----
    row = lax.broadcasted_iota(jnp.int32, z.shape, 0)
    z = jnp.where(row < B, z, 0.0)
    inv = lax.rsqrt(jnp.sum(z * z) + 1e-12)
    out_ref[...] = (z * inv).astype(out_ref.dtype)


# --------------------------- parameter preprocessing ---------------------------
def _band_matrices(w, H):
    """3x3 conv weights (3, 3, Cin, Cout) -> (3, Cin*H, Cout*H) banded matmul
    operands implementing the conv (with zero padding) along the H/lane axis."""
    Cin, Cout = w.shape[2], w.shape[3]
    delta = jnp.arange(H)[:, None] - jnp.arange(H)[None, :]        # h_in - h_out
    mats = []
    for di in range(3):
        acc = jnp.zeros((Cin, H, Cout, H), jnp.float32)
        for dj in range(3):
            sel = (delta == (dj - 1)).astype(jnp.float32)
            acc = acc + w[di, dj][:, None, :, None] * sel[None, :, None, :]
        mats.append(acc.reshape(Cin * H, Cout * H))
    return jnp.stack(mats, axis=0)


def speaker_encoder_forward(x, params, *, min_batch_pad=8):
    """min_batch_pad: for production, pad/batch utterances to >=128 (v5e) /
    256 (v6e, v7x) to fill the MXU M dimension of the recurrent matmul; at the
    demo batch of 2 that would only add zero-work, so the default stays 8.
    At production T, also add a T tile / v7x parallel batch axis and raise
    pltpu.CompilerParams(vmem_limit_bytes=...) above the 32 MiB scoped default."""
    B, T, F = x.shape
    H, C, S = hp.hidden_dim, hp.cnn_channels, hp.speaker_dim
    CH = C * H
    Sp = 128                                   # lane-padded output width
    Bp = max(min_batch_pad, ((B + 7) // 8) * 8)
    f32, bf16 = jnp.float32, jnp.bfloat16

    # input: pad batch, go time-major, flatten lane-dense, cast to bf16 once
    xp = jnp.pad(x.astype(f32), ((0, Bp - B), (0, 0), (0, 0)))
    x_flat = jnp.transpose(xp, (1, 0, 2)).reshape(T * Bp, F).astype(bf16)

    # LSTM weight packing: fwd|bwd gates stacked -> 8H lanes; biases summed (f32)
    w_ih = jnp.concatenate([params["w_ih_f"], params["w_ih_b"]], axis=1).astype(bf16)
    b_g = jnp.concatenate([params["b_ih_f"] + params["b_hh_f"],
                           params["b_ih_b"] + params["b_hh_b"]], axis=0)[None, :]
    w_hh = jnp.zeros((2 * H, 8 * H), f32)
    w_hh = w_hh.at[:H, :4 * H].set(params["w_hh_f"])
    w_hh = w_hh.at[H:, 4 * H:].set(params["w_hh_b"])
    w_hh = w_hh.astype(bf16)

    # conv weights folded into banded matrices (exact conv reformulation), bf16
    m1 = _band_matrices(params["conv1_w"], H).astype(bf16)         # (3, H, C*H)
    m2 = _band_matrices(params["conv2_w"], H).astype(bf16)         # (3, C*H, C*H)
    mskip = (jnp.eye(H, dtype=f32)[:, None, :]
             * params["skip_w"][None, :, None]).reshape(H, CH).astype(bf16)
    b1x = jnp.repeat(params["conv1_b"], H)[None, :]
    b2x = jnp.repeat(params["conv2_b"], H)[None, :]
    bskipx = jnp.repeat(params["skip_b"], H)[None, :]

    # precomposed (global avg pool) @ projection, zero-padded to 128 lanes
    pool = jnp.repeat(jnp.eye(C, dtype=f32), H, axis=0) / float(T * H)   # (C*H, C)
    pool_proj = jnp.pad(pool @ params["proj_w"], ((0, 0), (0, Sp - S))).astype(bf16)
    proj_b = jnp.pad(params["proj_b"], (0, Sp - S))[None, :]             # (1, 128)

    kernel = functools.partial(_speaker_encoder_kernel, T=T, Bp=Bp, B=B, H=H, C=C)

    def full(shape):
        return pl.BlockSpec(shape, lambda i, _s=shape: (0,) * len(_s))

    args = [x_flat, params["pre_w"].astype(bf16), params["pre_b"][None, :],
            w_ih, b_g, w_hh, m1, b1x, m2, b2x, mskip, bskipx,
            pool_proj, proj_b]

    out = pl.pallas_call(
        kernel,
        out_shape=jax.ShapeDtypeStruct((Bp, Sp), f32),
        grid=(1,),
        in_specs=[full(a.shape) for a in args],
        out_specs=full((Bp, Sp)),
        scratch_shapes=[
            pltpu.VMEM((T * Bp, 8 * H), f32),      # staged pre-gates
            pltpu.VMEM((T + 2, Bp, H), f32),       # halo-padded summed bi-LSTM output
            pltpu.VMEM((T + 2, Bp, CH), f32),      # halo-padded conv1 output
        ],
        compiler_params=pltpu.CompilerParams(dimension_semantics=("arbitrary",)),
    )(*args)
    return out[:B, :S]


# --------------------------------- init ------------------------------------
def init_params(key):
    H, D, F = hp.hidden_dim, hp.pre_output_size, hp.feat_dim
    C, S = hp.cnn_channels, hp.speaker_dim
    ks = jax.random.split(key, 10)

    def xavier(k, shape):
        std = (2.0 / (shape[0] + shape[1])) ** 0.5
        return std * jax.random.normal(k, shape, jnp.float32)

    def conv_init(k, shape):  # (3, 3, Cin, Cout)
        fan_in = shape[0] * shape[1] * shape[2]
        std = (2.0 / (fan_in + shape[3])) ** 0.5
        return std * jax.random.normal(k, shape, jnp.float32)

    return dict(
        pre_w=xavier(ks[0], (F, D)),
        pre_b=jnp.zeros((D,), jnp.float32),
        # LSTM: xavier_normal_ weights, zero biases (as in init_params); gate order i,f,g,o
        w_ih_f=xavier(ks[1], (D, 4 * H)),
        w_hh_f=xavier(ks[2], (H, 4 * H)),
        b_ih_f=jnp.zeros((4 * H,), jnp.float32),
        b_hh_f=jnp.zeros((4 * H,), jnp.float32),
        w_ih_b=xavier(ks[3], (D, 4 * H)),
        w_hh_b=xavier(ks[4], (H, 4 * H)),
        b_ih_b=jnp.zeros((4 * H,), jnp.float32),
        b_hh_b=jnp.zeros((4 * H,), jnp.float32),
        # TODO(synk): ResNet/PreLinear definitions absent from the source; synthetic
        # residual block (conv3x3 1->C, conv3x3 C->C, 1x1 skip, relu, global avg pool)
        conv1_w=conv_init(ks[5], (3, 3, 1, C)),
        conv1_b=jnp.zeros((C,), jnp.float32),
        conv2_w=conv_init(ks[6], (3, 3, C, C)),
        conv2_b=jnp.zeros((C,), jnp.float32),
        skip_w=0.1 * jax.random.normal(ks[7], (C,), jnp.float32),
        skip_b=jnp.zeros((C,), jnp.float32),
        proj_w=xavier(ks[8], (C, S)),
        proj_b=jnp.zeros((S,), jnp.float32),
    )


if __name__ == "__main__":
    key = jax.random.PRNGKey(0)
    pkey, xkey = jax.random.split(key)
    params = init_params(pkey)
    # x: (batch=2, seq=8, mel=16)
    x = jax.random.normal(xkey, (2, 8, hp.feat_dim), jnp.float32)
    out = jax.jit(speaker_encoder_forward)(x, params)
    jax.block_until_ready(out)
    assert out.shape == (2, hp.speaker_dim)
    assert bool(jnp.all(jnp.isfinite(out)))
    print("KERNEL_OK")
</pallas_src>

<mosaic_0001>
module attributes {stable_mosaic.version = 11 : i64} {
  func.func @_speaker_encoder_kernel(%arg0: i32, %arg1: memref<64x16xbf16, #tpu.memory_space<vmem>>, %arg2: memref<16x32xbf16, #tpu.memory_space<vmem>>, %arg3: memref<1x32xf32, #tpu.memory_space<vmem>>, %arg4: memref<32x256xbf16, #tpu.memory_space<vmem>>, %arg5: memref<1x256xf32, #tpu.memory_space<vmem>>, %arg6: memref<64x256xbf16, #tpu.memory_space<vmem>>, %arg7: memref<3x32x256xbf16, #tpu.memory_space<vmem>>, %arg8: memref<1x256xf32, #tpu.memory_space<vmem>>, %arg9: memref<3x256x256xbf16, #tpu.memory_space<vmem>>, %arg10: memref<1x256xf32, #tpu.memory_space<vmem>>, %arg11: memref<32x256xbf16, #tpu.memory_space<vmem>>, %arg12: memref<1x256xf32, #tpu.memory_space<vmem>>, %arg13: memref<256x128xbf16, #tpu.memory_space<vmem>>, %arg14: memref<1x128xf32, #tpu.memory_space<vmem>>, %arg15: memref<8x128xf32, #tpu.memory_space<vmem>>, %arg16: memref<64x256xf32, #tpu.memory_space<vmem>>, %arg17: memref<10x8x32xf32, #tpu.memory_space<vmem>>, %arg18: memref<10x8x256xf32, #tpu.memory_space<vmem>>) attributes {dimension_semantics = [#tpu.dimension_semantics<arbitrary>], iteration_bounds = array<i64: 1>, scalar_prefetch = 0 : i64, scratch_operands = 3 : i64, tpu.core_type = #tpu.core_type<tc>, window_params = [{pipeline_mode = #tpu.pipeline_mode<synchronous>, transform_indices = @transform_0, window_bounds = array<i64: 64, 16>}, {pipeline_mode = #tpu.pipeline_mode<synchronous>, transform_indices = @transform_1, window_bounds = array<i64: 16, 32>}, {pipeline_mode = #tpu.pipeline_mode<synchronous>, transform_indices = @transform_2, window_bounds = array<i64: 1, 32>}, {pipeline_mode = #tpu.pipeline_mode<synchronous>, transform_indices = @transform_3, window_bounds = array<i64: 32, 256>}, {pipeline_mode = #tpu.pipeline_mode<synchronous>, transform_indices = @transform_4, window_bounds = array<i64: 1, 256>}, {pipeline_mode = #tpu.pipeline_mode<synchronous>, transform_indices = @transform_5, window_bounds = array<i64: 64, 256>}, {pipeline_mode = #tpu.pipeline_mode<synchronous>, transform_indices = @transform_6, window_bounds = array<i64: 3, 32, 256>}, {pipeline_mode = #tpu.pipeline_mode<synchronous>, transform_indices = @transform_7, window_bounds = array<i64: 1, 256>}, {pipeline_mode = #tpu.pipeline_mode<synchronous>, transform_indices = @transform_8, window_bounds = array<i64: 3, 256, 256>}, {pipeline_mode = #tpu.pipeline_mode<synchronous>, transform_indices = @transform_9, window_bounds = array<i64: 1, 256>}, {pipeline_mode = #tpu.pipeline_mode<synchronous>, transform_indices = @transform_10, window_bounds = array<i64: 32, 256>}, {pipeline_mode = #tpu.pipeline_mode<synchronous>, transform_indices = @transform_11, window_bounds = array<i64: 1, 256>}, {pipeline_mode = #tpu.pipeline_mode<synchronous>, transform_indices = @transform_12, window_bounds = array<i64: 256, 128>}, {pipeline_mode = #tpu.pipeline_mode<synchronous>, transform_indices = @transform_13, window_bounds = array<i64: 1, 128>}, {pipeline_mode = #tpu.pipeline_mode<synchronous>, transform_indices = @transform_14, window_bounds = array<i64: 8, 128>}]} {
    %cst = arith.constant 0.000000e+00 : f32
    %0 = vector.broadcast %cst : f32 to vector<10x8x32xf32>
    %c0 = arith.constant 0 : index
    %c0_0 = arith.constant 0 : index
    %c0_1 = arith.constant 0 : index
    %1 = vector.load %arg17[%c0, %c0_0, %c0_1] : memref<10x8x32xf32, #tpu.memory_space<vmem>>, vector<10x8x32xf32>
    tpu.vector_store %arg17[%c0, %c0_0, %c0_1], %0 {strides = array<i32>} : memref<10x8x32xf32, #tpu.memory_space<vmem>>, vector<10x8x32xf32>,
    %cst_2 = arith.constant 0.000000e+00 : f32
    %2 = vector.broadcast %cst_2 : f32 to vector<8x256xf32>
    %c0_3 = arith.constant 0 : index
    %c0_4 = arith.constant 0 : index
    %c0_5 = arith.constant 0 : index
    %3 = vector.load %arg18[%c0_3, %c0_4, %c0_5] : memref<10x8x256xf32, #tpu.memory_space<vmem>>, vector<1x8x256xf32>
    %4 = vector.shape_cast %3 : vector<1x8x256xf32> to vector<8x256xf32>
    %5 = vector.shape_cast %2 : vector<8x256xf32> to vector<1x8x256xf32>
    tpu.vector_store %arg18[%c0_3, %c0_4, %c0_5], %5 {strides = array<i32>} : memref<10x8x256xf32, #tpu.memory_space<vmem>>, vector<1x8x256xf32>,
    %cst_6 = arith.constant 0.000000e+00 : f32
    %6 = vector.broadcast %cst_6 : f32 to vector<8x256xf32>
    %c9 = arith.constant 9 : index
    %c0_7 = arith.constant 0 : index
    %c0_8 = arith.constant 0 : index
    %7 = vector.load %arg18[%c9, %c0_7, %c0_8] : memref<10x8x256xf32, #tpu.memory_space<vmem>>, vector<1x8x256xf32>
    %8 = vector.shape_cast %7 : vector<1x8x256xf32> to vector<8x256xf32>
    %9 = vector.shape_cast %6 : vector<8x256xf32> to vector<1x8x256xf32>
    tpu.vector_store %arg18[%c9, %c0_7, %c0_8], %9 {strides = array<i32>} : memref<10x8x256xf32, #tpu.memory_space<vmem>>, vector<1x8x256xf32>,
    %c0_9 = arith.constant 0 : index
    %c0_10 = arith.constant 0 : index
    %10 = vector.load %arg1[%c0_9, %c0_10] : memref<64x16xbf16, #tpu.memory_space<vmem>>, vector<64x16xbf16>
    %c0_11 = arith.constant 0 : index
    %c0_12 = arith.constant 0 : index
    %11 = vector.load %arg2[%c0_11, %c0_12] : memref<16x32xbf16, #tpu.memory_space<vmem>>, vector<16x32xbf16>
    %cst_13 = arith.constant dense<0.000000e+00> : vector<64x32xf32>
    %12 = tpu.matmul %10, %11, %cst_13 {dimension_numbers = #tpu.dot_dimension_numbers<[1], [0], [0], [1], [0, 0, 1, 1], [], []>} : vector<64x16xbf16>, vector<16x32xbf16>, vector<64x32xf32> -> vector<64x32xf32>
    %c0_14 = arith.constant 0 : index
    %c0_15 = arith.constant 0 : index
    %13 = vector.load %arg3[%c0_14, %c0_15] : memref<1x32xf32, #tpu.memory_space<vmem>>, vector<1x32xf32>
    %14 = vector.broadcast %13 : vector<1x32xf32> to vector<64x32xf32>
    %15 = arith.addf %12, %14 : vector<64x32xf32>
    %cst_16 = arith.constant 0.000000e+00 : f32
    %16 = vector.broadcast %cst_16 : f32 to vector<64x32xf32>
    %17 = arith.maximumf %15, %16 : vector<64x32xf32>
    %18 = arith.truncf %17 : vector<64x32xf32> to vector<64x32xbf16>
    %c0_17 = arith.constant 0 : index
    %c0_18 = arith.constant 0 : index
    %19 = vector.load %arg4[%c0_17, %c0_18] : memref<32x256xbf16, #tpu.memory_space<vmem>>, vector<32x256xbf16>
    %cst_19 = arith.constant dense<0.000000e+00> : vector<64x256xf32>
    %20 = tpu.matmul %18, %19, %cst_19 {dimension_numbers = #tpu.dot_dimension_numbers<[1], [0], [0], [1], [0, 0, 1, 1], [], []>} : vector<64x32xbf16>, vector<32x256xbf16>, vector<64x256xf32> -> vector<64x256xf32>
    %c0_20 = arith.constant 0 : index
    %c0_21 = arith.constant 0 : index
    %21 = vector.load %arg5[%c0_20, %c0_21] : memref<1x256xf32, #tpu.memory_space<vmem>>, vector<1x256xf32>
    %22 = vector.broadcast %21 : vector<1x256xf32> to vector<64x256xf32>
    %23 = arith.addf %20, %22 : vector<64x256xf32>
    %c0_22 = arith.constant 0 : index
    %c0_23 = arith.constant 0 : index
    %24 = vector.load %arg16[%c0_22, %c0_23] : memref<64x256xf32, #tpu.memory_space<vmem>>, vector<64x256xf32>
    tpu.vector_store %arg16[%c0_22, %c0_23], %23 {strides = array<i32>} : memref<64x256xf32, #tpu.memory_space<vmem>>, vector<64x256xf32>,
    %c0_24 = arith.constant 0 : index
    %c0_25 = arith.constant 0 : index
    %25 = vector.load %arg6[%c0_24, %c0_25] : memref<64x256xbf16, #tpu.memory_space<vmem>>, vector<64x256xbf16>
    %cst_26 = arith.constant 0.000000e+00 : f32
    %26 = vector.broadcast %cst_26 : f32 to vector<8x32xf32>
    %cst_27 = arith.constant 0.000000e+00 : f32
    %27 = vector.broadcast %cst_27 : f32 to vector<8x32xf32>
    %cst_28 = arith.constant 0.000000e+00 : f32
    %28 = vector.broadcast %cst_28 : f32 to vector<8x32xf32>
    %cst_29 = arith.constant 0.000000e+00 : f32
    %29 = vector.broadcast %cst_29 : f32 to vector<8x32xf32>
    %c0_30 = arith.constant 0 : index
    %c0_31 = arith.constant 0 : index
    %30 = vector.load %arg16[%c0_30, %c0_31] : memref<64x256xf32, #tpu.memory_space<vmem>>, vector<8x256xf32>
    %c56 = arith.constant 56 : index
    %c0_32 = arith.constant 0 : index
    %31 = vector.load %arg16[%c56, %c0_32] : memref<64x256xf32, #tpu.memory_space<vmem>>, vector<8x256xf32>
    %32 = vector.extract_strided_slice %30 {offsets = [0, 0], sizes = [8, 128], strides = [1, 1]} : vector<8x256xf32> to vector<8x128xf32>
    %33 = vector.extract_strided_slice %31 {offsets = [0, 128], sizes = [8, 128], strides = [1, 1]} : vector<8x256xf32> to vector<8x128xf32>
    %34 = tpu.concatenate %32, %33 in 1 : vector<8x128xf32>, vector<8x128xf32> -> vector<8x256xf32>
    %35 = tpu.concatenate %26, %28 in 1 : vector<8x32xf32>, vector<8x32xf32> -> vector<8x64xf32>
    %36 = arith.truncf %35 : vector<8x64xf32> to vector<8x64xbf16>
    %cst_33 = arith.constant dense<0.000000e+00> : vector<8x256xf32>
    %37 = tpu.matmul %36, %25, %cst_33 {dimension_numbers = #tpu.dot_dimension_numbers<[1], [0], [0], [1], [0, 0, 1, 1], [], []>} : vector<8x64xbf16>, vector<64x256xbf16>, vector<8x256xf32> -> vector<8x256xf32>
    %38 = arith.addf %34, %37 : vector<8x256xf32>
    %39 = vector.extract_strided_slice %38 {offsets = [0, 0], sizes = [8, 128], strides = [1, 1]} : vector<8x256xf32> to vector<8x128xf32>
    %40 = vector.extract_strided_slice %39 {offsets = [0, 0], sizes = [8, 32], strides = [1, 1]} : vector<8x128xf32> to vector<8x32xf32>
    %41 = arith.negf %40 : vector<8x32xf32>
    %42 = math.exp %41 : vector<8x32xf32>
    %cst_34 = arith.constant 1.000000e+00 : f32
    %43 = vector.broadcast %cst_34 : f32 to vector<8x32xf32>
    %44 = arith.addf %43, %42 : vector<8x32xf32>
    %45 = arith.divf %43, %44 : vector<8x32xf32>
    %46 = vector.extract_strided_slice %39 {offsets = [0, 32], sizes = [8, 32], strides = [1, 1]} : vector<8x128xf32> to vector<8x32xf32>
    %47 = arith.negf %46 : vector<8x32xf32>
    %48 = math.exp %47 : vector<8x32xf32>
    %cst_35 = arith.constant 1.000000e+00 : f32
    %49 = vector.broadcast %cst_35 : f32 to vector<8x32xf32>
    %50 = arith.addf %49, %48 : vector<8x32xf32>
    %51 = arith.divf %49, %50 : vector<8x32xf32>
    %52 = vector.extract_strided_slice %39 {offsets = [0, 64], sizes = [8, 32], strides = [1, 1]} : vector<8x128xf32> to vector<8x32xf32>
    %53 = math.tanh %52 : vector<8x32xf32>
    %54 = vector.extract_strided_slice %39 {offsets = [0, 96], sizes = [8, 32], strides = [1, 1]} : vector<8x128xf32> to vector<8x32xf32>
    %55 = arith.negf %54 : vector<8x32xf32>
    %56 = math.exp %55 : vector<8x32xf32>
    %cst_36 = arith.constant 1.000000e+00 : f32
    %57 = vector.broadcast %cst_36 : f32 to vector<8x32xf32>
    %58 = arith.addf %57, %56 : vector<8x32xf32>
    %59 = arith.divf %57, %58 : vector<8x32xf32>
    %60 = arith.mulf %51, %27 : vector<8x32xf32>
    %61 = arith.mulf %45, %53 : vector<8x32xf32>
    %62 = arith.addf %60, %61 : vector<8x32xf32>
    %63 = math.tanh %62 : vector<8x32xf32>
    %64 = arith.mulf %59, %63 : vector<8x32xf32>
    %65 = vector.extract_strided_slice %38 {offsets = [0, 128], sizes = [8, 128], strides = [1, 1]} : vector<8x256xf32> to vector<8x128xf32>
    %66 = vector.extract_strided_slice %65 {offsets = [0, 0], sizes = [8, 32], strides = [1, 1]} : vector<8x128xf32> to vector<8x32xf32>
    %67 = arith.negf %66 : vector<8x32xf32>
    %68 = math.exp %67 : vector<8x32xf32>
    %cst_37 = arith.constant 1.000000e+00 : f32
    %69 = vector.broadcast %cst_37 : f32 to vector<8x32xf32>
    %70 = arith.addf %69, %68 : vector<8x32xf32>
    %71 = arith.divf %69, %70 : vector<8x32xf32>
    %72 = vector.extract_strided_slice %65 {offsets = [0, 32], sizes = [8, 32], strides = [1, 1]} : vector<8x128xf32> to vector<8x32xf32>
    %73 = arith.negf %72 : vector<8x32xf32>
    %74 = math.exp %73 : vector<8x32xf32>
    %cst_38 = arith.constant 1.000000e+00 : f32
    %75 = vector.broadcast %cst_38 : f32 to vector<8x32xf32>
    %76 = arith.addf %75, %74 : vector<8x32xf32>
    %77 = arith.divf %75, %76 : vector<8x32xf32>
    %78 = vector.extract_strided_slice %65 {offsets = [0, 64], sizes = [8, 32], strides = [1, 1]} : vector<8x128xf32> to vector<8x32xf32>
    %79 = math.tanh %78 : vector<8x32xf32>
    %80 = vector.extract_strided_slice %65 {offsets = [0, 96], sizes = [8, 32], strides = [1, 1]} : vector<8x128xf32> to vector<8x32xf32>
    %81 = arith.negf %80 : vector<8x32xf32>
    %82 = math.exp %81 : vector<8x32xf32>
    %cst_39 = arith.constant 1.000000e+00 : f32
    %83 = vector.broadcast %cst_39 : f32 to vector<8x32xf32>
    %84 = arith.addf %83, %82 : vector<8x32xf32>
    %85 = arith.divf %83, %84 : vector<8x32xf32>
    %86 = arith.mulf %77, %29 : vector<8x32xf32>
    %87 = arith.mulf %71, %79 : vector<8x32xf32>
    %88 = arith.addf %86, %87 : vector<8x32xf32>
    %89 = math.tanh %88 : vector<8x32xf32>
    %90 = arith.mulf %85, %89 : vector<8x32xf32>
    %c1 = arith.constant 1 : index
    %c0_40 = arith.constant 0 : index
    %c0_41 = arith.constant 0 : index
    %91 = vector.load %arg17[%c1, %c0_40, %c0_41] : memref<10x8x32xf32, #tpu.memory_space<vmem>>, vector<1x8x32xf32>
    %92 = vector.shape_cast %91 : vector<1x8x32xf32> to vector<8x32xf32>
    %93 = arith.addf %92, %64 : vector<8x32xf32>
    %c1_42 = arith.constant 1 : index
    %c0_43 = arith.constant 0 : index
    %c0_44 = arith.constant 0 : index
    %94 = vector.load %arg17[%c1_42, %c0_43, %c0_44] : memref<10x8x32xf32, #tpu.memory_space<vmem>>, vector<1x8x32xf32>
    %95 = vector.shape_cast %94 : vector<1x8x32xf32> to vector<8x32xf32>
    %96 = vector.shape_cast %93 : vector<8x32xf32> to vector<1x8x32xf32>
    tpu.vector_store %arg17[%c1_42, %c0_43, %c0_44], %96 {strides = array<i32>} : memref<10x8x32xf32, #tpu.memory_space<vmem>>, vector<1x8x32xf32>,
    %c8 = arith.constant 8 : index
    %c0_45 = arith.constant 0 : index
    %c0_46 = arith.constant 0 : index
    %97 = vector.load %arg17[%c8, %c0_45, %c0_46] : memref<10x8x32xf32, #tpu.memory_space<vmem>>, vector<1x8x32xf32>
    %98 = vector.shape_cast %97 : vector<1x8x32xf32> to vector<8x32xf32>
    %99 = arith.addf %98, %90 : vector<8x32xf32>
    %c8_47 = arith.constant 8 : index
    %c0_48 = arith.constant 0 : index
    %c0_49 = arith.constant 0 : index
    %100 = vector.load %arg17[%c8_47, %c0_48, %c0_49] : memref<10x8x32xf32, #tpu.memory_space<vmem>>, vector<1x8x32xf32>
    %101 = vector.shape_cast %100 : vector<1x8x32xf32> to vector<8x32xf32>
    %102 = vector.shape_cast %99 : vector<8x32xf32> to vector<1x8x32xf32>
    tpu.vector_store %arg17[%c8_47, %c0_48, %c0_49], %102 {strides = array<i32>} : memref<10x8x32xf32, #tpu.memory_space<vmem>>, vector<1x8x32xf32>,
    %c8_50 = arith.constant 8 : index
    %c0_51 = arith.constant 0 : index
    %103 = vector.load %arg16[%c8_50, %c0_51] : memref<64x256xf32, #tpu.memory_space<vmem>>, vector<8x256xf32>
    %c48 = arith.constant 48 : index
    %c0_52 = arith.constant 0 : index
    %104 = vector.load %arg16[%c48, %c0_52] : memref<64x256xf32, #tpu.memory_space<vmem>>, vector<8x256xf32>
    %105 = vector.extract_strided_slice %103 {offsets = [0, 0], sizes = [8, 128], strides = [1, 1]} : vector<8x256xf32> to vector<8x128xf32>
    %106 = vector.extract_strided_slice %104 {offsets = [0, 128], sizes = [8, 128], strides = [1, 1]} : vector<8x256xf32> to vector<8x128xf32>
    %107 = tpu.concatenate %105, %106 in 1 : vector<8x128xf32>, vector<8x128xf32> -> vector<8x256xf32>
    %108 = tpu.concatenate %64, %90 in 1 : vector<8x32xf32>, vector<8x32xf32> -> vector<8x64xf32>
    %109 = arith.truncf %108 : vector<8x64xf32> to vector<8x64xbf16>
    %cst_53 = arith.constant dense<0.000000e+00> : vector<8x256xf32>
    %110 = tpu.matmul %109, %25, %cst_53 {dimension_numbers = #tpu.dot_dimension_numbers<[1], [0], [0], [1], [0, 0, 1, 1], [], []>} : vector<8x64xbf16>, vector<64x256xbf16>, vector<8x256xf32> -> vector<8x256xf32>
    %111 = arith.addf %107, %110 : vector<8x256xf32>
    %112 = vector.extract_strided_slice %111 {offsets = [0, 0], sizes = [8, 128], strides = [1, 1]} : vector<8x256xf32> to vector<8x128xf32>
    %113 = vector.extract_strided_slice %112 {offsets = [0, 0], sizes = [8, 32], strides = [1, 1]} : vector<8x128xf32> to vector<8x32xf32>
    %114 = arith.negf %113 : vector<8x32xf32>
    %115 = math.exp %114 : vector<8x32xf32>
    %cst_54 = arith.constant 1.000000e+00 : f32
    %116 = vector.broadcast %cst_54 : f32 to vector<8x32xf32>
    %117 = arith.addf %116, %115 : vector<8x32xf32>
    %118 = arith.divf %116, %117 : vector<8x32xf32>
    %119 = vector.extract_strided_slice %112 {offsets = [0, 32], sizes = [8, 32], strides = [1, 1]} : vector<8x128xf32> to vector<8x32xf32>
    %120 = arith.negf %119 : vector<8x32xf32>
    %121 = math.exp %120 : vector<8x32xf32>
    %cst_55 = arith.constant 1.000000e+00 : f32
    %122 = vector.broadcast %cst_55 : f32 to vector<8x32xf32>
    %123 = arith.addf %122, %121 : vector<8x32xf32>
    %124 = arith.divf %122, %123 : vector<8x32xf32>
    %125 = vector.extract_strided_slice %112 {offsets = [0, 64], sizes = [8, 32], strides = [1, 1]} : vector<8x128xf32> to vector<8x32xf32>
    %126 = math.tanh %125 : vector<8x32xf32>
    %127 = vector.extract_strided_slice %112 {offsets = [0, 96], sizes = [8, 32], strides = [1, 1]} : vector<8x128xf32> to vector<8x32xf32>
    %128 = arith.negf %127 : vector<8x32xf32>
    %129 = math.exp %128 : vector<8x32xf32>
    %cst_56 = arith.constant 1.000000e+00 : f32
    %130 = vector.broadcast %cst_56 : f32 to vector<8x32xf32>
    %131 = arith.addf %130, %129 : vector<8x32xf32>
    %132 = arith.divf %130, %131 : vector<8x32xf32>
    %133 = arith.mulf %124, %62 : vector<8x32xf32>
    %134 = arith.mulf %118, %126 : vector<8x32xf32>
    %135 = arith.addf %133, %134 : vector<8x32xf32>
    %136 = math.tanh %135 : vector<8x32xf32>
    %137 = arith.mulf %132, %136 : vector<8x32xf32>
    %138 = vector.extract_strided_slice %111 {offsets = [0, 128], sizes = [8, 128], strides = [1, 1]} : vector<8x256xf32> to vector<8x128xf32>
    %139 = vector.extract_strided_slice %138 {offsets = [0, 0], sizes = [8, 32], strides = [1, 1]} : vector<8x128xf32> to vector<8x32xf32>
    %140 = arith.negf %139 : vector<8x32xf32>
    %141 = math.exp %140 : vector<8x32xf32>
    %cst_57 = arith.constant 1.000000e+00 : f32
    %142 = vector.broadcast %cst_57 : f32 to vector<8x32xf32>
    %143 = arith.addf %142, %141 : vector<8x32xf32>
    %144 = arith.divf %142, %143 : vector<8x32xf32>
    %145 = vector.extract_strided_slice %138 {offsets = [0, 32], sizes = [8, 32], strides = [1, 1]} : vector<8x128xf32> to vector<8x32xf32>
    %146 = arith.negf %145 : vector<8x32xf32>
    %147 = math.exp %146 : vector<8x32xf32>
    %cst_58 = arith.constant 1.000000e+00 : f32
    %148 = vector.broadcast %cst_58 : f32 to vector<8x32xf32>
    %149 = arith.addf %148, %147 : vector<8x32xf32>
    %150 = arith.divf %148, %149 : vector<8x32xf32>
    %151 = vector.extract_strided_slice %138 {offsets = [0, 64], sizes = [8, 32], strides = [1, 1]} : vector<8x128xf32> to vector<8x32xf32>
    %152 = math.tanh %151 : vector<8x32xf32>
    %153 = vector.extract_strided_slice %138 {offsets = [0, 96], sizes = [8, 32], strides = [1, 1]} : vector<8x128xf32> to vector<8x32xf32>
    %154 = arith.negf %153 : vector<8x32xf32>
    %155 = math.exp %154 : vector<8x32xf32>
    %cst_59 = arith.constant 1.000000e+00 : f32
    %156 = vector.broadcast %cst_59 : f32 to vector<8x32xf32>
    %157 = arith.addf %156, %155 : vector<8x32xf32>
    %158 = arith.divf %156, %157 : vector<8x32xf32>
    %159 = arith.mulf %150, %88 : vector<8x32xf32>
    %160 = arith.mulf %144, %152 : vector<8x32xf32>
    %161 = arith.addf %159, %160 : vector<8x32xf32>
    %162 = math.tanh %161 : vector<8x32xf32>
    %163 = arith.mulf %158, %162 : vector<8x32xf32>
    %c2 = arith.constant 2 : index
    %c0_60 = arith.constant 0 : index
    %c0_61 = arith.constant 0 : index
    %164 = vector.load %arg17[%c2, %c0_60, %c0_61] : memref<10x8x32xf32, #tpu.memory_space<vmem>>, vector<1x8x32xf32>
    %165 = vector.shape_cast %164 : vector<1x8x32xf32> to vector<8x32xf32>
    %166 = arith.addf %165, %137 : vector<8x32xf32>
    %c2_62 = arith.constant 2 : index
    %c0_63 = arith.constant 0 : index
    %c0_64 = arith.constant 0 : index
    %167 = vector.load %arg17[%c2_62, %c0_63, %c0_64] : memref<10x8x32xf32, #tpu.memory_space<vmem>>, vector<1x8x32xf32>
    %168 = vector.shape_cast %167 : vector<1x8x32xf32> to vector<8x32xf32>
    %169 = vector.shape_cast %166 : vector<8x32xf32> to vector<1x8x32xf32>
    tpu.vector_store %arg17[%c2_62, %c0_63, %c0_64], %169 {strides = array<i32>} : memref<10x8x32xf32, #tpu.memory_space<vmem>>, vector<1x8x32xf32>,
    %c7 = arith.constant 7 : index
    %c0_65 = arith.constant 0 : index
    %c0_66 = arith.constant 0 : index
    %170 = vector.load %arg17[%c7, %c0_65, %c0_66] : memref<10x8x32xf32, #tpu.memory_space<vmem>>, vector<1x8x32xf32>
    %171 = vector.shape_cast %170 : vector<1x8x32xf32> to vector<8x32xf32>
    %172 = arith.addf %171, %163 : vector<8x32xf32>
    %c7_67 = arith.constant 7 : index
    %c0_68 = arith.constant 0 : index
    %c0_69 = arith.constant 0 : index
    %173 = vector.load %arg17[%c7_67, %c0_68, %c0_69] : memref<10x8x32xf32, #tpu.memory_space<vmem>>, vector<1x8x32xf32>
    %174 = vector.shape_cast %173 : vector<1x8x32xf32> to vector<8x32xf32>
    %175 = vector.shape_cast %172 : vector<8x32xf32> to vector<1x8x32xf32>
    tpu.vector_store %arg17[%c7_67, %c0_68, %c0_69], %175 {strides = array<i32>} : memref<10x8x32xf32, #tpu.memory_space<vmem>>, vector<1x8x32xf32>,
    %c16 = arith.constant 16 : index
    %c0_70 = arith.constant 0 : index
    %176 = vector.load %arg16[%c16, %c0_70] : memref<64x256xf32, #tpu.memory_space<vmem>>, vector<8x256xf32>
    %c40 = arith.constant 40 : index
    %c0_71 = arith.constant 0 : index
    %177 = vector.load %arg16[%c40, %c0_71] : memref<64x256xf32, #tpu.memory_space<vmem>>, vector<8x256xf32>
    %178 = vector.extract_strided_slice %176 {offsets = [0, 0], sizes = [8, 128], strides = [1, 1]} : vector<8x256xf32> to vector<8x128xf32>
    %179 = vector.extract_strided_slice %177 {offsets = [0, 128], sizes = [8, 128], strides = [1, 1]} : vector<8x256xf32> to vector<8x128xf32>
    %180 = tpu.concatenate %178, %179 in 1 : vector<8x128xf32>, vector<8x128xf32> -> vector<8x256xf32>
    %181 = tpu.concatenate %137, %163 in 1 : vector<8x32xf32>, vector<8x32xf32> -> vector<8x64xf32>
    %182 = arith.truncf %181 : vector<8x64xf32> to vector<8x64xbf16>
    %cst_72 = arith.constant dense<0.000000e+00> : vector<8x256xf32>
    %183 = tpu.matmul %182, %25, %cst_72 {dimension_numbers = #tpu.dot_dimension_numbers<[1], [0], [0], [1], [0, 0, 1, 1], [], []>} : vector<8x64xbf16>, vector<64x256xbf16>, vector<8x256xf32> -> vector<8x256xf32>
    %184 = arith.addf %180, %183 : vector<8x256xf32>
    %185 = vector.extract_strided_slice %184 {offsets = [0, 0], sizes = [8, 128], strides = [1, 1]} : vector<8x256xf32> to vector<8x128xf32>
    %186 = vector.extract_strided_slice %185 {offsets = [0, 0], sizes = [8, 32], strides = [1, 1]} : vector<8x128xf32> to vector<8x32xf32>
    %187 = arith.negf %186 : vector<8x32xf32>
    %188 = math.exp %187 : vector<8x32xf32>
    %cst_73 = arith.constant 1.000000e+00 : f32
    %189 = vector.broadcast %cst_73 : f32 to vector<8x32xf32>
    %190 = arith.addf %189, %188 : vector<8x32xf32>
    %191 = arith.divf %189, %190 : vector<8x32xf32>
    %192 = vector.extract_strided_slice %185 {offsets = [0, 32], sizes = [8, 32], strides = [1, 1]} : vector<8x128xf32> to vector<8x32xf32>
    %193 = arith.negf %192 : vector<8x32xf32>
    %194 = math.exp %193 : vector<8x32xf32>
    %cst_74 = arith.constant 1.000000e+00 : f32
    %195 = vector.broadcast %cst_74 : f32 to vector<8x32xf32>
    %196 = arith.addf %195, %194 : vector<8x32xf32>
    %197 = arith.divf %195, %196 : vector<8x32xf32>
    %198 = vector.extract_strided_slice %185 {offsets = [0, 64], sizes = [8, 32], strides = [1, 1]} : vector<8x128xf32> to vector<8x32xf32>
    %199 = math.tanh %198 : vector<8x32xf32>
    %200 = vector.extract_strided_slice %185 {offsets = [0, 96], sizes = [8, 32], strides = [1, 1]} : vector<8x128xf32> to vector<8x32xf32>
    %201 = arith.negf %200 : vector<8x32xf32>
    %202 = math.exp %201 : vector<8x32xf32>
    %cst_75 = arith.constant 1.000000e+00 : f32
    %203 = vector.broadcast %cst_75 : f32 to vector<8x32xf32>
    %204 = arith.addf %203, %202 : vector<8x32xf32>
    %205 = arith.divf %203, %204 : vector<8x32xf32>
    %206 = arith.mulf %197, %135 : vector<8x32xf32>
    %207 = arith.mulf %191, %199 : vector<8x32xf32>
    %208 = arith.addf %206, %207 : vector<8x32xf32>
    %209 = math.tanh %208 : vector<8x32xf32>
    %210 = arith.mulf %205, %209 : vector<8x32xf32>
    %211 = vector.extract_strided_slice %184 {offsets = [0, 128], sizes = [8, 128], strides = [1, 1]} : vector<8x256xf32> to vector<8x128xf32>
    %212 = vector.extract_strided_slice %211 {offsets = [0, 0], sizes = [8, 32], strides = [1, 1]} : vector<8x128xf32> to vector<8x32xf32>
    %213 = arith.negf %212 : vector<8x32xf32>
    %214 = math.exp %213 : vector<8x32xf32>
    %cst_76 = arith.constant 1.000000e+00 : f32
    %215 = vector.broadcast %cst_76 : f32 to vector<8x32xf32>
    %216 = arith.addf %215, %214 : vector<8x32xf32>
    %217 = arith.divf %215, %216 : vector<8x32xf32>
    %218 = vector.extract_strided_slice %211 {offsets = [0, 32], sizes = [8, 32], strides = [1, 1]} : vector<8x128xf32> to vector<8x32xf32>
    %219 = arith.negf %218 : vector<8x32xf32>
    %220 = math.exp %219 : vector<8x32xf32>
    %cst_77 = arith.constant 1.000000e+00 : f32
    %221 = vector.broadcast %cst_77 : f32 to vector<8x32xf32>
    %222 = arith.addf %221, %220 : vector<8x32xf32>
    %223 = arith.divf %221, %222 : vector<8x32xf32>
    %224 = vector.extract_strided_slice %211 {offsets = [0, 64], sizes = [8, 32], strides = [1, 1]} : vector<8x128xf32> to vector<8x32xf32>
    %225 = math.tanh %224 : vector<8x32xf32>
    %226 = vector.extract_strided_slice %211 {offsets = [0, 96], sizes = [8, 32], strides = [1, 1]} : vector<8x128xf32> to vector<8x32xf32>
    %227 = arith.negf %226 : vector<8x32xf32>
    %228 = math.exp %227 : vector<8x32xf32>
    %cst_78 = arith.constant 1.000000e+00 : f32
    %229 = vector.broadcast %cst_78 : f32 to vector<8x32xf32>
    %230 = arith.addf %229, %228 : vector<8x32xf32>
    %231 = arith.divf %229, %230 : vector<8x32xf32>
    %232 = arith.mulf %223, %161 : vector<8x32xf32>
    %233 = arith.mulf %217, %225 : vector<8x32xf32>
    %234 = arith.addf %232, %233 : vector<8x32xf32>
    %235 = math.tanh %234 : vector<8x32xf32>
    %236 = arith.mulf %231, %235 : vector<8x32xf32>
    %c3 = arith.constant 3 : index
    %c0_79 = arith.constant 0 : index
    %c0_80 = arith.constant 0 : index
    %237 = vector.load %arg17[%c3, %c0_79, %c0_80] : memref<10x8x32xf32, #tpu.memory_space<vmem>>, vector<1x8x32xf32>
    %238 = vector.shape_cast %237 : vector<1x8x32xf32> to vector<8x32xf32>
    %239 = arith.addf %238, %210 : vector<8x32xf32>
    %c3_81 = arith.constant 3 : index
    %c0_82 = arith.constant 0 : index
    %c0_83 = arith.constant 0 : index
    %240 = vector.load %arg17[%c3_81, %c0_82, %c0_83] : memref<10x8x32xf32, #tpu.memory_space<vmem>>, vector<1x8x32xf32>
    %241 = vector.shape_cast %240 : vector<1x8x32xf32> to vector<8x32xf32>
    %242 = vector.shape_cast %239 : vector<8x32xf32> to vector<1x8x32xf32>
    tpu.vector_store %arg17[%c3_81, %c0_82, %c0_83], %242 {strides = array<i32>} : memref<10x8x32xf32, #tpu.memory_space<vmem>>, vector<1x8x32xf32>,
    %c6 = arith.constant 6 : index
    %c0_84 = arith.constant 0 : index
    %c0_85 = arith.constant 0 : index
    %243 = vector.load %arg17[%c6, %c0_84, %c0_85] : memref<10x8x32xf32, #tpu.memory_space<vmem>>, vector<1x8x32xf32>
    %244 = vector.shape_cast %243 : vector<1x8x32xf32> to vector<8x32xf32>
    %245 = arith.addf %244, %236 : vector<8x32xf32>
    %c6_86 = arith.constant 6 : index
    %c0_87 = arith.constant 0 : index
    %c0_88 = arith.constant 0 : index
    %246 = vector.load %arg17[%c6_86, %c0_87, %c0_88] : memref<10x8x32xf32, #tpu.memory_space<vmem>>, vector<1x8x32xf32>
    %247 = vector.shape_cast %246 : vector<1x8x32xf32> to vector<8x32xf32>
    %248 = vector.shape_cast %245 : vector<8x32xf32> to vector<1x8x32xf32>
    tpu.vector_store %arg17[%c6_86, %c0_87, %c0_88], %248 {strides = array<i32>} : memref<10x8x32xf32, #tpu.memory_space<vmem>>, vector<1x8x32xf32>,
    %c24 = arith.constant 24 : index
    %c0_89 = arith.constant 0 : index
    %249 = vector.load %arg16[%c24, %c0_89] : memref<64x256xf32, #tpu.memory_space<vmem>>, vector<8x256xf32>
    %c32 = arith.constant 32 : index
    %c0_90 = arith.constant 0 : index
    %250 = vector.load %arg16[%c32, %c0_90] : memref<64x256xf32, #tpu.memory_space<vmem>>, vector<8x256xf32>
    %251 = vector.extract_strided_slice %249 {offsets = [0, 0], sizes = [8, 128], strides = [1, 1]} : vector<8x256xf32> to vector<8x128xf32>
    %252 = vector.extract_strided_slice %250 {offsets = [0, 128], sizes = [8, 128], strides = [1, 1]} : vector<8x256xf32> to vector<8x128xf32>
    %253 = tpu.concatenate %251, %252 in 1 : vector<8x128xf32>, vector<8x128xf32> -> vector<8x256xf32>
    %254 = tpu.concatenate %210, %236 in 1 : vector<8x32xf32>, vector<8x32xf32> -> vector<8x64xf32>
    %255 = arith.truncf %254 : vector<8x64xf32> to vector<8x64xbf16>
    %cst_91 = arith.constant dense<0.000000e+00> : vector<8x256xf32>
    %256 = tpu.matmul %255, %25, %cst_91 {dimension_numbers = #tpu.dot_dimension_numbers<[1], [0], [0], [1], [0, 0, 1, 1], [], []>} : vector<8x64xbf16>, vector<64x256xbf16>, vector<8x256xf32> -> vector<8x256xf32>
    %257 = arith.addf %253, %256 : vector<8x256xf32>
    %258 = vector.extract_strided_slice %257 {offsets = [0, 0], sizes = [8, 128], strides = [1, 1]} : vector<8x256xf32> to vector<8x128xf32>
    %259 = vector.extract_strided_slice %258 {offsets = [0, 0], sizes = [8, 32], strides = [1, 1]} : vector<8x128xf32> to vector<8x32xf32>
    %260 = arith.negf %259 : vector<8x32xf32>
    %261 = math.exp %260 : vector<8x32xf32>
    %cst_92 = arith.constant 1.000000e+00 : f32
    %262 = vector.broadcast %cst_92 : f32 to vector<8x32xf32>
    %263 = arith.addf %262, %261 : vector<8x32xf32>
    %264 = arith.divf %262, %263 : vector<8x32xf32>
    %265 = vector.extract_strided_slice %258 {offsets = [0, 32], sizes = [8, 32], strides = [1, 1]} : vector<8x128xf32> to vector<8x32xf32>
    %266 = arith.negf %265 : vector<8x32xf32>
    %267 = math.exp %266 : vector<8x32xf32>
    %cst_93 = arith.constant 1.000000e+00 : f32
    %268 = vector.broadcast %cst_93 : f32 to vector<8x32xf32>
    %269 = arith.addf %268, %267 : vector<8x32xf32>
    %270 = arith.divf %268, %269 : vector<8x32xf32>
    %271 = vector.extract_strided_slice %258 {offsets = [0, 64], sizes = [8, 32], strides = [1, 1]} : vector<8x128xf32> to vector<8x32xf32>
    %272 = math.tanh %271 : vector<8x32xf32>
    %273 = vector.extract_strided_slice %258 {offsets = [0, 96], sizes = [8, 32], strides = [1, 1]} : vector<8x128xf32> to vector<8x32xf32>
    %274 = arith.negf %273 : vector<8x32xf32>
    %275 = math.exp %274 : vector<8x32xf32>
    %cst_94 = arith.constant 1.000000e+00 : f32
    %276 = vector.broadcast %cst_94 : f32 to vector<8x32xf32>
    %277 = arith.addf %276, %275 : vector<8x32xf32>
    %278 = arith.divf %276, %277 : vector<8x32xf32>
    %279 = arith.mulf %270, %208 : vector<8x32xf32>
    %280 = arith.mulf %264, %272 : vector<8x32xf32>
    %281 = arith.addf %279, %280 : vector<8x32xf32>
    %282 = math.tanh %281 : vector<8x32xf32>
    %283 = arith.mulf %278, %282 : vector<8x32xf32>
    %284 = vector.extract_strided_slice %257 {offsets = [0, 128], sizes = [8, 128], strides = [1, 1]} : vector<8x256xf32> to vector<8x128xf32>
    %285 = vector.extract_strided_slice %284 {offsets = [0, 0], sizes = [8, 32], strides = [1, 1]} : vector<8x128xf32> to vector<8x32xf32>
    %286 = arith.negf %285 : vector<8x32xf32>
    %287 = math.exp %286 : vector<8x32xf32>
    %cst_95 = arith.constant 1.000000e+00 : f32
    %288 = vector.broadcast %cst_95 : f32 to vector<8x32xf32>
    %289 = arith.addf %288, %287 : vector<8x32xf32>
    %290 = arith.divf %288, %289 : vector<8x32xf32>
    %291 = vector.extract_strided_slice %284 {offsets = [0, 32], sizes = [8, 32], strides = [1, 1]} : vector<8x128xf32> to vector<8x32xf32>
    %292 = arith.negf %291 : vector<8x32xf32>
    %293 = math.exp %292 : vector<8x32xf32>
    %cst_96 = arith.constant 1.000000e+00 : f32
    %294 = vector.broadcast %cst_96 : f32 to vector<8x32xf32>
    %295 = arith.addf %294, %293 : vector<8x32xf32>
    %296 = arith.divf %294, %295 : vector<8x32xf32>
    %297 = vector.extract_strided_slice %284 {offsets = [0, 64], sizes = [8, 32], strides = [1, 1]} : vector<8x128xf32> to vector<8x32xf32>
    %298 = math.tanh %297 : vector<8x32xf32>
    %299 = vector.extract_strided_slice %284 {offsets = [0, 96], sizes = [8, 32], strides = [1, 1]} : vector<8x128xf32> to vector<8x32xf32>
    %300 = arith.negf %299 : vector<8x32xf32>
    %301 = math.exp %300 : vector<8x32xf32>
    %cst_97 = arith.constant 1.000000e+00 : f32
    %302 = vector.broadcast %cst_97 : f32 to vector<8x32xf32>
    %303 = arith.addf %302, %301 : vector<8x32xf32>
    %304 = arith.divf %302, %303 : vector<8x32xf32>
    %305 = arith.mulf %296, %234 : vector<8x32xf32>
    %306 = arith.mulf %290, %298 : vector<8x32xf32>
    %307 = arith.addf %305, %306 : vector<8x32xf32>
    %308 = math.tanh %307 : vector<8x32xf32>
    %309 = arith.mulf %304, %308 : vector<8x32xf32>
    %c4 = arith.constant 4 : index
    %c0_98 = arith.constant 0 : index
    %c0_99 = arith.constant 0 : index
    %310 = vector.load %arg17[%c4, %c0_98, %c0_99] : memref<10x8x32xf32, #tpu.memory_space<vmem>>, vector<1x8x32xf32>
    %311 = vector.shape_cast %310 : vector<1x8x32xf32> to vector<8x32xf32>
    %312 = arith.addf %311, %283 : vector<8x32xf32>
    %c4_100 = arith.constant 4 : index
    %c0_101 = arith.constant 0 : index
    %c0_102 = arith.constant 0 : index
    %313 = vector.load %arg17[%c4_100, %c0_101, %c0_102] : memref<10x8x32xf32, #tpu.memory_space<vmem>>, vector<1x8x32xf32>
    %314 = vector.shape_cast %313 : vector<1x8x32xf32> to vector<8x32xf32>
    %315 = vector.shape_cast %312 : vector<8x32xf32> to vector<1x8x32xf32>
    tpu.vector_store %arg17[%c4_100, %c0_101, %c0_102], %315 {strides = array<i32>} : memref<10x8x32xf32, #tpu.memory_space<vmem>>, vector<1x8x32xf32>,
    %c5 = arith.constant 5 : index
    %c0_103 = arith.constant 0 : index
    %c0_104 = arith.constant 0 : index
    %316 = vector.load %arg17[%c5, %c0_103, %c0_104] : memref<10x8x32xf32, #tpu.memory_space<vmem>>, vector<1x8x32xf32>
    %317 = vector.shape_cast %316 : vector<1x8x32xf32> to vector<8x32xf32>
    %318 = arith.addf %317, %309 : vector<8x32xf32>
    %c5_105 = arith.constant 5 : index
    %c0_106 = arith.constant 0 : index
    %c0_107 = arith.constant 0 : index
    %319 = vector.load %arg17[%c5_105, %c0_106, %c0_107] : memref<10x8x32xf32, #tpu.memory_space<vmem>>, vector<1x8x32xf32>
    %320 = vector.shape_cast %319 : vector<1x8x32xf32> to vector<8x32xf32>
    %321 = vector.shape_cast %318 : vector<8x32xf32> to vector<1x8x32xf32>
    tpu.vector_store %arg17[%c5_105, %c0_106, %c0_107], %321 {strides = array<i32>} : memref<10x8x32xf32, #tpu.memory_space<vmem>>, vector<1x8x32xf32>,
    %c32_108 = arith.constant 32 : index
    %c0_109 = arith.constant 0 : index
    %322 = vector.load %arg16[%c32_108, %c0_109] : memref<64x256xf32, #tpu.memory_space<vmem>>, vector<8x256xf32>
    %c24_110 = arith.constant 24 : index
    %c0_111 = arith.constant 0 : index
    %323 = vector.load %arg16[%c24_110, %c0_111] : memref<64x256xf32, #tpu.memory_space<vmem>>, vector<8x256xf32>
    %324 = vector.extract_strided_slice %322 {offsets = [0, 0], sizes = [8, 128], strides = [1, 1]} : vector<8x256xf32> to vector<8x128xf32>
    %325 = vector.extract_strided_slice %323 {offsets = [0, 128], sizes = [8, 128], strides = [1, 1]} : vector<8x256xf32> to vector<8x128xf32>
    %326 = tpu.concatenate %324, %325 in 1 : vector<8x128xf32>, vector<8x128xf32> -> vector<8x256xf32>
    %327 = tpu.concatenate %283, %309 in 1 : vector<8x32xf32>, vector<8x32xf32> -> vector<8x64xf32>
    %328 = arith.truncf %327 : vector<8x64xf32> to vector<8x64xbf16>
    %cst_112 = arith.constant dense<0.000000e+00> : vector<8x256xf32>
    %329 = tpu.matmul %328, %25, %cst_112 {dimension_numbers = #tpu.dot_dimension_numbers<[1], [0], [0], [1], [0, 0, 1, 1], [], []>} : vector<8x64xbf16>, vector<64x256xbf16>, vector<8x256xf32> -> vector<8x256xf32>
    %330 = arith.addf %326, %329 : vector<8x256xf32>
    %331 = vector.extract_strided_slice %330 {offsets = [0, 0], sizes = [8, 128], strides = [1, 1]} : vector<8x256xf32> to vector<8x128xf32>
    %332 = vector.extract_strided_slice %331 {offsets = [0, 0], sizes = [8, 32], strides = [1, 1]} : vector<8x128xf32> to vector<8x32xf32>
    %333 = arith.negf %332 : vector<8x32xf32>
    %334 = math.exp %333 : vector<8x32xf32>
    %cst_113 = arith.constant 1.000000e+00 : f32
    %335 = vector.broadcast %cst_113 : f32 to vector<8x32xf32>
    %336 = arith.addf %335, %334 : vector<8x32xf32>
    %337 = arith.divf %335, %336 : vector<8x32xf32>
    %338 = vector.extract_strided_slice %331 {offsets = [0, 32], sizes = [8, 32], strides = [1, 1]} : vector<8x128xf32> to vector<8x32xf32>
    %339 = arith.negf %338 : vector<8x32xf32>
    %340 = math.exp %339 : vector<8x32xf32>
    %cst_114 = arith.constant 1.000000e+00 : f32
    %341 = vector.broadcast %cst_114 : f32 to vector<8x32xf32>
    %342 = arith.addf %341, %340 : vector<8x32xf32>
    %343 = arith.divf %341, %342 : vector<8x32xf32>
    %344 = vector.extract_strided_slice %331 {offsets = [0, 64], sizes = [8, 32], strides = [1, 1]} : vector<8x128xf32> to vector<8x32xf32>
    %345 = math.tanh %344 : vector<8x32xf32>
    %346 = vector.extract_strided_slice %331 {offsets = [0, 96], sizes = [8, 32], strides = [1, 1]} : vector<8x128xf32> to vector<8x32xf32>
    %347 = arith.negf %346 : vector<8x32xf32>
    %348 = math.exp %347 : vector<8x32xf32>
    %cst_115 = arith.constant 1.000000e+00 : f32
    %349 = vector.broadcast %cst_115 : f32 to vector<8x32xf32>
    %350 = arith.addf %349, %348 : vector<8x32xf32>
    %351 = arith.divf %349, %350 : vector<8x32xf32>
    %352 = arith.mulf %343, %281 : vector<8x32xf32>
    %353 = arith.mulf %337, %345 : vector<8x32xf32>
    %354 = arith.addf %352, %353 : vector<8x32xf32>
    %355 = math.tanh %354 : vector<8x32xf32>
    %356 = arith.mulf %351, %355 : vector<8x32xf32>
    %357 = vector.extract_strided_slice %330 {offsets = [0, 128], sizes = [8, 128], strides = [1, 1]} : vector<8x256xf32> to vector<8x128xf32>
    %358 = vector.extract_strided_slice %357 {offsets = [0, 0], sizes = [8, 32], strides = [1, 1]} : vector<8x128xf32> to vector<8x32xf32>
    %359 = arith.negf %358 : vector<8x32xf32>
    %360 = math.exp %359 : vector<8x32xf32>
    %cst_116 = arith.constant 1.000000e+00 : f32
    %361 = vector.broadcast %cst_116 : f32 to vector<8x32xf32>
    %362 = arith.addf %361, %360 : vector<8x32xf32>
    %363 = arith.divf %361, %362 : vector<8x32xf32>
    %364 = vector.extract_strided_slice %357 {offsets = [0, 32], sizes = [8, 32], strides = [1, 1]} : vector<8x128xf32> to vector<8x32xf32>
    %365 = arith.negf %364 : vector<8x32xf32>
    %366 = math.exp %365 : vector<8x32xf32>
    %cst_117 = arith.constant 1.000000e+00 : f32
    %367 = vector.broadcast %cst_117 : f32 to vector<8x32xf32>
    %368 = arith.addf %367, %366 : vector<8x32xf32>
    %369 = arith.divf %367, %368 : vector<8x32xf32>
    %370 = vector.extract_strided_slice %357 {offsets = [0, 64], sizes = [8, 32], strides = [1, 1]} : vector<8x128xf32> to vector<8x32xf32>
    %371 = math.tanh %370 : vector<8x32xf32>
    %372 = vector.extract_strided_slice %357 {offsets = [0, 96], sizes = [8, 32], strides = [1, 1]} : vector<8x128xf32> to vector<8x32xf32>
    %373 = arith.negf %372 : vector<8x32xf32>
    %374 = math.exp %373 : vector<8x32xf32>
    %cst_118 = arith.constant 1.000000e+00 : f32
    %375 = vector.broadcast %cst_118 : f32 to vector<8x32xf32>
    %376 = arith.addf %375, %374 : vector<8x32xf32>
    %377 = arith.divf %375, %376 : vector<8x32xf32>
    %378 = arith.mulf %369, %307 : vector<8x32xf32>
    %379 = arith.mulf %363, %371 : vector<8x32xf32>
    %380 = arith.addf %378, %379 : vector<8x32xf32>
    %381 = math.tanh %380 : vector<8x32xf32>
    %382 = arith.mulf %377, %381 : vector<8x32xf32>
    %c5_119 = arith.constant 5 : index
    %c0_120 = arith.constant 0 : index
    %c0_121 = arith.constant 0 : index
    %383 = vector.load %arg17[%c5_119, %c0_120, %c0_121] : memref<10x8x32xf32, #tpu.memory_space<vmem>>, vector<1x8x32xf32>
    %384 = vector.shape_cast %383 : vector<1x8x32xf32> to vector<8x32xf32>
    %385 = arith.addf %384, %356 : vector<8x32xf32>
    %c5_122 = arith.constant 5 : index
    %c0_123 = arith.constant 0 : index
    %c0_124 = arith.constant 0 : index
    %386 = vector.load %arg17[%c5_122, %c0_123, %c0_124] : memref<10x8x32xf32, #tpu.memory_space<vmem>>, vector<1x8x32xf32>
    %387 = vector.shape_cast %386 : vector<1x8x32xf32> to vector<8x32xf32>
    %388 = vector.shape_cast %385 : vector<8x32xf32> to vector<1x8x32xf32>
    tpu.vector_store %arg17[%c5_122, %c0_123, %c0_124], %388 {strides = array<i32>} : memref<10x8x32xf32, #tpu.memory_space<vmem>>, vector<1x8x32xf32>,
    %c4_125 = arith.constant 4 : index
    %c0_126 = arith.constant 0 : index
    %c0_127 = arith.constant 0 : index
    %389 = vector.load %arg17[%c4_125, %c0_126, %c0_127] : memref<10x8x32xf32, #tpu.memory_space<vmem>>, vector<1x8x32xf32>
    %390 = vector.shape_cast %389 : vector<1x8x32xf32> to vector<8x32xf32>
    %391 = arith.addf %390, %382 : vector<8x32xf32>
    %c4_128 = arith.constant 4 : index
    %c0_129 = arith.constant 0 : index
    %c0_130 = arith.constant 0 : index
    %392 = vector.load %arg17[%c4_128, %c0_129, %c0_130] : memref<10x8x32xf32, #tpu.memory_space<vmem>>, vector<1x8x32xf32>
    %393 = vector.shape_cast %392 : vector<1x8x32xf32> to vector<8x32xf32>
    %394 = vector.shape_cast %391 : vector<8x32xf32> to vector<1x8x32xf32>
    tpu.vector_store %arg17[%c4_128, %c0_129, %c0_130], %394 {strides = array<i32>} : memref<10x8x32xf32, #tpu.memory_space<vmem>>, vector<1x8x32xf32>,
    %c40_131 = arith.constant 40 : index
    %c0_132 = arith.constant 0 : index
    %395 = vector.load %arg16[%c40_131, %c0_132] : memref<64x256xf32, #tpu.memory_space<vmem>>, vector<8x256xf32>
    %c16_133 = arith.constant 16 : index
    %c0_134 = arith.constant 0 : index
    %396 = vector.load %arg16[%c16_133, %c0_134] : memref<64x256xf32, #tpu.memory_space<vmem>>, vector<8x256xf32>
    %397 = vector.extract_strided_slice %395 {offsets = [0, 0], sizes = [8, 128], strides = [1, 1]} : vector<8x256xf32> to vector<8x128xf32>
    %398 = vector.extract_strided_slice %396 {offsets = [0, 128], sizes = [8, 128], strides = [1, 1]} : vector<8x256xf32> to vector<8x128xf32>
    %399 = tpu.concatenate %397, %398 in 1 : vector<8x128xf32>, vector<8x128xf32> -> vector<8x256xf32>
    %400 = tpu.concatenate %356, %382 in 1 : vector<8x32xf32>, vector<8x32xf32> -> vector<8x64xf32>
    %401 = arith.truncf %400 : vector<8x64xf32> to vector<8x64xbf16>
    %cst_135 = arith.constant dense<0.000000e+00> : vector<8x256xf32>
    %402 = tpu.matmul %401, %25, %cst_135 {dimension_numbers = #tpu.dot_dimension_numbers<[1], [0], [0], [1], [0, 0, 1, 1], [], []>} : vector<8x64xbf16>, vector<64x256xbf16>, vector<8x256xf32> -> vector<8x256xf32>
    %403 = arith.addf %399, %402 : vector<8x256xf32>
    %404 = vector.extract_strided_slice %403 {offsets = [0, 0], sizes = [8, 128], strides = [1, 1]} : vector<8x256xf32> to vector<8x128xf32>
    %405 = vector.extract_strided_slice %404 {offsets = [0, 0], sizes = [8, 32], strides = [1, 1]} : vector<8x128xf32> to vector<8x32xf32>
    %406 = arith.negf %405 : vector<8x32xf32>
    %407 = math.exp %406 : vector<8x32xf32>
    %cst_136 = arith.constant 1.000000e+00 : f32
    %408 = vector.broadcast %cst_136 : f32 to vector<8x32xf32>
    %409 = arith.addf %408, %407 : vector<8x32xf32>
    %410 = arith.divf %408, %409 : vector<8x32xf32>
    %411 = vector.extract_strided_slice %404 {offsets = [0, 32], sizes = [8, 32], strides = [1, 1]} : vector<8x128xf32> to vector<8x32xf32>
    %412 = arith.negf %411 : vector<8x32xf32>
    %413 = math.exp %412 : vector<8x32xf32>
    %cst_137 = arith.constant 1.000000e+00 : f32
    %414 = vector.broadcast %cst_137 : f32 to vector<8x32xf32>
    %415 = arith.addf %414, %413 : vector<8x32xf32>
    %416 = arith.divf %414, %415 : vector<8x32xf32>
    %417 = vector.extract_strided_slice %404 {offsets = [0, 64], sizes = [8, 32], strides = [1, 1]} : vector<8x128xf32> to vector<8x32xf32>
    %418 = math.tanh %417 : vector<8x32xf32>
    %419 = vector.extract_strided_slice %404 {offsets = [0, 96], sizes = [8, 32], strides = [1, 1]} : vector<8x128xf32> to vector<8x32xf32>
    %420 = arith.negf %419 : vector<8x32xf32>
    %421 = math.exp %420 : vector<8x32xf32>
    %cst_138 = arith.constant 1.000000e+00 : f32
    %422 = vector.broadcast %cst_138 : f32 to vector<8x32xf32>
    %423 = arith.addf %422, %421 : vector<8x32xf32>
    %424 = arith.divf %422, %423 : vector<8x32xf32>
    %425 = arith.mulf %416, %354 : vector<8x32xf32>
    %426 = arith.mulf %410, %418 : vector<8x32xf32>
    %427 = arith.addf %425, %426 : vector<8x32xf32>
    %428 = math.tanh %427 : vector<8x32xf32>
    %429 = arith.mulf %424, %428 : vector<8x32xf32>
    %430 = vector.extract_strided_slice %403 {offsets = [0, 128], sizes = [8, 128], strides = [1, 1]} : vector<8x256xf32> to vector<8x128xf32>
    %431 = vector.extract_strided_slice %430 {offsets = [0, 0], sizes = [8, 32], strides = [1, 1]} : vector<8x128xf32> to vector<8x32xf32>
    %432 = arith.negf %431 : vector<8x32xf32>
    %433 = math.exp %432 : vector<8x32xf32>
    %cst_139 = arith.constant 1.000000e+00 : f32
    %434 = vector.broadcast %cst_139 : f32 to vector<8x32xf32>
    %435 = arith.addf %434, %433 : vector<8x32xf32>
    %436 = arith.divf %434, %435 : vector<8x32xf32>
    %437 = vector.extract_strided_slice %430 {offsets = [0, 32], sizes = [8, 32], strides = [1, 1]} : vector<8x128xf32> to vector<8x32xf32>
    %438 = arith.negf %437 : vector<8x32xf32>
    %439 = math.exp %438 : vector<8x32xf32>
    %cst_140 = arith.constant 1.000000e+00 : f32
    %440 = vector.broadcast %cst_140 : f32 to vector<8x32xf32>
    %441 = arith.addf %440, %439 : vector<8x32xf32>
    %442 = arith.divf %440, %441 : vector<8x32xf32>
    %443 = vector.extract_strided_slice %430 {offsets = [0, 64], sizes = [8, 32], strides = [1, 1]} : vector<8x128xf32> to vector<8x32xf32>
    %444 = math.tanh %443 : vector<8x32xf32>
    %445 = vector.extract_strided_slice %430 {offsets = [0, 96], sizes = [8, 32], strides = [1, 1]} : vector<8x128xf32> to vector<8x32xf32>
    %446 = arith.negf %445 : vector<8x32xf32>
    %447 = math.exp %446 : vector<8x32xf32>
    %cst_141 = arith.constant 1.000000e+00 : f32
    %448 = vector.broadcast %cst_141 : f32 to vector<8x32xf32>
    %449 = arith.addf %448, %447 : vector<8x32xf32>
    %450 = arith.divf %448, %449 : vector<8x32xf32>
    %451 = arith.mulf %442, %380 : vector<8x32xf32>
    %452 = arith.mulf %436, %444 : vector<8x32xf32>
    %453 = arith.addf %451, %452 : vector<8x32xf32>
    %454 = math.tanh %453 : vector<8x32xf32>
    %455 = arith.mulf %450, %454 : vector<8x32xf32>
    %c6_142 = arith.constant 6 : index
    %c0_143 = arith.constant 0 : index
    %c0_144 = arith.constant 0 : index
    %456 = vector.load %arg17[%c6_142, %c0_143, %c0_144] : memref<10x8x32xf32, #tpu.memory_space<vmem>>, vector<1x8x32xf32>
    %457 = vector.shape_cast %456 : vector<1x8x32xf32> to vector<8x32xf32>
    %458 = arith.addf %457, %429 : vector<8x32xf32>
    %c6_145 = arith.constant 6 : index
    %c0_146 = arith.constant 0 : index
    %c0_147 = arith.constant 0 : index
    %459 = vector.load %arg17[%c6_145, %c0_146, %c0_147] : memref<10x8x32xf32, #tpu.memory_space<vmem>>, vector<1x8x32xf32>
    %460 = vector.shape_cast %459 : vector<1x8x32xf32> to vector<8x32xf32>
    %461 = vector.shape_cast %458 : vector<8x32xf32> to vector<1x8x32xf32>
    tpu.vector_store %arg17[%c6_145, %c0_146, %c0_147], %461 {strides = array<i32>} : memref<10x8x32xf32, #tpu.memory_space<vmem>>, vector<1x8x32xf32>,
    %c3_148 = arith.constant 3 : index
    %c0_149 = arith.constant 0 : index
    %c0_150 = arith.constant 0 : index
    %462 = vector.load %arg17[%c3_148, %c0_149, %c0_150] : memref<10x8x32xf32, #tpu.memory_space<vmem>>, vector<1x8x32xf32>
    %463 = vector.shape_cast %462 : vector<1x8x32xf32> to vector<8x32xf32>
    %464 = arith.addf %463, %455 : vector<8x32xf32>
    %c3_151 = arith.constant 3 : index
    %c0_152 = arith.constant 0 : index
    %c0_153 = arith.constant 0 : index
    %465 = vector.load %arg17[%c3_151, %c0_152, %c0_153] : memref<10x8x32xf32, #tpu.memory_space<vmem>>, vector<1x8x32xf32>
    %466 = vector.shape_cast %465 : vector<1x8x32xf32> to vector<8x32xf32>
    %467 = vector.shape_cast %464 : vector<8x32xf32> to vector<1x8x32xf32>
    tpu.vector_store %arg17[%c3_151, %c0_152, %c0_153], %467 {strides = array<i32>} : memref<10x8x32xf32, #tpu.memory_space<vmem>>, vector<1x8x32xf32>,
    %c48_154 = arith.constant 48 : index
    %c0_155 = arith.constant 0 : index
    %468 = vector.load %arg16[%c48_154, %c0_155] : memref<64x256xf32, #tpu.memory_space<vmem>>, vector<8x256xf32>
    %c8_156 = arith.constant 8 : index
    %c0_157 = arith.constant 0 : index
    %469 = vector.load %arg16[%c8_156, %c0_157] : memref<64x256xf32, #tpu.memory_space<vmem>>, vector<8x256xf32>
    %470 = vector.extract_strided_slice %468 {offsets = [0, 0], sizes = [8, 128], strides = [1, 1]} : vector<8x256xf32> to vector<8x128xf32>
    %471 = vector.extract_strided_slice %469 {offsets = [0, 128], sizes = [8, 128], strides = [1, 1]} : vector<8x256xf32> to vector<8x128xf32>
    %472 = tpu.concatenate %470, %471 in 1 : vector<8x128xf32>, vector<8x128xf32> -> vector<8x256xf32>
    %473 = tpu.concatenate %429, %455 in 1 : vector<8x32xf32>, vector<8x32xf32> -> vector<8x64xf32>
    %474 = arith.truncf %473 : vector<8x64xf32> to vector<8x64xbf16>
    %cst_158 = arith.constant dense<0.000000e+00> : vector<8x256xf32>
    %475 = tpu.matmul %474, %25, %cst_158 {dimension_numbers = #tpu.dot_dimension_numbers<[1], [0], [0], [1], [0, 0, 1, 1], [], []>} : vector<8x64xbf16>, vector<64x256xbf16>, vector<8x256xf32> -> vector<8x256xf32>
    %476 = arith.addf %472, %475 : vector<8x256xf32>
    %477 = vector.extract_strided_slice %476 {offsets = [0, 0], sizes = [8, 128], strides = [1, 1]} : vector<8x256xf32> to vector<8x128xf32>
    %478 = vector.extract_strided_slice %477 {offsets = [0, 0], sizes = [8, 32], strides = [1, 1]} : vector<8x128xf32> to vector<8x32xf32>
    %479 = arith.negf %478 : vector<8x32xf32>
    %480 = math.exp %479 : vector<8x32xf32>
    %cst_159 = arith.constant 1.000000e+00 : f32
    %481 = vector.broadcast %cst_159 : f32 to vector<8x32xf32>
    %482 = arith.addf %481, %480 : vector<8x32xf32>
    %483 = arith.divf %481, %482 : vector<8x32xf32>
    %484 = vector.extract_strided_slice %477 {offsets = [0, 32], sizes = [8, 32], strides = [1, 1]} : vector<8x128xf32> to vector<8x32xf32>
    %485 = arith.negf %484 : vector<8x32xf32>
    %486 = math.exp %485 : vector<8x32xf32>
    %cst_160 = arith.constant 1.000000e+00 : f32
    %487 = vector.broadcast %cst_160 : f32 to vector<8x32xf32>
    %488 = arith.addf %487, %486 : vector<8x32xf32>
    %489 = arith.divf %487, %488 : vector<8x32xf32>
    %490 = vector.extract_strided_slice %477 {offsets = [0, 64], sizes = [8, 32], strides = [1, 1]} : vector<8x128xf32> to vector<8x32xf32>
    %491 = math.tanh %490 : vector<8x32xf32>
    %492 = vector.extract_strided_slice %477 {offsets = [0, 96], sizes = [8, 32], strides = [1, 1]} : vector<8x128xf32> to vector<8x32xf32>
    %493 = arith.negf %492 : vector<8x32xf32>
    %494 = math.exp %493 : vector<8x32xf32>
    %cst_161 = arith.constant 1.000000e+00 : f32
    %495 = vector.broadcast %cst_161 : f32 to vector<8x32xf32>
    %496 = arith.addf %495, %494 : vector<8x32xf32>
    %497 = arith.divf %495, %496 : vector<8x32xf32>
    %498 = arith.mulf %489, %427 : vector<8x32xf32>
    %499 = arith.mulf %483, %491 : vector<8x32xf32>
    %500 = arith.addf %498, %499 : vector<8x32xf32>
    %501 = math.tanh %500 : vector<8x32xf32>
    %502 = arith.mulf %497, %501 : vector<8x32xf32>
    %503 = vector.extract_strided_slice %476 {offsets = [0, 128], sizes = [8, 128], strides = [1, 1]} : vector<8x256xf32> to vector<8x128xf32>
    %504 = vector.extract_strided_slice %503 {offsets = [0, 0], sizes = [8, 32], strides = [1, 1]} : vector<8x128xf32> to vector<8x32xf32>
    %505 = arith.negf %504 : vector<8x32xf32>
    %506 = math.exp %505 : vector<8x32xf32>
    %cst_162 = arith.constant 1.000000e+00 : f32
    %507 = vector.broadcast %cst_162 : f32 to vector<8x32xf32>
    %508 = arith.addf %507, %506 : vector<8x32xf32>
    %509 = arith.divf %507, %508 : vector<8x32xf32>
    %510 = vector.extract_strided_slice %503 {offsets = [0, 32], sizes = [8, 32], strides = [1, 1]} : vector<8x128xf32> to vector<8x32xf32>
    %511 = arith.negf %510 : vector<8x32xf32>
    %512 = math.exp %511 : vector<8x32xf32>
    %cst_163 = arith.constant 1.000000e+00 : f32
    %513 = vector.broadcast %cst_163 : f32 to vector<8x32xf32>
    %514 = arith.addf %513, %512 : vector<8x32xf32>
    %515 = arith.divf %513, %514 : vector<8x32xf32>
    %516 = vector.extract_strided_slice %503 {offsets = [0, 64], sizes = [8, 32], strides = [1, 1]} : vector<8x128xf32> to vector<8x32xf32>
    %517 = math.tanh %516 : vector<8x32xf32>
    %518 = vector.extract_strided_slice %503 {offsets = [0, 96], sizes = [8, 32], strides = [1, 1]} : vector<8x128xf32> to vector<8x32xf32>
    %519 = arith.negf %518 : vector<8x32xf32>
    %520 = math.exp %519 : vector<8x32xf32>
    %cst_164 = arith.constant 1.000000e+00 : f32
    %521 = vector.broadcast %cst_164 : f32 to vector<8x32xf32>
    %522 = arith.addf %521, %520 : vector<8x32xf32>
    %523 = arith.divf %521, %522 : vector<8x32xf32>
    %524 = arith.mulf %515, %453 : vector<8x32xf32>
    %525 = arith.mulf %509, %517 : vector<8x32xf32>
    %526 = arith.addf %524, %525 : vector<8x32xf32>
    %527 = math.tanh %526 : vector<8x32xf32>
    %528 = arith.mulf %523, %527 : vector<8x32xf32>
    %c7_165 = arith.constant 7 : index
    %c0_166 = arith.constant 0 : index
    %c0_167 = arith.constant 0 : index
    %529 = vector.load %arg17[%c7_165, %c0_166, %c0_167] : memref<10x8x32xf32, #tpu.memory_space<vmem>>, vector<1x8x32xf32>
    %530 = vector.shape_cast %529 : vector<1x8x32xf32> to vector<8x32xf32>
    %531 = arith.addf %530, %502 : vector<8x32xf32>
    %c7_168 = arith.constant 7 : index
    %c0_169 = arith.constant 0 : index
    %c0_170 = arith.constant 0 : index
    %532 = vector.load %arg17[%c7_168, %c0_169, %c0_170] : memref<10x8x32xf32, #tpu.memory_space<vmem>>, vector<1x8x32xf32>
    %533 = vector.shape_cast %532 : vector<1x8x32xf32> to vector<8x32xf32>
    %534 = vector.shape_cast %531 : vector<8x32xf32> to vector<1x8x32xf32>
    tpu.vector_store %arg17[%c7_168, %c0_169, %c0_170], %534 {strides = array<i32>} : memref<10x8x32xf32, #tpu.memory_space<vmem>>, vector<1x8x32xf32>,
    %c2_171 = arith.constant 2 : index
    %c0_172 = arith.constant 0 : index
    %c0_173 = arith.constant 0 : index
    %535 = vector.load %arg17[%c2_171, %c0_172, %c0_173] : memref<10x8x32xf32, #tpu.memory_space<vmem>>, vector<1x8x32xf32>
    %536 = vector.shape_cast %535 : vector<1x8x32xf32> to vector<8x32xf32>
    %537 = arith.addf %536, %528 : vector<8x32xf32>
    %c2_174 = arith.constant 2 : index
    %c0_175 = arith.constant 0 : index
    %c0_176 = arith.constant 0 : index
    %538 = vector.load %arg17[%c2_174, %c0_175, %c0_176] : memref<10x8x32xf32, #tpu.memory_space<vmem>>, vector<1x8x32xf32>
    %539 = vector.shape_cast %538 : vector<1x8x32xf32> to vector<8x32xf32>
    %540 = vector.shape_cast %537 : vector<8x32xf32> to vector<1x8x32xf32>
    tpu.vector_store %arg17[%c2_174, %c0_175, %c0_176], %540 {strides = array<i32>} : memref<10x8x32xf32, #tpu.memory_space<vmem>>, vector<1x8x32xf32>,
    %c56_177 = arith.constant 56 : index
    %c0_178 = arith.constant 0 : index
    %541 = vector.load %arg16[%c56_177, %c0_178] : memref<64x256xf32, #tpu.memory_space<vmem>>, vector<8x256xf32>
    %c0_179 = arith.constant 0 : index
    %c0_180 = arith.constant 0 : index
    %542 = vector.load %arg16[%c0_179, %c0_180] : memref<64x256xf32, #tpu.memory_space<vmem>>, vector<8x256xf32>
    %543 = vector.extract_strided_slice %541 {offsets = [0, 0], sizes = [8, 128], strides = [1, 1]} : vector<8x256xf32> to vector<8x128xf32>
    %544 = vector.extract_strided_slice %542 {offsets = [0, 128], sizes = [8, 128], strides = [1, 1]} : vector<8x256xf32> to vector<8x128xf32>
    %545 = tpu.concatenate %543, %544 in 1 : vector<8x128xf32>, vector<8x128xf32> -> vector<8x256xf32>
    %546 = tpu.concatenate %502, %528 in 1 : vector<8x32xf32>, vector<8x32xf32> -> vector<8x64xf32>
    %547 = arith.truncf %546 : vector<8x64xf32> to vector<8x64xbf16>
    %cst_181 = arith.constant dense<0.000000e+00> : vector<8x256xf32>
    %548 = tpu.matmul %547, %25, %cst_181 {dimension_numbers = #tpu.dot_dimension_numbers<[1], [0], [0], [1], [0, 0, 1, 1], [], []>} : vector<8x64xbf16>, vector<64x256xbf16>, vector<8x256xf32> -> vector<8x256xf32>
    %549 = arith.addf %545, %548 : vector<8x256xf32>
    %550 = vector.extract_strided_slice %549 {offsets = [0, 0], sizes = [8, 128], strides = [1, 1]} : vector<8x256xf32> to vector<8x128xf32>
    %551 = vector.extract_strided_slice %550 {offsets = [0, 0], sizes = [8, 32], strides = [1, 1]} : vector<8x128xf32> to vector<8x32xf32>
    %552 = arith.negf %551 : vector<8x32xf32>
    %553 = math.exp %552 : vector<8x32xf32>
    %cst_182 = arith.constant 1.000000e+00 : f32
    %554 = vector.broadcast %cst_182 : f32 to vector<8x32xf32>
    %555 = arith.addf %554, %553 : vector<8x32xf32>
    %556 = arith.divf %554, %555 : vector<8x32xf32>
    %557 = vector.extract_strided_slice %550 {offsets = [0, 32], sizes = [8, 32], strides = [1, 1]} : vector<8x128xf32> to vector<8x32xf32>
    %558 = arith.negf %557 : vector<8x32xf32>
    %559 = math.exp %558 : vector<8x32xf32>
    %cst_183 = arith.constant 1.000000e+00 : f32
    %560 = vector.broadcast %cst_183 : f32 to vector<8x32xf32>
    %561 = arith.addf %560, %559 : vector<8x32xf32>
    %562 = arith.divf %560, %561 : vector<8x32xf32>
    %563 = vector.extract_strided_slice %550 {offsets = [0, 64], sizes = [8, 32], strides = [1, 1]} : vector<8x128xf32> to vector<8x32xf32>
    %564 = math.tanh %563 : vector<8x32xf32>
    %565 = vector.extract_strided_slice %550 {offsets = [0, 96], sizes = [8, 32], strides = [1, 1]} : vector<8x128xf32> to vector<8x32xf32>
    %566 = arith.negf %565 : vector<8x32xf32>
    %567 = math.exp %566 : vector<8x32xf32>
    %cst_184 = arith.constant 1.000000e+00 : f32
    %568 = vector.broadcast %cst_184 : f32 to vector<8x32xf32>
    %569 = arith.addf %568, %567 : vector<8x32xf32>
    %570 = arith.divf %568, %569 : vector<8x32xf32>
    %571 = arith.mulf %562, %500 : vector<8x32xf32>
    %572 = arith.mulf %556, %564 : vector<8x32xf32>
    %573 = arith.addf %571, %572 : vector<8x32xf32>
    %574 = math.tanh %573 : vector<8x32xf32>
    %575 = arith.mulf %570, %574 : vector<8x32xf32>
    %576 = vector.extract_strided_slice %549 {offsets = [0, 128], sizes = [8, 128], strides = [1, 1]} : vector<8x256xf32> to vector<8x128xf32>
    %577 = vector.extract_strided_slice %576 {offsets = [0, 0], sizes = [8, 32], strides = [1, 1]} : vector<8x128xf32> to vector<8x32xf32>
    %578 = arith.negf %577 : vector<8x32xf32>
    %579 = math.exp %578 : vector<8x32xf32>
    %cst_185 = arith.constant 1.000000e+00 : f32
    %580 = vector.broadcast %cst_185 : f32 to vector<8x32xf32>
    %581 = arith.addf %580, %579 : vector<8x32xf32>
    %582 = arith.divf %580, %581 : vector<8x32xf32>
    %583 = vector.extract_strided_slice %576 {offsets = [0, 32], sizes = [8, 32], strides = [1, 1]} : vector<8x128xf32> to vector<8x32xf32>
    %584 = arith.negf %583 : vector<8x32xf32>
    %585 = math.exp %584 : vector<8x32xf32>
    %cst_186 = arith.constant 1.000000e+00 : f32
    %586 = vector.broadcast %cst_186 : f32 to vector<8x32xf32>
    %587 = arith.addf %586, %585 : vector<8x32xf32>
    %588 = arith.divf %586, %587 : vector<8x32xf32>
    %589 = vector.extract_strided_slice %576 {offsets = [0, 64], sizes = [8, 32], strides = [1, 1]} : vector<8x128xf32> to vector<8x32xf32>
    %590 = math.tanh %589 : vector<8x32xf32>
    %591 = vector.extract_strided_slice %576 {offsets = [0, 96], sizes = [8, 32], strides = [1, 1]} : vector<8x128xf32> to vector<8x32xf32>
    %592 = arith.negf %591 : vector<8x32xf32>
    %593 = math.exp %592 : vector<8x32xf32>
    %cst_187 = arith.constant 1.000000e+00 : f32
    %594 = vector.broadcast %cst_187 : f32 to vector<8x32xf32>
    %595 = arith.addf %594, %593 : vector<8x32xf32>
    %596 = arith.divf %594, %595 : vector<8x32xf32>
    %597 = arith.mulf %588, %526 : vector<8x32xf32>
    %598 = arith.mulf %582, %590 : vector<8x32xf32>
    %599 = arith.addf %597, %598 : vector<8x32xf32>
    %600 = math.tanh %599 : vector<8x32xf32>
    %601 = arith.mulf %596, %600 : vector<8x32xf32>
    %c8_188 = arith.constant 8 : index
    %c0_189 = arith.constant 0 : index
    %c0_190 = arith.constant 0 : index
    %602 = vector.load %arg17[%c8_188, %c0_189, %c0_190] : memref<10x8x32xf32, #tpu.memory_space<vmem>>, vector<1x8x32xf32>
    %603 = vector.shape_cast %602 : vector<1x8x32xf32> to vector<8x32xf32>
    %604 = arith.addf %603, %575 : vector<8x32xf32>
    %c8_191 = arith.constant 8 : index
    %c0_192 = arith.constant 0 : index
    %c0_193 = arith.constant 0 : index
    %605 = vector.load %arg17[%c8_191, %c0_192, %c0_193] : memref<10x8x32xf32, #tpu.memory_space<vmem>>, vector<1x8x32xf32>
    %606 = vector.shape_cast %605 : vector<1x8x32xf32> to vector<8x32xf32>
    %607 = vector.shape_cast %604 : vector<8x32xf32> to vector<1x8x32xf32>
    tpu.vector_store %arg17[%c8_191, %c0_192, %c0_193], %607 {strides = array<i32>} : memref<10x8x32xf32, #tpu.memory_space<vmem>>, vector<1x8x32xf32>,
    %c1_194 = arith.constant 1 : index
    %c0_195 = arith.constant 0 : index
    %c0_196 = arith.constant 0 : index
    %608 = vector.load %arg17[%c1_194, %c0_195, %c0_196] : memref<10x8x32xf32, #tpu.memory_space<vmem>>, vector<1x8x32xf32>
    %609 = vector.shape_cast %608 : vector<1x8x32xf32> to vector<8x32xf32>
    %610 = arith.addf %609, %601 : vector<8x32xf32>
    %c1_197 = arith.constant 1 : index
    %c0_198 = arith.constant 0 : index
    %c0_199 = arith.constant 0 : index
    %611 = vector.load %arg17[%c1_197, %c0_198, %c0_199] : memref<10x8x32xf32, #tpu.memory_space<vmem>>, vector<1x8x32xf32>
    %612 = vector.shape_cast %611 : vector<1x8x32xf32> to vector<8x32xf32>
    %613 = vector.shape_cast %610 : vector<8x32xf32> to vector<1x8x32xf32>
    tpu.vector_store %arg17[%c1_197, %c0_198, %c0_199], %613 {strides = array<i32>} : memref<10x8x32xf32, #tpu.memory_space<vmem>>, vector<1x8x32xf32>,
    %cst_200 = arith.constant 0.000000e+00 : f32
    %614 = vector.broadcast %cst_200 : f32 to vector<64x256xf32>
    %c0_201 = arith.constant 0 : index
    %c0_202 = arith.constant 0 : index
    %c0_203 = arith.constant 0 : index
    %615 = vector.load %arg17[%c0_201, %c0_202, %c0_203] : memref<10x8x32xf32, #tpu.memory_space<vmem>>, vector<8x8x32xf32>
    %616 = vector.shape_cast %615 : vector<8x8x32xf32> to vector<64x32xf32>
    %617 = arith.truncf %616 : vector<64x32xf32> to vector<64x32xbf16>
    %c0_204 = arith.constant 0 : index
    %c0_205 = arith.constant 0 : index
    %c0_206 = arith.constant 0 : index
    %618 = vector.load %arg7[%c0_204, %c0_205, %c0_206] : memref<3x32x256xbf16, #tpu.memory_space<vmem>>, vector<1x32x256xbf16>
    %619 = vector.shape_cast %618 : vector<1x32x256xbf16> to vector<32x256xbf16>
    %cst_207 = arith.constant dense<0.000000e+00> : vector<64x256xf32>
    %620 = tpu.matmul %617, %619, %cst_207 {dimension_numbers = #tpu.dot_dimension_numbers<[1], [0], [0], [1], [0, 0, 1, 1], [], []>} : vector<64x32xbf16>, vector<32x256xbf16>, vector<64x256xf32> -> vector<64x256xf32>
    %621 = arith.addf %614, %620 : vector<64x256xf32>
    %c1_208 = arith.constant 1 : index
    %c0_209 = arith.constant 0 : index
    %c0_210 = arith.constant 0 : index
    %622 = vector.load %arg17[%c1_208, %c0_209, %c0_210] : memref<10x8x32xf32, #tpu.memory_space<vmem>>, vector<8x8x32xf32>
    %623 = vector.shape_cast %622 : vector<8x8x32xf32> to vector<64x32xf32>
    %624 = arith.truncf %623 : vector<64x32xf32> to vector<64x32xbf16>
    %c1_211 = arith.constant 1 : index
    %c0_212 = arith.constant 0 : index
    %c0_213 = arith.constant 0 : index
    %625 = vector.load %arg7[%c1_211, %c0_212, %c0_213] : memref<3x32x256xbf16, #tpu.memory_space<vmem>>, vector<1x32x256xbf16>
    %626 = vector.shape_cast %625 : vector<1x32x256xbf16> to vector<32x256xbf16>
    %cst_214 = arith.constant dense<0.000000e+00> : vector<64x256xf32>
    %627 = tpu.matmul %624, %626, %cst_214 {dimension_numbers = #tpu.dot_dimension_numbers<[1], [0], [0], [1], [0, 0, 1, 1], [], []>} : vector<64x32xbf16>, vector<32x256xbf16>, vector<64x256xf32> -> vector<64x256xf32>
    %628 = arith.addf %621, %627 : vector<64x256xf32>
    %c2_215 = arith.constant 2 : index
    %c0_216 = arith.constant 0 : index
    %c0_217 = arith.constant 0 : index
    %629 = vector.load %arg17[%c2_215, %c0_216, %c0_217] : memref<10x8x32xf32, #tpu.memory_space<vmem>>, vector<8x8x32xf32>
    %630 = vector.shape_cast %629 : vector<8x8x32xf32> to vector<64x32xf32>
    %631 = arith.truncf %630 : vector<64x32xf32> to vector<64x32xbf16>
    %c2_218 = arith.constant 2 : index
    %c0_219 = arith.constant 0 : index
    %c0_220 = arith.constant 0 : index
    %632 = vector.load %arg7[%c2_218, %c0_219, %c0_220] : memref<3x32x256xbf16, #tpu.memory_space<vmem>>, vector<1x32x256xbf16>
    %633 = vector.shape_cast %632 : vector<1x32x256xbf16> to vector<32x256xbf16>
    %cst_221 = arith.constant dense<0.000000e+00> : vector<64x256xf32>
    %634 = tpu.matmul %631, %633, %cst_221 {dimension_numbers = #tpu.dot_dimension_numbers<[1], [0], [0], [1], [0, 0, 1, 1], [], []>} : vector<64x32xbf16>, vector<32x256xbf16>, vector<64x256xf32> -> vector<64x256xf32>
    %635 = arith.addf %628, %634 : vector<64x256xf32>
    %c0_222 = arith.constant 0 : index
    %c0_223 = arith.constant 0 : index
    %636 = vector.load %arg8[%c0_222, %c0_223] : memref<1x256xf32, #tpu.memory_space<vmem>>, vector<1x256xf32>
    %637 = vector.broadcast %636 : vector<1x256xf32> to vector<64x256xf32>
    %638 = arith.addf %635, %637 : vector<64x256xf32>
    %cst_224 = arith.constant 0.000000e+00 : f32
    %639 = vector.broadcast %cst_224 : f32 to vector<64x256xf32>
    %640 = arith.maximumf %638, %639 : vector<64x256xf32>
    %641 = vector.shape_cast %640 : vector<64x256xf32> to vector<8x8x256xf32>
    %c1_225 = arith.constant 1 : index
    %c0_226 = arith.constant 0 : index
    %c0_227 = arith.constant 0 : index
    %642 = vector.load %arg18[%c1_225, %c0_226, %c0_227] : memref<10x8x256xf32, #tpu.memory_space<vmem>>, vector<8x8x256xf32>
    tpu.vector_store %arg18[%c1_225, %c0_226, %c0_227], %641 {strides = array<i32>} : memref<10x8x256xf32, #tpu.memory_space<vmem>>, vector<8x8x256xf32>,
    %cst_228 = arith.constant 0.000000e+00 : f32
    %643 = vector.broadcast %cst_228 : f32 to vector<64x256xf32>
    %c0_229 = arith.constant 0 : index
    %c0_230 = arith.constant 0 : index
    %c0_231 = arith.constant 0 : index
    %644 = vector.load %arg18[%c0_229, %c0_230, %c0_231] : memref<10x8x256xf32, #tpu.memory_space<vmem>>, vector<8x8x256xf32>
    %645 = vector.shape_cast %644 : vector<8x8x256xf32> to vector<64x256xf32>
    %646 = arith.truncf %645 : vector<64x256xf32> to vector<64x256xbf16>
    %c0_232 = arith.constant 0 : index
    %c0_233 = arith.constant 0 : index
    %c0_234 = arith.constant 0 : index
    %647 = vector.load %arg9[%c0_232, %c0_233, %c0_234] : memref<3x256x256xbf16, #tpu.memory_space<vmem>>, vector<1x256x256xbf16>
    %648 = vector.shape_cast %647 : vector<1x256x256xbf16> to vector<256x256xbf16>
    %cst_235 = arith.constant dense<0.000000e+00> : vector<64x256xf32>
    %649 = tpu.matmul %646, %648, %cst_235 {dimension_numbers = #tpu.dot_dimension_numbers<[1], [0], [0], [1], [0, 0, 1, 1], [], []>} : vector<64x256xbf16>, vector<256x256xbf16>, vector<64x256xf32> -> vector<64x256xf32>
    %650 = arith.addf %643, %649 : vector<64x256xf32>
    %c1_236 = arith.constant 1 : index
    %c0_237 = arith.constant 0 : index
    %c0_238 = arith.constant 0 : index
    %651 = vector.load %arg18[%c1_236, %c0_237, %c0_238] : memref<10x8x256xf32, #tpu.memory_space<vmem>>, vector<8x8x256xf32>
    %652 = vector.shape_cast %651 : vector<8x8x256xf32> to vector<64x256xf32>
    %653 = arith.truncf %652 : vector<64x256xf32> to vector<64x256xbf16>
    %c1_239 = arith.constant 1 : index
    %c0_240 = arith.constant 0 : index
    %c0_241 = arith.constant 0 : index
    %654 = vector.load %arg9[%c1_239, %c0_240, %c0_241] : memref<3x256x256xbf16, #tpu.memory_space<vmem>>, vector<1x256x256xbf16>
    %655 = vector.shape_cast %654 : vector<1x256x256xbf16> to vector<256x256xbf16>
    %cst_242 = arith.constant dense<0.000000e+00> : vector<64x256xf32>
    %656 = tpu.matmul %653, %655, %cst_242 {dimension_numbers = #tpu.dot_dimension_numbers<[1], [0], [0], [1], [0, 0, 1, 1], [], []>} : vector<64x256xbf16>, vector<256x256xbf16>, vector<64x256xf32> -> vector<64x256xf32>
    %657 = arith.addf %650, %656 : vector<64x256xf32>
    %c2_243 = arith.constant 2 : index
    %c0_244 = arith.constant 0 : index
    %c0_245 = arith.constant 0 : index
    %658 = vector.load %arg18[%c2_243, %c0_244, %c0_245] : memref<10x8x256xf32, #tpu.memory_space<vmem>>, vector<8x8x256xf32>
    %659 = vector.shape_cast %658 : vector<8x8x256xf32> to vector<64x256xf32>
    %660 = arith.truncf %659 : vector<64x256xf32> to vector<64x256xbf16>
    %c2_246 = arith.constant 2 : index
    %c0_247 = arith.constant 0 : index
    %c0_248 = arith.constant 0 : index
    %661 = vector.load %arg9[%c2_246, %c0_247, %c0_248] : memref<3x256x256xbf16, #tpu.memory_space<vmem>>, vector<1x256x256xbf16>
    %662 = vector.shape_cast %661 : vector<1x256x256xbf16> to vector<256x256xbf16>
    %cst_249 = arith.constant dense<0.000000e+00> : vector<64x256xf32>
    %663 = tpu.matmul %660, %662, %cst_249 {dimension_numbers = #tpu.dot_dimension_numbers<[1], [0], [0], [1], [0, 0, 1, 1], [], []>} : vector<64x256xbf16>, vector<256x256xbf16>, vector<64x256xf32> -> vector<64x256xf32>
    %664 = arith.addf %657, %663 : vector<64x256xf32>
    %c1_250 = arith.constant 1 : index
    %c0_251 = arith.constant 0 : index
    %c0_252 = arith.constant 0 : index
    %665 = vector.load %arg17[%c1_250, %c0_251, %c0_252] : memref<10x8x32xf32, #tpu.memory_space<vmem>>, vector<8x8x32xf32>
    %666 = vector.shape_cast %665 : vector<8x8x32xf32> to vector<64x32xf32>
    %667 = arith.truncf %666 : vector<64x32xf32> to vector<64x32xbf16>
    %c0_253 = arith.constant 0 : index
    %c0_254 = arith.constant 0 : index
    %668 = vector.load %arg11[%c0_253, %c0_254] : memref<32x256xbf16, #tpu.memory_space<vmem>>, vector<32x256xbf16>
    %cst_255 = arith.constant dense<0.000000e+00> : vector<64x256xf32>
    %669 = tpu.matmul %667, %668, %cst_255 {dimension_numbers = #tpu.dot_dimension_numbers<[1], [0], [0], [1], [0, 0, 1, 1], [], []>} : vector<64x32xbf16>, vector<32x256xbf16>, vector<64x256xf32> -> vector<64x256xf32>
    %c0_256 = arith.constant 0 : index
    %c0_257 = arith.constant 0 : index
    %670 = vector.load %arg12[%c0_256, %c0_257] : memref<1x256xf32, #tpu.memory_space<vmem>>, vector<1x256xf32>
    %671 = vector.broadcast %670 : vector<1x256xf32> to vector<64x256xf32>
    %672 = arith.addf %669, %671 : vector<64x256xf32>
    %c0_258 = arith.constant 0 : index
    %c0_259 = arith.constant 0 : index
    %673 = vector.load %arg10[%c0_258, %c0_259] : memref<1x256xf32, #tpu.memory_space<vmem>>, vector<1x256xf32>
    %674 = vector.broadcast %673 : vector<1x256xf32> to vector<64x256xf32>
    %675 = arith.addf %664, %674 : vector<64x256xf32>
    %676 = arith.addf %675, %672 : vector<64x256xf32>
    %cst_260 = arith.constant 0.000000e+00 : f32
    %677 = vector.broadcast %cst_260 : f32 to vector<64x256xf32>
    %678 = arith.maximumf %676, %677 : vector<64x256xf32>
    %679 = arith.truncf %678 : vector<64x256xf32> to vector<64x256xbf16>
    %c0_261 = arith.constant 0 : index
    %c0_262 = arith.constant 0 : index
    %680 = vector.load %arg13[%c0_261, %c0_262] : memref<256x128xbf16, #tpu.memory_space<vmem>>, vector<256x128xbf16>
    %cst_263 = arith.constant dense<0.000000e+00> : vector<64x128xf32>
    %681 = tpu.matmul %679, %680, %cst_263 {dimension_numbers = #tpu.dot_dimension_numbers<[1], [0], [0], [1], [0, 0, 1, 1], [], []>} : vector<64x256xbf16>, vector<256x128xbf16>, vector<64x128xf32> -> vector<64x128xf32>
    %682 = vector.shape_cast %681 : vector<64x128xf32> to vector<8x8x128xf32>
    %cst_264 = arith.constant dense<0.000000e+00> : vector<8x128xf32>
    %683 = vector.multi_reduction <add>, %682, %cst_264 [0] : vector<8x8x128xf32> to vector<8x128xf32>
    %c0_265 = arith.constant 0 : index
    %c0_266 = arith.constant 0 : index
    %684 = vector.load %arg14[%c0_265, %c0_266] : memref<1x128xf32, #tpu.memory_space<vmem>>, vector<1x128xf32>
    %685 = vector.broadcast %684 : vector<1x128xf32> to vector<8x128xf32>
    %686 = arith.addf %683, %685 : vector<8x128xf32>
    %687 = tpu.iota {dimensions = array<i32: 0>} : vector<8x128xi32>
    %c2_i32 = arith.constant 2 : i32
    %688 = vector.broadcast %c2_i32 : i32 to vector<8x128xi32>
    %689 = arith.cmpi slt, %687, %688 : vector<8x128xi32>
    %cst_267 = arith.constant 0.000000e+00 : f32
    %690 = vector.broadcast %cst_267 : f32 to vector<8x128xf32>
    %691 = arith.select %689, %686, %690 : vector<8x128xi1>, vector<8x128xf32>
    %692 = arith.mulf %691, %691 : vector<8x128xf32>
    %693 = vector.shape_cast %692 : vector<8x128xf32> to vector<1x8x128xf32>
    %cst_268 = arith.constant dense<0.000000e+00> : vector<1xf32>
    %694 = vector.multi_reduction <add>, %693, %cst_268 [1, 2] : vector<1x8x128xf32> to vector<1xf32>
    %695 = vector.shape_cast %694 : vector<1xf32> to vector<1x1x1xf32>
    %696 = vector.extract %695[0, 0, 0] : f32 from vector<1x1x1xf32>
    %cst_269 = arith.constant 9.99999996E-13 : f32
    %697 = arith.addf %696, %cst_269 : f32
    %698 = math.rsqrt %697 : f32
    %699 = vector.broadcast %698 : f32 to vector<8x128xf32>
    %700 = arith.mulf %691, %699 : vector<8x128xf32>
    %c0_270 = arith.constant 0 : index
    %c0_271 = arith.constant 0 : index
    %701 = vector.load %arg15[%c0_270, %c0_271] : memref<8x128xf32, #tpu.memory_space<vmem>>, vector<8x128xf32>
    tpu.vector_store %arg15[%c0_270, %c0_271], %700 {strides = array<i32>} : memref<8x128xf32, #tpu.memory_space<vmem>>, vector<8x128xf32>,
    return
  }
  func.func @transform_0(%arg0: i32) -> (i32, i32) {
    %c0_i32 = arith.constant 0 : i32
    %c0_i32_0 = arith.constant 0 : i32
    %c0_i32_1 = arith.constant 0 : i32
    return %c0_i32, %c0_i32_0 : i32, i32
  }
  func.func @transform_1(%arg0: i32) -> (i32, i32) {
    %c0_i32 = arith.constant 0 : i32
    %c0_i32_0 = arith.constant 0 : i32
    %c0_i32_1 = arith.constant 0 : i32
    return %c0_i32, %c0_i32_0 : i32, i32
  }
  func.func @transform_2(%arg0: i32) -> (i32, i32) {
    %c0_i32 = arith.constant 0 : i32
    %c0_i32_0 = arith.constant 0 : i32
    %c0_i32_1 = arith.constant 0 : i32
    return %c0_i32, %c0_i32_0 : i32, i32
  }
  func.func @transform_3(%arg0: i32) -> (i32, i32) {
    %c0_i32 = arith.constant 0 : i32
    %c0_i32_0 = arith.constant 0 : i32
    %c0_i32_1 = arith.constant 0 : i32
    return %c0_i32, %c0_i32_0 : i32, i32
  }
  func.func @transform_4(%arg0: i32) -> (i32, i32) {
    %c0_i32 = arith.constant 0 : i32
    %c0_i32_0 = arith.constant 0 : i32
    %c0_i32_1 = arith.constant 0 : i32
    return %c0_i32, %c0_i32_0 : i32, i32
  }
  func.func @transform_5(%arg0: i32) -> (i32, i32) {
    %c0_i32 = arith.constant 0 : i32
    %c0_i32_0 = arith.constant 0 : i32
    %c0_i32_1 = arith.constant 0 : i32
    return %c0_i32, %c0_i32_0 : i32, i32
  }
  func.func @transform_6(%arg0: i32) -> (i32, i32, i32) {
    %c0_i32 = arith.constant 0 : i32
    %c0_i32_0 = arith.constant 0 : i32
    %c0_i32_1 = arith.constant 0 : i32
    %c0_i32_2 = arith.constant 0 : i32
    return %c0_i32, %c0_i32_0, %c0_i32_1 : i32, i32, i32
  }
  func.func @transform_7(%arg0: i32) -> (i32, i32) {
    %c0_i32 = arith.constant 0 : i32
    %c0_i32_0 = arith.constant 0 : i32
    %c0_i32_1 = arith.constant 0 : i32
    return %c0_i32, %c0_i32_0 : i32, i32
  }
  func.func @transform_8(%arg0: i32) -> (i32, i32, i32) {
    %c0_i32 = arith.constant 0 : i32
    %c0_i32_0 = arith.constant 0 : i32
    %c0_i32_1 = arith.constant 0 : i32
    %c0_i32_2 = arith.constant 0 : i32
    return %c0_i32, %c0_i32_0, %c0_i32_1 : i32, i32, i32
  }
  func.func @transform_9(%arg0: i32) -> (i32, i32) {
    %c0_i32 = arith.constant 0 : i32
    %c0_i32_0 = arith.constant 0 : i32
    %c0_i32_1 = arith.constant 0 : i32
    return %c0_i32, %c0_i32_0 : i32, i32
  }
  func.func @transform_10(%arg0: i32) -> (i32, i32) {
    %c0_i32 = arith.constant 0 : i32
    %c0_i32_0 = arith.constant 0 : i32
    %c0_i32_1 = arith.constant 0 : i32
    return %c0_i32, %c0_i32_0 : i32, i32
  }
  func.func @transform_11(%arg0: i32) -> (i32, i32) {
    %c0_i32 = arith.constant 0 : i32
    %c0_i32_0 = arith.constant 0 : i32
    %c0_i32_1 = arith.constant 0 : i32
    return %c0_i32, %c0_i32_0 : i32, i32
  }
  func.func @transform_12(%arg0: i32) -> (i32, i32) {
    %c0_i32 = arith.constant 0 : i32
    %c0_i32_0 = arith.constant 0 : i32
    %c0_i32_1 = arith.constant 0 : i32
    return %c0_i32, %c0_i32_0 : i32, i32
  }
  func.func @transform_13(%arg0: i32) -> (i32, i32) {
    %c0_i32 = arith.constant 0 : i32
    %c0_i32_0 = arith.constant 0 : i32
    %c0_i32_1 = arith.constant 0 : i32
    return %c0_i32, %c0_i32_0 : i32, i32
  }
  func.func @transform_14(%arg0: i32) -> (i32, i32) {
    %c0_i32 = arith.constant 0 : i32
    %c0_i32_0 = arith.constant 0 : i32
    %c0_i32_1 = arith.constant 0 : i32
    return %c0_i32, %c0_i32_0 : i32, i32
  }
}

</mosaic_0001>

<llo_original>
// kernel: speaker_encoder_forward.1
$region0: #{speaker_encoder_forward.1}
  #allocation0 [shape = 'u32[]', space=smem, size = 0x4, offset = 0x4, fixed_abs, tag = 'smem constant byte address 0x4 - core index']
  #allocation1 [shape = 'u32[144,128]{1,0:T(1,128)}', space=vmem, size = 0x12000, scoped, tag = 'internal scratch']
  #allocation2 [shape = 'f32[64,256]{1,0:T(8,128)}', space=vmem, size = 0x10000, scoped, tag = 'scratch operand']
  #allocation3 [shape = 'f32[10,8,32]{2,1,0:T(8,128)}', space=vmem, size = 0xa000, scoped, tag = 'scratch operand']
  #allocation4 [shape = 'f32[10,8,256]{2,1,0:T(8,128)}', space=vmem, size = 0x14000, scoped, tag = 'scratch operand']
  %s0 = inlined_call_operand.vmem [shape: bf16[64,16], index: 0, kind: input, shape index: {}]
  %s1 = inlined_call_operand.vmem [shape: bf16[16,32], index: 1, kind: input, shape index: {}]
  %s2 = inlined_call_operand.vmem [shape: f32[1,32], index: 2, kind: input, shape index: {}]
  %s3 = inlined_call_operand.vmem [shape: bf16[32,256], index: 3, kind: input, shape index: {}]
  %s4 = inlined_call_operand.vmem [shape: f32[1,256], index: 4, kind: input, shape index: {}]
  %s5 = inlined_call_operand.vmem [shape: bf16[64,256], index: 5, kind: input, shape index: {}]
  %s6 = inlined_call_operand.vmem [shape: bf16[3,32,256], index: 6, kind: input, shape index: {}]
  %s7 = inlined_call_operand.vmem [shape: f32[1,256], index: 7, kind: input, shape index: {}]
  %s8 = inlined_call_operand.vmem [shape: bf16[3,256,256], index: 8, kind: input, shape index: {}]
  %s9 = inlined_call_operand.vmem [shape: f32[1,256], index: 9, kind: input, shape index: {}]
  %s10 = inlined_call_operand.vmem [shape: bf16[32,256], index: 10, kind: input, shape index: {}]
  %s11 = inlined_call_operand.vmem [shape: f32[1,256], index: 11, kind: input, shape index: {}]
  %s12 = inlined_call_operand.vmem [shape: bf16[256,128], index: 12, kind: input, shape index: {}]
  %s13 = inlined_call_operand.vmem [shape: f32[1,128], index: 13, kind: input, shape index: {}]
  %s14 = inlined_call_operand.vmem [shape: f32[8,128], index: 14, kind: output, shape index: {}]
  %s15 = sld [smem:[#allocation0]]
  $region66: #{speaker_encoder_forward.1} parent=0
    _
  %s17 = ssub.s32 1, %s15
  %s18 = scalar_select 0, %s17, %s15
  // Predicated region
  $region2: #{speaker_encoder_forward.1} parent=0 // pred_check
    _
  $region3: #{speaker_encoder_forward.1} parent=0 // pred_check_branch
    %20 = sbr.rel (0) target = $region5
  $region4: #{speaker_encoder_forward.1} parent=0 // pred_region
    _
  $region5: #{speaker_encoder_forward.1} parent=0 // pred_fallthru
    _
  // Predicated region
  $region6: #{speaker_encoder_forward.1} parent=0 // pred_check
    _
  $region7: #{speaker_encoder_forward.1} parent=0 // pred_check_branch
    %22 = sbr.rel (0) target = $region9
  $region8: #{speaker_encoder_forward.1} parent=0 // pred_region
    _
  $region9: #{speaker_encoder_forward.1} parent=0 // pred_fallthru
    _
  // Predicated region
  $region10: #{speaker_encoder_forward.1} parent=0 // pred_check
    _
  $region11: #{speaker_encoder_forward.1} parent=0 // pred_check_branch
    %24 = sbr.rel (0) target = $region13
  $region12: #{speaker_encoder_forward.1} parent=0 // pred_region
    _
  $region13: #{speaker_encoder_forward.1} parent=0 // pred_fallthru
    _
  // Predicated region
  $region14: #{speaker_encoder_forward.1} parent=0 // pred_check
    _
  $region15: #{speaker_encoder_forward.1} parent=0 // pred_check_branch
    %26 = sbr.rel (0) target = $region17
  $region16: #{speaker_encoder_forward.1} parent=0 // pred_region
    _
  $region17: #{speaker_encoder_forward.1} parent=0 // pred_fallthru
    _
  // Predicated region
  $region18: #{speaker_encoder_forward.1} parent=0 // pred_check
    _
  $region19: #{speaker_encoder_forward.1} parent=0 // pred_check_branch
    %28 = sbr.rel (0) target = $region21
  $region20: #{speaker_encoder_forward.1} parent=0 // pred_region
    _
  $region21: #{speaker_encoder_forward.1} parent=0 // pred_fallthru
    _
  // Predicated region
  $region22: #{speaker_encoder_forward.1} parent=0 // pred_check
    _
  $region23: #{speaker_encoder_forward.1} parent=0 // pred_check_branch
    %30 = sbr.rel (0) target = $region25
  $region24: #{speaker_encoder_forward.1} parent=0 // pred_region
    _
  $region25: #{speaker_encoder_forward.1} parent=0 // pred_fallthru
    _
  // Predicated region
  $region26: #{speaker_encoder_forward.1} parent=0 // pred_check
    _
  $region27: #{speaker_encoder_forward.1} parent=0 // pred_check_branch
    %32 = sbr.rel (0) target = $region29
  $region28: #{speaker_encoder_forward.1} parent=0 // pred_region
    _
  $region29: #{speaker_encoder_forward.1} parent=0 // pred_fallthru
    _
  // Predicated region
  $region30: #{speaker_encoder_forward.1} parent=0 // pred_check
    _
  $region31: #{speaker_encoder_forward.1} parent=0 // pred_check_branch
    %34 = sbr.rel (0) target = $region33
  $region32: #{speaker_encoder_forward.1} parent=0 // pred_region
    _
  $region33: #{speaker_encoder_forward.1} parent=0 // pred_fallthru
    _
  // Predicated region
  $region34: #{speaker_encoder_forward.1} parent=0 // pred_check
    _
  $region35: #{speaker_encoder_forward.1} parent=0 // pred_check_branch
    %36 = sbr.rel (0) target = $region37
  $region36: #{speaker_encoder_forward.1} parent=0 // pred_region
    _
  $region37: #{speaker_encoder_forward.1} parent=0 // pred_fallthru
    _
  // Predicated region
  $region38: #{speaker_encoder_forward.1} parent=0 // pred_check
    _
  $region39: #{speaker_encoder_forward.1} parent=0 // pred_check_branch
    %38 = sbr.rel (0) target = $region41
  $region40: #{speaker_encoder_forward.1} parent=0 // pred_region
    _
  $region41: #{speaker_encoder_forward.1} parent=0 // pred_fallthru
    _
  // Predicated region
  $region42: #{speaker_encoder_forward.1} parent=0 // pred_check
    _
  $region43: #{speaker_encoder_forward.1} parent=0 // pred_check_branch
    %40 = sbr.rel (0) target = $region45
  $region44: #{speaker_encoder_forward.1} parent=0 // pred_region
    _
  $region45: #{speaker_encoder_forward.1} parent=0 // pred_fallthru
    _
  // Predicated region
  $region46: #{speaker_encoder_forward.1} parent=0 // pred_check
    _
  $region47: #{speaker_encoder_forward.1} parent=0 // pred_check_branch
    %42 = sbr.rel (0) target = $region49
  $region48: #{speaker_encoder_forward.1} parent=0 // pred_region
    _
  $region49: #{speaker_encoder_forward.1} parent=0 // pred_fallthru
    _
  // Predicated region
  $region50: #{speaker_encoder_forward.1} parent=0 // pred_check
    _
  $region51: #{speaker_encoder_forward.1} parent=0 // pred_check_branch
    %44 = sbr.rel (0) target = $region53
  $region52: #{speaker_encoder_forward.1} parent=0 // pred_region
    _
  $region53: #{speaker_encoder_forward.1} parent=0 // pred_fallthru
    _
  // Predicated region
  $region54: #{speaker_encoder_forward.1} parent=0 // pred_check
    _
  $region55: #{speaker_encoder_forward.1} parent=0 // pred_check_branch
    %46 = sbr.rel (0) target = $region57
  $region56: #{speaker_encoder_forward.1} parent=0 // pred_region
    _
  $region57: #{speaker_encoder_forward.1} parent=0 // pred_fallthru
    _
  %vm48 = vcmask 261120
  %49 = vst.msk [vmem:[#allocation3] sm:$0xff] %vm48, 0.0
  %50 = vst.msk [vmem:[#allocation3 + $0x8] sm:$0xff] %vm48, 0.0
  %51 = vst.msk [vmem:[#allocation3 + $0x10] sm:$0xff] %vm48, 0.0
  %52 = vst.msk [vmem:[#allocation3 + $0x18] sm:$0xff] %vm48, 0.0
  %53 = vst.msk [vmem:[#allocation3 + $0x20] sm:$0xff] %vm48, 0.0
  %54 = vst.msk [vmem:[#allocation3 + $0x28] sm:$0xff] %vm48, 0.0
  %55 = vst.msk [vmem:[#allocation3 + $0x30] sm:$0xff] %vm48, 0.0
  %56 = vst.msk [vmem:[#allocation3 + $0x38] sm:$0xff] %vm48, 0.0
  %57 = vst.msk [vmem:[#allocation3 + $0x40] sm:$0xff] %vm48, 0.0
  %58 = vst.msk [vmem:[#allocation3 + $0x48] sm:$0xff] %vm48, 0.0
  %59 = vst [vmem:[#allocation4] sm:$0xff] 0.0
  %60 = vst [vmem:[#allocation4 + $0x8] sm:$0xff] 0.0
  %s61 = scalar_lea.vmem [#allocation4], 144
  %62 = vst [vmem:[%s61] sm:$0xff] 0.0
  %63 = vst [vmem:[%s61 + $0x8] sm:$0xff] 0.0
  %v64 = vld [vmem:[%s0] sm:$0xf]
  %v65 = vld [vmem:[%s0 + $0x4] sm:$0xf]
  %v66 = vld [vmem:[%s0 + $0x8] sm:$0xf]
  %v67 = vld [vmem:[%s0 + $0xc] sm:$0xf]
  %v68 = vld [vmem:[%s0 + $0x10] sm:$0xf]
  %v69 = vld [vmem:[%s0 + $0x14] sm:$0xf]
  %v70 = vld [vmem:[%s0 + $0x18] sm:$0xf]
  %v71 = vld [vmem:[%s0 + $0x1c] sm:$0xf]
  %v72 = vld [vmem:[%s1] sm:$0xf]
  %v73 = vld [vmem:[%s1 + $0x4] sm:$0xf]
  %v74 = vld [vmem:[%s2] sm:$0x1]
  %v76 = vlaneseq
  %v77 = vshrl.u32 %v76, 7
  %v78 = vsub.s32 0, %v77
  %v79 = vrot.slane %v74, %v78
  %v89 = vunpack.c.l.b16 %v64
  %v90 = vunpack.c.l.b16 %v65
  %v91 = vunpack.c.l.b16 %v66
  %v92 = vunpack.c.l.b16 %v67
  %v93 = vunpack.c.l.b16 %v68
  %v94 = vunpack.c.l.b16 %v69
  %v95 = vunpack.c.l.b16 %v70
  %v96 = vunpack.c.l.b16 %v71
  %v97 = vpack.c.b16 %v90, %v89
  %v98 = vpack.c.b16 %v92, %v91
  %v99 = vpack.c.b16 %v94, %v93
  %v100 = vpack.c.b16 %v96, %v95
  %v103 = vunpack.c.l.b16 %v72
  %v104 = vunpack.c.l.b16 %v73
  %v105 = vpack.c.b16 %v104, %v103
  %vm107 = vcmask 130048
  %v109 = vsel %vm107, %v97, 0
  %v112 = vsel %vm107, %v98, 0
  %v115 = vsel %vm107, %v99, 0
  %v118 = vsel %vm107, %v100, 0
  %120 = vmatprep.subr.bf16.mxu0 0
  %121 = vmatpush1.bf16.msra.mxu0 0
  %122 = vmatprep.subr.bf16.mxu0 0
  %123 = vmatpush1.bf16.msra.mxu0 0
  %124 = vmatprep.subr.bf16.mxu0 0
  %125 = vmatpush1.bf16.msra.mxu0 0
  %126 = vmatprep.subr.bf16.mxu0 0
  %127 = vmatpush1.bf16.msra.mxu0 0
  %128 = vmatprep.subr.bf16.mxu0 0
  %129 = vmatpush1.bf16.msra.mxu0 0
  %130 = vmatprep.subr.bf16.mxu0 0
  %131 = vmatpush1.bf16.msra.mxu0 0
  %132 = vmatprep.subr.bf16.mxu0 0
  %133 = vmatpush1.bf16.msra.mxu0 0
  %134 = vmatprep.subr.bf16.mxu0 0
  %135 = vmatpush1.bf16.msra.mxu0 %v105
  %136 = vmatprep.subr.bf16.mxu0 0
  %137 = vmatpush2.bf16.msra.mxu0 0
  %138 = vmatprep.subr.bf16.mxu0 0
  %139 = vmatpush2.bf16.msra.mxu0 0
  %140 = vmatprep.subr.bf16.mxu0 0
  %141 = vmatpush2.bf16.msra.mxu0 0
  %142 = vmatprep.subr.bf16.mxu0 0
  %143 = vmatpush2.bf16.msra.mxu0 0
  %144 = vmatprep.subr.bf16.mxu0 0
  %145 = vmatpush2.bf16.msra.mxu0 0
  %146 = vmatprep.subr.bf16.mxu0 0
  %147 = vmatpush2.bf16.msra.mxu0 0
  %148 = vmatprep.subr.bf16.mxu0 0
  %149 = vmatpush2.bf16.msra.mxu0 0
  %150 = vmatprep.subr.bf16.mxu0 0
  %151 = vmatpush2.bf16.msra.mxu0 0
  %152 = vmatprep.mubr.bf16.mxu0 0
  %153 = vmatmul.mubr.bf16.gmra.mxu0 %v109
  %v154 = vpop.f32.mrf.mxu0
  %v155 = vadd.f32 %v79, %v154
  %v156 = vpop.f32.mrf.mxu0
  %v157 = vpop.f32.mrf.mxu0
  %v158 = vadd.f32 %v79, %v157
  %v159 = vpop.f32.mrf.mxu0
  %160 = vmatprep.mubr.bf16.mxu0 0
  %161 = vmatmul.mubr.bf16.gmra.mxu0 %v112
  %v162 = vpop.f32.mrf.mxu0
  %v163 = vadd.f32 %v79, %v162
  %v164 = vpop.f32.mrf.mxu0
  %v165 = vpop.f32.mrf.mxu0
  %v166 = vadd.f32 %v79, %v165
  %v167 = vpop.f32.mrf.mxu0
  %168 = vmatprep.mubr.bf16.mxu0 0
  %169 = vmatmul.mubr.bf16.gmra.mxu0 %v115
  %v170 = vpop.f32.mrf.mxu0
  %v171 = vadd.f32 %v79, %v170
  %v172 = vpop.f32.mrf.mxu0
  %v173 = vpop.f32.mrf.mxu0
  %v174 = vadd.f32 %v79, %v173
  %v175 = vpop.f32.mrf.mxu0
  %176 = vmatprep.mubr.bf16.mxu0 0
  %177 = vmatmul.mubr.bf16.gmra.mxu0 %v118
  %v178 = vpop.f32.mrf.mxu0
  %v179 = vadd.f32 %v79, %v178
  %v180 = vpop.f32.mrf.mxu0
  %v181 = vpop.f32.mrf.mxu0
  %v182 = vadd.f32 %v79, %v181
  %v183 = vpop.f32.mrf.mxu0
  %184 = vdwg.mxu0
  %v185 = vmax.f32 %v155, 0.0
  %v186 = vmax.f32 %v158, 0.0
  %v187 = vmax.f32 %v163, 0.0
  %v188 = vmax.f32 %v166, 0.0
  %v189 = vmax.f32 %v171, 0.0
  %v190 = vmax.f32 %v174, 0.0
  %v191 = vmax.f32 %v179, 0.0
  %v192 = vmax.f32 %v182, 0.0
  %v193 = vpack.c.bf16 %v186, %v185
  %v194 = vpack.c.bf16 %v188, %v187
  %v195 = vpack.c.bf16 %v190, %v189
  %v196 = vpack.c.bf16 %v192, %v191
  %v197 = vld [vmem:[%s3] sm:$0xff]
  %v198 = vld [vmem:[%s3 + $0x8] sm:$0xff]
  %v199 = vld [vmem:[%s3 + $0x10] sm:$0xff]
  %v200 = vld [vmem:[%s3 + $0x18] sm:$0xff]
  %v201 = vld [vmem:[%s4] sm:$0x3]
  %v203 = vlaneseq
  %v204 = vshrl.u32 %v203, 7
  %v205 = vsub.s32 0, %v204
  %v206 = vrot.slane %v201, %v205
  %v207 = vlaneseq
  %v208 = vshrl.u32 %v207, 7
  %v209 = vsub.s32 1, %v208
  %v210 = vrot.slane %v201, %v209
  %v217 = vunpack.c.l.b16 %v197
  %v218 = vunpack.c.h.b16 %v197
  %v219 = vunpack.c.l.b16 %v198
  %v220 = vunpack.c.h.b16 %v198
  %v221 = vunpack.c.l.b16 %v199
  %v222 = vunpack.c.h.b16 %v199
  %v223 = vunpack.c.l.b16 %v200
  %v224 = vunpack.c.h.b16 %v200
  %v225 = vpack.c.b16 %v219, %v217
  %v226 = vpack.c.b16 %v220, %v218
  %v227 = vpack.c.b16 %v223, %v221
  %v228 = vpack.c.b16 %v224, %v222
  %v234 = vsel %vm48, %v193, 0
  %v237 = vsel %vm48, %v194, 0
  %v240 = vsel %vm48, %v195, 0
  %v243 = vsel %vm48, %v196, 0
  %245 = vmatprep.subr.bf16.mxu0 0
  %246 = vmatpush1.bf16.msra.mxu0 0
  %247 = vmatprep.subr.bf16.mxu0 0
  %248 = vmatpush1.bf16.msra.mxu0 0
  %249 = vmatprep.subr.bf16.mxu0 0
  %250 = vmatpush1.bf16.msra.mxu0 0
  %251 = vmatprep.subr.bf16.mxu0 0
  %252 = vmatpush1.bf16.msra.mxu0 0
  %253 = vmatprep.subr.bf16.mxu0 0
  %254 = vmatpush1.bf16.msra.mxu0 0
  %255 = vmatprep.subr.bf16.mxu0 0
  %256 = vmatpush1.bf16.msra.mxu0 0
  %257 = vmatprep.subr.bf16.mxu0 %v228
  %258 = vmatpush1.bf16.msra.mxu0 %v227
  %259 = vmatprep.subr.bf16.mxu0 %v226
  %260 = vmatpush1.bf16.msra.mxu0 %v225
  %261 = vmatprep.subr.bf16.mxu0 0
  %262 = vmatpush2.bf16.msra.mxu0 0
  %263 = vmatprep.subr.bf16.mxu0 0
  %264 = vmatpush2.bf16.msra.mxu0 0
  %265 = vmatprep.subr.bf16.mxu0 0
  %266 = vmatpush2.bf16.msra.mxu0 0
  %267 = vmatprep.subr.bf16.mxu0 0
  %268 = vmatpush2.bf16.msra.mxu0 0
  %269 = vmatprep.subr.bf16.mxu0 0
  %270 = vmatpush2.bf16.msra.mxu0 0
  %271 = vmatprep.subr.bf16.mxu0 0
  %272 = vmatpush2.bf16.msra.mxu0 0
  %273 = vmatprep.subr.bf16.mxu0 0
  %274 = vmatpush2.bf16.msra.mxu0 0
  %275 = vmatprep.subr.bf16.mxu0 0
  %276 = vmatpush2.bf16.msra.mxu0 0
  %277 = vmatprep.mubr.bf16.mxu0 0
  %278 = vmatmul.mubr.bf16.gmra.mxu0 %v234
  %v279 = vpop.f32.mrf.mxu0
  %v280 = vadd.f32 %v206, %v279
  %v281 = vpop.f32.mrf.mxu0
  %v282 = vadd.f32 %v210, %v281
  %v283 = vpop.f32.mrf.mxu0
  %v284 = vadd.f32 %v206, %v283
  %v285 = vpop.f32.mrf.mxu0
  %v286 = vadd.f32 %v210, %v285
  %287 = vmatprep.mubr.bf16.mxu0 0
  %288 = vmatmul.mubr.bf16.gmra.mxu0 %v237
  %v289 = vpop.f32.mrf.mxu0
  %v290 = vadd.f32 %v206, %v289
  %v291 = vpop.f32.mrf.mxu0
  %v292 = vadd.f32 %v210, %v291
  %v293 = vpop.f32.mrf.mxu0
  %v294 = vadd.f32 %v206, %v293
  %v295 = vpop.f32.mrf.mxu0
  %v296 = vadd.f32 %v210, %v295
  %297 = vmatprep.mubr.bf16.mxu0 0
  %298 = vmatmul.mubr.bf16.gmra.mxu0 %v240
  %v299 = vpop.f32.mrf.mxu0
  %v300 = vadd.f32 %v206, %v299
  %v301 = vpop.f32.mrf.mxu0
  %v302 = vadd.f32 %v210, %v301
  %v303 = vpop.f32.mrf.mxu0
  %v304 = vadd.f32 %v206, %v303
  %v305 = vpop.f32.mrf.mxu0
  %v306 = vadd.f32 %v210, %v305
  %307 = vmatprep.mubr.bf16.mxu0 0
  %308 = vmatmul.mubr.bf16.gmra.mxu0 %v243
  %v309 = vpop.f32.mrf.mxu0
  %v310 = vadd.f32 %v206, %v309
  %v311 = vpop.f32.mrf.mxu0
  %v312 = vadd.f32 %v210, %v311
  %v313 = vpop.f32.mrf.mxu0
  %v314 = vadd.f32 %v206, %v313
  %v315 = vpop.f32.mrf.mxu0
  %v316 = vadd.f32 %v210, %v315
  %317 = vdwg.mxu0
  %318 = vst [vmem:[#allocation2] sm:$0xff] %v280
  %319 = vst [vmem:[#allocation2 + $0x8] sm:$0xff] %v282
  %320 = vst [vmem:[#allocation2 + $0x10] sm:$0xff] %v284
  %321 = vst [vmem:[#allocation2 + $0x18] sm:$0xff] %v286
  %322 = vst [vmem:[#allocation2 + $0x20] sm:$0xff] %v290
  %323 = vst [vmem:[#allocation2 + $0x28] sm:$0xff] %v292
  %324 = vst [vmem:[#allocation2 + $0x30] sm:$0xff] %v294
  %325 = vst [vmem:[#allocation2 + $0x38] sm:$0xff] %v296
  %326 = vst [vmem:[#allocation2 + $0x40] sm:$0xff] %v300
  %327 = vst [vmem:[#allocation2 + $0x48] sm:$0xff] %v302
  %328 = vst [vmem:[#allocation2 + $0x50] sm:$0xff] %v304
  %329 = vst [vmem:[#allocation2 + $0x58] sm:$0xff] %v306
  %330 = vst [vmem:[#allocation2 + $0x60] sm:$0xff] %v310
  %331 = vst [vmem:[#allocation2 + $0x68] sm:$0xff] %v312
  %332 = vst [vmem:[#allocation2 + $0x70] sm:$0xff] %v314
  %333 = vst [vmem:[#allocation2 + $0x78] sm:$0xff] %v316
  %v334 = vld [vmem:[%s5] sm:$0xff]
  %v335 = vld [vmem:[%s5 + $0x8] sm:$0xff]
  %v336 = vld [vmem:[%s5 + $0x10] sm:$0xff]
  %v337 = vld [vmem:[%s5 + $0x18] sm:$0xff]
  %v338 = vld [vmem:[%s5 + $0x20] sm:$0xff]
  %v339 = vld [vmem:[%s5 + $0x28] sm:$0xff]
  %v340 = vld [vmem:[%s5 + $0x30] sm:$0xff]
  %v341 = vld [vmem:[%s5 + $0x38] sm:$0xff]
  %v342 = vld [vmem:[#allocation2] sm:$0xff]
  %v343 = vld [vmem:[#allocation2 + $0x78] sm:$0xff]
  %v344 = vpack.c.bf16 0.0, 0.0
  %v353 = vunpack.c.l.b16 %v334
  %v354 = vunpack.c.h.b16 %v334
  %v355 = vunpack.c.l.b16 %v335
  %v356 = vunpack.c.h.b16 %v335
  %v357 = vunpack.c.l.b16 %v336
  %v358 = vunpack.c.h.b16 %v336
  %v359 = vunpack.c.l.b16 %v337
  %v360 = vunpack.c.h.b16 %v337
  %v361 = vunpack.c.l.b16 %v338
  %v362 = vunpack.c.h.b16 %v338
  %v363 = vunpack.c.l.b16 %v339
  %v364 = vunpack.c.h.b16 %v339
  %v365 = vunpack.c.l.b16 %v340
  %v366 = vunpack.c.h.b16 %v340
  %v367 = vunpack.c.l.b16 %v341
  %v368 = vunpack.c.h.b16 %v341
  %v369 = vpack.c.b16 %v355, %v353
  %v370 = vpack.c.b16 %v356, %v354
  %v371 = vpack.c.b16 %v359, %v357
  %v372 = vpack.c.b16 %v360, %v358
  %v373 = vpack.c.b16 %v363, %v361
  %v374 = vpack.c.b16 %v364, %v362
  %v375 = vpack.c.b16 %v367, %v365
  %v376 = vpack.c.b16 %v368, %v366
  %vm385 = vcmask 523264
  %v387 = vsel %vm385, %v344, 0
  %389 = vmatprep.subr.bf16.mxu0 0
  %390 = vmatpush1.bf16.msra.mxu0 0
  %391 = vmatprep.subr.bf16.mxu0 0
  %392 = vmatpush1.bf16.msra.mxu0 0
  %393 = vmatprep.subr.bf16.mxu0 0
  %394 = vmatpush1.bf16.msra.mxu0 0
  %395 = vmatprep.subr.bf16.mxu0 0
  %396 = vmatpush1.bf16.msra.mxu0 0
  %397 = vmatprep.subr.bf16.mxu0 %v376
  %398 = vmatpush1.bf16.msra.mxu0 %v375
  %399 = vmatprep.subr.bf16.mxu0 %v374
  %400 = vmatpush1.bf16.msra.mxu0 %v373
  %401 = vmatprep.subr.bf16.mxu0 %v372
  %402 = vmatpush1.bf16.msra.mxu0 %v371
  %403 = vmatprep.subr.bf16.mxu0 %v370
  %404 = vmatpush1.bf16.msra.mxu0 %v369
  %405 = vmatprep.subr.bf16.mxu0 0
  %406 = vmatpush2.bf16.msra.mxu0 0
  %407 = vmatprep.subr.bf16.mxu0 0
  %408 = vmatpush2.bf16.msra.mxu0 0
  %409 = vmatprep.subr.bf16.mxu0 0
  %410 = vmatpush2.bf16.msra.mxu0 0
  %411 = vmatprep.subr.bf16.mxu0 0
  %412 = vmatpush2.bf16.msra.mxu0 0
  %413 = vmatprep.subr.bf16.mxu0 0
  %414 = vmatpush2.bf16.msra.mxu0 0
  %415 = vmatprep.subr.bf16.mxu0 0
  %416 = vmatpush2.bf16.msra.mxu0 0
  %417 = vmatprep.subr.bf16.mxu0 0
  %418 = vmatpush2.bf16.msra.mxu0 0
  %419 = vmatprep.subr.bf16.mxu0 0
  %420 = vmatpush2.bf16.msra.mxu0 0
  %421 = vmatprep.mubr.bf16.mxu0 0
  %422 = vmatmul.mubr.bf16.gmra.mxu0 %v387
  %v423 = vpop.f32.mrf.mxu0
  %v424 = vadd.f32 0.0, %v423
  %v425 = vpop.f32.mrf.mxu0
  %v426 = vadd.f32 0.0, %v425
  %v427 = vpop.f32.mrf.mxu0
  %v428 = vpop.f32.mrf.mxu0
  %429 = vdwg.mxu0
  %v430 = vadd.f32 %v342, %v424
  %v431 = vadd.f32 %v343, %v426
  %v432 = vxor.u32 %v430, 2147483648
  %v433 = vmul.f32 %v432, 1.442695
  %v434 = vpow.pop %v433
  %v435 = vadd.f32 %v434, 1.0
  %v436 = vrcp.pop %v435
  %v437 = vmul.f32 1.0, %v436
  %v438 = vtanh.pop %v430
  %v439 = vmul.f32 %v437, 0.0
  %441 = vrot.lane.b32.xlu0 %v438, 64
  %v442 = vpop.permute.xlu0 %441
  %v444 = vmul.f32 %v437, %v442
  %446 = vrot.lane.b32.xlu0 %v444, 32
  %v447 = vpop.permute.xlu0 %446
  %v449 = vadd.f32 %v439, %v447
  %v450 = vtanh.pop %v449
  %452 = vrot.lane.b32.xlu0 %v450, 64
  %v453 = vpop.permute.xlu0 %452
  %v455 = vmul.f32 %v437, %v453
  %v456 = vxor.u32 %v431, 2147483648
  %v457 = vmul.f32 %v456, 1.442695
  %v458 = vpow.pop %v457
  %v459 = vadd.f32 %v458, 1.0
  %v460 = vrcp.pop %v459
  %v461 = vmul.f32 1.0, %v460
  %v462 = vtanh.pop %v431
  %v463 = vmul.f32 %v461, 0.0
  %465 = vrot.lane.b32.xlu0 %v462, 64
  %v466 = vpop.permute.xlu0 %465
  %v468 = vmul.f32 %v461, %v466
  %470 = vrot.lane.b32.xlu0 %v468, 32
  %v471 = vpop.permute.xlu0 %470
  %v473 = vadd.f32 %v463, %v471
  %v474 = vtanh.pop %v473
  %476 = vrot.lane.b32.xlu0 %v474, 64
  %v477 = vpop.permute.xlu0 %476
  %v479 = vmul.f32 %v461, %v477
  %s480 = scalar_lea.vmem [#allocation3], 8
  %v481 = vld [vmem:[%s480] sm:$0xff]
  %483 = vrot.lane.b32.xlu0 %v455, 32
  %v484 = vpop.permute.xlu0 %483
  %v486 = vadd.f32 %v481, %v484
  %487 = vst.msk [vmem:[%s480] sm:$0xff] %vm48, %v486
  %s488 = scalar_lea.vmem [#allocation3], 64
  %v489 = vld [vmem:[%s488] sm:$0xff]
  %491 = vrot.lane.b32.xlu0 %v479, 32
  %v492 = vpop.permute.xlu0 %491
  %v494 = vadd.f32 %v489, %v492
  %495 = vst.msk [vmem:[%s488] sm:$0xff] %vm48, %v494
  %v496 = vld [vmem:[#allocation2 + $0x10] sm:$0xff]
  %v497 = vld [vmem:[#allocation2 + $0x68] sm:$0xff]
  %498 = vrot.lane.b32.xlu0 %v479, 64
  %v499 = vpop.permute.xlu0 %498
  %v501 = vsel %vm48, %v484, %v499
  %v502 = vpack.c.bf16 %v501, %v501
  %v504 = vsel %vm385, %v502, 0
  %506 = vmatprep.subr.bf16.mxu0 0
  %507 = vmatpush1.bf16.msra.mxu0 0
  %508 = vmatprep.subr.bf16.mxu0 0
  %509 = vmatpush1.bf16.msra.mxu0 0
  %510 = vmatprep.subr.bf16.mxu0 0
  %511 = vmatpush1.bf16.msra.mxu0 0
  %512 = vmatprep.subr.bf16.mxu0 0
  %513 = vmatpush1.bf16.msra.mxu0 0
  %514 = vmatprep.subr.bf16.mxu0 %v376
  %515 = vmatpush1.bf16.msra.mxu0 %v375
  %516 = vmatprep.subr.bf16.mxu0 %v374
  %517 = vmatpush1.bf16.msra.mxu0 %v373
  %518 = vmatprep.subr.bf16.mxu0 %v372
  %519 = vmatpush1.bf16.msra.mxu0 %v371
  %520 = vmatprep.subr.bf16.mxu0 %v370
  %521 = vmatpush1.bf16.msra.mxu0 %v369
  %522 = vmatprep.subr.bf16.mxu0 0
  %523 = vmatpush2.bf16.msra.mxu0 0
  %524 = vmatprep.subr.bf16.mxu0 0
  %525 = vmatpush2.bf16.msra.mxu0 0
  %526 = vmatprep.subr.bf16.mxu0 0
  %527 = vmatpush2.bf16.msra.mxu0 0
  %528 = vmatprep.subr.bf16.mxu0 0
  %529 = vmatpush2.bf16.msra.mxu0 0
  %530 = vmatprep.subr.bf16.mxu0 0
  %531 = vmatpush2.bf16.msra.mxu0 0
  %532 = vmatprep.subr.bf16.mxu0 0
  %533 = vmatpush2.bf16.msra.mxu0 0
  %534 = vmatprep.subr.bf16.mxu0 0
  %535 = vmatpush2.bf16.msra.mxu0 0
  %536 = vmatprep.subr.bf16.mxu0 0
  %537 = vmatpush2.bf16.msra.mxu0 0
  %538 = vmatprep.mubr.bf16.mxu0 0
  %539 = vmatmul.mubr.bf16.gmra.mxu0 %v504
  %v540 = vpop.f32.mrf.mxu0
  %v541 = vadd.f32 0.0, %v540
  %v542 = vpop.f32.mrf.mxu0
  %v543 = vadd.f32 0.0, %v542
  %v544 = vpop.f32.mrf.mxu0
  %v545 = vpop.f32.mrf.mxu0
  %546 = vdwg.mxu0
  %v547 = vadd.f32 %v496, %v541
  %v548 = vadd.f32 %v497, %v543
  %v549 = vxor.u32 %v547, 2147483648
  %v550 = vmul.f32 %v549, 1.442695
  %v551 = vpow.pop %v550
  %v552 = vadd.f32 %v551, 1.0
  %v553 = vrcp.pop %v552
  %v554 = vmul.f32 1.0, %v553
  %v555 = vtanh.pop %v547
  %v556 = vmul.f32 %v554, %v449
  %558 = vrot.lane.b32.xlu0 %v555, 64
  %v559 = vpop.permute.xlu0 %558
  %v561 = vmul.f32 %v554, %v559
  %563 = vrot.lane.b32.xlu0 %v561, 32
  %v564 = vpop.permute.xlu0 %563
  %v566 = vadd.f32 %v556, %v564
  %v567 = vtanh.pop %v566
  %569 = vrot.lane.b32.xlu0 %v567, 64
  %v570 = vpop.permute.xlu0 %569
  %v572 = vmul.f32 %v554, %v570
  %v573 = vxor.u32 %v548, 2147483648
  %v574 = vmul.f32 %v573, 1.442695
  %v575 = vpow.pop %v574
  %v576 = vadd.f32 %v575, 1.0
  %v577 = vrcp.pop %v576
  %v578 = vmul.f32 1.0, %v577
  %v579 = vtanh.pop %v548
  %v580 = vmul.f32 %v578, %v473
  %582 = vrot.lane.b32.xlu0 %v579, 64
  %v583 = vpop.permute.xlu0 %582
  %v585 = vmul.f32 %v578, %v583
  %587 = vrot.lane.b32.xlu0 %v585, 32
  %v588 = vpop.permute.xlu0 %587
  %v590 = vadd.f32 %v580, %v588
  %v591 = vtanh.pop %v590
  %593 = vrot.lane.b32.xlu0 %v591, 64
  %v594 = vpop.permute.xlu0 %593
  %v596 = vmul.f32 %v578, %v594
  %s597 = scalar_lea.vmem [#allocation3], 16
  %v598 = vld [vmem:[%s597] sm:$0xff]
  %600 = vrot.lane.b32.xlu0 %v572, 32
  %v601 = vpop.permute.xlu0 %600
  %v603 = vadd.f32 %v598, %v601
  %604 = vst.msk [vmem:[%s597] sm:$0xff] %vm48, %v603
  %s605 = scalar_lea.vmem [#allocation3], 56
  %v606 = vld [vmem:[%s605] sm:$0xff]
  %608 = vrot.lane.b32.xlu0 %v596, 32
  %v609 = vpop.permute.xlu0 %608
  %v611 = vadd.f32 %v606, %v609
  %612 = vst.msk [vmem:[%s605] sm:$0xff] %vm48, %v611
  %v613 = vld [vmem:[#allocation2 + $0x20] sm:$0xff]
  %v614 = vld [vmem:[#allocation2 + $0x58] sm:$0xff]
  %615 = vrot.lane.b32.xlu0 %v596, 64
  %v616 = vpop.permute.xlu0 %615
  %v618 = vsel %vm48, %v601, %v616
  %v619 = vpack.c.bf16 %v618, %v618
  %v621 = vsel %vm385, %v619, 0
  %623 = vmatprep.subr.bf16.mxu0 0
  %624 = vmatpush1.bf16.msra.mxu0 0
  %625 = vmatprep.subr.bf16.mxu0 0
  %626 = vmatpush1.bf16.msra.mxu0 0
  %627 = vmatprep.subr.bf16.mxu0 0
  %628 = vmatpush1.bf16.msra.mxu0 0
  %629 = vmatprep.subr.bf16.mxu0 0
  %630 = vmatpush1.bf16.msra.mxu0 0
  %631 = vmatprep.subr.bf16.mxu0 %v376
  %632 = vmatpush1.bf16.msra.mxu0 %v375
  %633 = vmatprep.subr.bf16.mxu0 %v374
  %634 = vmatpush1.bf16.msra.mxu0 %v373
  %635 = vmatprep.subr.bf16.mxu0 %v372
  %636 = vmatpush1.bf16.msra.mxu0 %v371
  %637 = vmatprep.subr.bf16.mxu0 %v370
  %638 = vmatpush1.bf16.msra.mxu0 %v369
  %639 = vmatprep.subr.bf16.mxu0 0
  %640 = vmatpush2.bf16.msra.mxu0 0
  %641 = vmatprep.subr.bf16.mxu0 0
  %642 = vmatpush2.bf16.msra.mxu0 0
  %643 = vmatprep.subr.bf16.mxu0 0
  %644 = vmatpush2.bf16.msra.mxu0 0
  %645 = vmatprep.subr.bf16.mxu0 0
  %646 = vmatpush2.bf16.msra.mxu0 0
  %647 = vmatprep.subr.bf16.mxu0 0
  %648 = vmatpush2.bf16.msra.mxu0 0
  %649 = vmatprep.subr.bf16.mxu0 0
  %650 = vmatpush2.bf16.msra.mxu0 0
  %651 = vmatprep.subr.bf16.mxu0 0
  %652 = vmatpush2.bf16.msra.mxu0 0
  %653 = vmatprep.subr.bf16.mxu0 0
  %654 = vmatpush2.bf16.msra.mxu0 0
  %655 = vmatprep.mubr.bf16.mxu0 0
  %656 = vmatmul.mubr.bf16.gmra.mxu0 %v621
  %v657 = vpop.f32.mrf.mxu0
  %v658 = vadd.f32 0.0, %v657
  %v659 = vpop.f32.mrf.mxu0
  %v660 = vadd.f32 0.0, %v659
  %v661 = vpop.f32.mrf.mxu0
  %v662 = vpop.f32.mrf.mxu0
  %663 = vdwg.mxu0
  %v664 = vadd.f32 %v613, %v658
  %v665 = vadd.f32 %v614, %v660
  %v666 = vxor.u32 %v664, 2147483648
  %v667 = vmul.f32 %v666, 1.442695
  %v668 = vpow.pop %v667
  %v669 = vadd.f32 %v668, 1.0
  %v670 = vrcp.pop %v669
  %v671 = vmul.f32 1.0, %v670
  %v672 = vtanh.pop %v664
  %v673 = vmul.f32 %v671, %v566
  %675 = vrot.lane.b32.xlu0 %v672, 64
  %v676 = vpop.permute.xlu0 %675
  %v678 = vmul.f32 %v671, %v676
  %680 = vrot.lane.b32.xlu0 %v678, 32
  %v681 = vpop.permute.xlu0 %680
  %v683 = vadd.f32 %v673, %v681
  %v684 = vtanh.pop %v683
  %686 = vrot.lane.b32.xlu0 %v684, 64
  %v687 = vpop.permute.xlu0 %686
  %v689 = vmul.f32 %v671, %v687
  %v690 = vxor.u32 %v665, 2147483648
  %v691 = vmul.f32 %v690, 1.442695
  %v692 = vpow.pop %v691
  %v693 = vadd.f32 %v692, 1.0
  %v694 = vrcp.pop %v693
  %v695 = vmul.f32 1.0, %v694
  %v696 = vtanh.pop %v665
  %v697 = vmul.f32 %v695, %v590
  %699 = vrot.lane.b32.xlu0 %v696, 64
  %v700 = vpop.permute.xlu0 %699
  %v702 = vmul.f32 %v695, %v700
  %704 = vrot.lane.b32.xlu0 %v702, 32
  %v705 = vpop.permute.xlu0 %704
  %v707 = vadd.f32 %v697, %v705
  %v708 = vtanh.pop %v707
  %710 = vrot.lane.b32.xlu0 %v708, 64
  %v711 = vpop.permute.xlu0 %710
  %v713 = vmul.f32 %v695, %v711
  %s714 = scalar_lea.vmem [#allocation3], 24
  %v715 = vld [vmem:[%s714] sm:$0xff]
  %717 = vrot.lane.b32.xlu0 %v689, 32
  %v718 = vpop.permute.xlu0 %717
  %v720 = vadd.f32 %v715, %v718
  %721 = vst.msk [vmem:[%s714] sm:$0xff] %vm48, %v720
  %s722 = scalar_lea.vmem [#allocation3], 48
  %v723 = vld [vmem:[%s722] sm:$0xff]
  %725 = vrot.lane.b32.xlu0 %v713, 32
  %v726 = vpop.permute.xlu0 %725
  %v728 = vadd.f32 %v723, %v726
  %729 = vst.msk [vmem:[%s722] sm:$0xff] %vm48, %v728
  %v730 = vld [vmem:[#allocation2 + $0x30] sm:$0xff]
  %v731 = vld [vmem:[#allocation2 + $0x48] sm:$0xff]
  %732 = vrot.lane.b32.xlu0 %v713, 64
  %v733 = vpop.permute.xlu0 %732
  %v735 = vsel %vm48, %v718, %v733
  %v736 = vpack.c.bf16 %v735, %v735
  %v738 = vsel %vm385, %v736, 0
  %740 = vmatprep.subr.bf16.mxu0 0
  %741 = vmatpush1.bf16.msra.mxu0 0
  %742 = vmatprep.subr.bf16.mxu0 0
  %743 = vmatpush1.bf16.msra.mxu0 0
  %744 = vmatprep.subr.bf16.mxu0 0
  %745 = vmatpush1.bf16.msra.mxu0 0
  %746 = vmatprep.subr.bf16.mxu0 0
  %747 = vmatpush1.bf16.msra.mxu0 0
  %748 = vmatprep.subr.bf16.mxu0 %v376
  %749 = vmatpush1.bf16.msra.mxu0 %v375
  %750 = vmatprep.subr.bf16.mxu0 %v374
  %751 = vmatpush1.bf16.msra.mxu0 %v373
  %752 = vmatprep.subr.bf16.mxu0 %v372
  %753 = vmatpush1.bf16.msra.mxu0 %v371
  %754 = vmatprep.subr.bf16.mxu0 %v370
  %755 = vmatpush1.bf16.msra.mxu0 %v369
  %756 = vmatprep.subr.bf16.mxu0 0
  %757 = vmatpush2.bf16.msra.mxu0 0
  %758 = vmatprep.subr.bf16.mxu0 0
  %759 = vmatpush2.bf16.msra.mxu0 0
  %760 = vmatprep.subr.bf16.mxu0 0
  %761 = vmatpush2.bf16.msra.mxu0 0
  %762 = vmatprep.subr.bf16.mxu0 0
  %763 = vmatpush2.bf16.msra.mxu0 0
  %764 = vmatprep.subr.bf16.mxu0 0
  %765 = vmatpush2.bf16.msra.mxu0 0
  %766 = vmatprep.subr.bf16.mxu0 0
  %767 = vmatpush2.bf16.msra.mxu0 0
  %768 = vmatprep.subr.bf16.mxu0 0
  %769 = vmatpush2.bf16.msra.mxu0 0
  %770 = vmatprep.subr.bf16.mxu0 0
  %771 = vmatpush2.bf16.msra.mxu0 0
  %772 = vmatprep.mubr.bf16.mxu0 0
  %773 = vmatmul.mubr.bf16.gmra.mxu0 %v738
  %v774 = vpop.f32.mrf.mxu0
  %v775 = vadd.f32 0.0, %v774
  %v776 = vpop.f32.mrf.mxu0
  %v777 = vadd.f32 0.0, %v776
  %v778 = vpop.f32.mrf.mxu0
  %v779 = vpop.f32.mrf.mxu0
  %780 = vdwg.mxu0
  %v781 = vadd.f32 %v730, %v775
  %v782 = vadd.f32 %v731, %v777
  %v783 = vxor.u32 %v781, 2147483648
  %v784 = vmul.f32 %v783, 1.442695
  %v785 = vpow.pop %v784
  %v786 = vadd.f32 %v785, 1.0
  %v787 = vrcp.pop %v786
  %v788 = vmul.f32 1.0, %v787
  %v789 = vtanh.pop %v781
  %v790 = vmul.f32 %v788, %v683
  %792 = vrot.lane.b32.xlu0 %v789, 64
  %v793 = vpop.permute.xlu0 %792
  %v795 = vmul.f32 %v788, %v793
  %797 = vrot.lane.b32.xlu0 %v795, 32
  %v798 = vpop.permute.xlu0 %797
  %v800 = vadd.f32 %v790, %v798
  %v801 = vtanh.pop %v800
  %803 = vrot.lane.b32.xlu0 %v801, 64
  %v804 = vpop.permute.xlu0 %803
  %v806 = vmul.f32 %v788, %v804
  %v807 = vxor.u32 %v782, 2147483648
  %v808 = vmul.f32 %v807, 1.442695
  %v809 = vpow.pop %v808
  %v810 = vadd.f32 %v809, 1.0
  %v811 = vrcp.pop %v810
  %v812 = vmul.f32 1.0, %v811
  %v813 = vtanh.pop %v782
  %v814 = vmul.f32 %v812, %v707
  %816 = vrot.lane.b32.xlu0 %v813, 64
  %v817 = vpop.permute.xlu0 %816
  %v819 = vmul.f32 %v812, %v817
  %821 = vrot.lane.b32.xlu0 %v819, 32
  %v822 = vpop.permute.xlu0 %821
  %v824 = vadd.f32 %v814, %v822
  %v825 = vtanh.pop %v824
  %827 = vrot.lane.b32.xlu0 %v825, 64
  %v828 = vpop.permute.xlu0 %827
  %v830 = vmul.f32 %v812, %v828
  %s831 = scalar_lea.vmem [#allocation3], 32
  %v832 = vld [vmem:[%s831] sm:$0xff]
  %834 = vrot.lane.b32.xlu0 %v806, 32
  %v835 = vpop.permute.xlu0 %834
  %v837 = vadd.f32 %v832, %v835
  %838 = vst.msk [vmem:[%s831] sm:$0xff] %vm48, %v837
  %s839 = scalar_lea.vmem [#allocation3], 40
  %v840 = vld [vmem:[%s839] sm:$0xff]
  %842 = vrot.lane.b32.xlu0 %v830, 32
  %v843 = vpop.permute.xlu0 %842
  %v845 = vadd.f32 %v840, %v843
  %846 = vst.msk [vmem:[%s839] sm:$0xff] %vm48, %v845
  %v847 = vld [vmem:[#allocation2 + $0x40] sm:$0xff]
  %v848 = vld [vmem:[#allocation2 + $0x38] sm:$0xff]
  %849 = vrot.lane.b32.xlu0 %v830, 64
  %v850 = vpop.permute.xlu0 %849
  %v852 = vsel %vm48, %v835, %v850
  %v853 = vpack.c.bf16 %v852, %v852
  %v855 = vsel %vm385, %v853, 0
  %857 = vmatprep.subr.bf16.mxu0 0
  %858 = vmatpush1.bf16.msra.mxu0 0
  %859 = vmatprep.subr.bf16.mxu0 0
  %860 = vmatpush1.bf16.msra.mxu0 0
  %861 = vmatprep.subr.bf16.mxu0 0
  %862 = vmatpush1.bf16.msra.mxu0 0
  %863 = vmatprep.subr.bf16.mxu0 0
  %864 = vmatpush1.bf16.msra.mxu0 0
  %865 = vmatprep.subr.bf16.mxu0 %v376
  %866 = vmatpush1.bf16.msra.mxu0 %v375
  %867 = vmatprep.subr.bf16.mxu0 %v374
  %868 = vmatpush1.bf16.msra.mxu0 %v373
  %869 = vmatprep.subr.bf16.mxu0 %v372
  %870 = vmatpush1.bf16.msra.mxu0 %v371
  %871 = vmatprep.subr.bf16.mxu0 %v370
  %872 = vmatpush1.bf16.msra.mxu0 %v369
  %873 = vmatprep.subr.bf16.mxu0 0
  %874 = vmatpush2.bf16.msra.mxu0 0
  %875 = vmatprep.subr.bf16.mxu0 0
  %876 = vmatpush2.bf16.msra.mxu0 0
  %877 = vmatprep.subr.bf16.mxu0 0
  %878 = vmatpush2.bf16.msra.mxu0 0
  %879 = vmatprep.subr.bf16.mxu0 0
  %880 = vmatpush2.bf16.msra.mxu0 0
  %881 = vmatprep.subr.bf16.mxu0 0
  %882 = vmatpush2.bf16.msra.mxu0 0
  %883 = vmatprep.subr.bf16.mxu0 0
  %884 = vmatpush2.bf16.msra.mxu0 0
  %885 = vmatprep.subr.bf16.mxu0 0
  %886 = vmatpush2.bf16.msra.mxu0 0
  %887 = vmatprep.subr.bf16.mxu0 0
  %888 = vmatpush2.bf16.msra.mxu0 0
  %889 = vmatprep.mubr.bf16.mxu0 0
  %890 = vmatmul.mubr.bf16.gmra.mxu0 %v855
  %v891 = vpop.f32.mrf.mxu0
  %v892 = vadd.f32 0.0, %v891
  %v893 = vpop.f32.mrf.mxu0
  %v894 = vadd.f32 0.0, %v893
  %v895 = vpop.f32.mrf.mxu0
  %v896 = vpop.f32.mrf.mxu0
  %897 = vdwg.mxu0
  %v898 = vadd.f32 %v847, %v892
  %v899 = vadd.f32 %v848, %v894
  %v900 = vxor.u32 %v898, 2147483648
  %v901 = vmul.f32 %v900, 1.442695
  %v902 = vpow.pop %v901
  %v903 = vadd.f32 %v902, 1.0
  %v904 = vrcp.pop %v903
  %v905 = vmul.f32 1.0, %v904
  %v906 = vtanh.pop %v898
  %v907 = vmul.f32 %v905, %v800
  %909 = vrot.lane.b32.xlu0 %v906, 64
  %v910 = vpop.permute.xlu0 %909
  %v912 = vmul.f32 %v905, %v910
  %914 = vrot.lane.b32.xlu0 %v912, 32
  %v915 = vpop.permute.xlu0 %914
  %v917 = vadd.f32 %v907, %v915
  %v918 = vtanh.pop %v917
  %920 = vrot.lane.b32.xlu0 %v918, 64
  %v921 = vpop.permute.xlu0 %920
  %v923 = vmul.f32 %v905, %v921
  %v924 = vxor.u32 %v899, 2147483648
  %v925 = vmul.f32 %v924, 1.442695
  %v926 = vpow.pop %v925
  %v927 = vadd.f32 %v926, 1.0
  %v928 = vrcp.pop %v927
  %v929 = vmul.f32 1.0, %v928
  %v930 = vtanh.pop %v899
  %v931 = vmul.f32 %v929, %v824
  %933 = vrot.lane.b32.xlu0 %v930, 64
  %v934 = vpop.permute.xlu0 %933
  %v936 = vmul.f32 %v929, %v934
  %938 = vrot.lane.b32.xlu0 %v936, 32
  %v939 = vpop.permute.xlu0 %938
  %v941 = vadd.f32 %v931, %v939
  %v942 = vtanh.pop %v941
  %944 = vrot.lane.b32.xlu0 %v942, 64
  %v945 = vpop.permute.xlu0 %944
  %v947 = vmul.f32 %v929, %v945
  %v948 = vld [vmem:[%s839] sm:$0xff]
  %950 = vrot.lane.b32.xlu0 %v923, 32
  %v951 = vpop.permute.xlu0 %950
  %v953 = vadd.f32 %v948, %v951
  %954 = vst.msk [vmem:[%s839] sm:$0xff] %vm48, %v953
  %v955 = vld [vmem:[%s831] sm:$0xff]
  %957 = vrot.lane.b32.xlu0 %v947, 32
  %v958 = vpop.permute.xlu0 %957
  %v960 = vadd.f32 %v955, %v958
  %961 = vst.msk [vmem:[%s831] sm:$0xff] %vm48, %v960
  %v962 = vld [vmem:[#allocation2 + $0x50] sm:$0xff]
  %v963 = vld [vmem:[#allocation2 + $0x28] sm:$0xff]
  %964 = vrot.lane.b32.xlu0 %v947, 64
  %v965 = vpop.permute.xlu0 %964
  %v967 = vsel %vm48, %v951, %v965
  %v968 = vpack.c.bf16 %v967, %v967
  %v970 = vsel %vm385, %v968, 0
  %972 = vmatprep.subr.bf16.mxu0 0
  %973 = vmatpush1.bf16.msra.mxu0 0
  %974 = vmatprep.subr.bf16.mxu0 0
  %975 = vmatpush1.bf16.msra.mxu0 0
  %976 = vmatprep.subr.bf16.mxu0 0
  %977 = vmatpush1.bf16.msra.mxu0 0
  %978 = vmatprep.subr.bf16.mxu0 0
  %979 = vmatpush1.bf16.msra.mxu0 0
  %980 = vmatprep.subr.bf16.mxu0 %v376
  %981 = vmatpush1.bf16.msra.mxu0 %v375
  %982 = vmatprep.subr.bf16.mxu0 %v374
  %983 = vmatpush1.bf16.msra.mxu0 %v373
  %984 = vmatprep.subr.bf16.mxu0 %v372
  %985 = vmatpush1.bf16.msra.mxu0 %v371
  %986 = vmatprep.subr.bf16.mxu0 %v370
  %987 = vmatpush1.bf16.msra.mxu0 %v369
  %988 = vmatprep.subr.bf16.mxu0 0
  %989 = vmatpush2.bf16.msra.mxu0 0
  %990 = vmatprep.subr.bf16.mxu0 0
  %991 = vmatpush2.bf16.msra.mxu0 0
  %992 = vmatprep.subr.bf16.mxu0 0
  %993 = vmatpush2.bf16.msra.mxu0 0
  %994 = vmatprep.subr.bf16.mxu0 0
  %995 = vmatpush2.bf16.msra.mxu0 0
  %996 = vmatprep.subr.bf16.mxu0 0
  %997 = vmatpush2.bf16.msra.mxu0 0
  %998 = vmatprep.subr.bf16.mxu0 0
  %999 = vmatpush2.bf16.msra.mxu0 0
  %1000 = vmatprep.subr.bf16.mxu0 0
  %1001 = vmatpush2.bf16.msra.mxu0 0
  %1002 = vmatprep.subr.bf16.mxu0 0
  %1003 = vmatpush2.bf16.msra.mxu0 0
  %1004 = vmatprep.mubr.bf16.mxu0 0
  %1005 = vmatmul.mubr.bf16.gmra.mxu0 %v970
  %v1006 = vpop.f32.mrf.mxu0
  %v1007 = vadd.f32 0.0, %v1006
  %v1008 = vpop.f32.mrf.mxu0
  %v1009 = vadd.f32 0.0, %v1008
  %v1010 = vpop.f32.mrf.mxu0
  %v1011 = vpop.f32.mrf.mxu0
  %1012 = vdwg.mxu0
  %v1013 = vadd.f32 %v962, %v1007
  %v1014 = vadd.f32 %v963, %v1009
  %v1015 = vxor.u32 %v1013, 2147483648
  %v1016 = vmul.f32 %v1015, 1.442695
  %v1017 = vpow.pop %v1016
  %v1018 = vadd.f32 %v1017, 1.0
  %v1019 = vrcp.pop %v1018
  %v1020 = vmul.f32 1.0, %v1019
  %v1021 = vtanh.pop %v1013
  %v1022 = vmul.f32 %v1020, %v917
  %1024 = vrot.lane.b32.xlu0 %v1021, 64
  %v1025 = vpop.permute.xlu0 %1024
  %v1027 = vmul.f32 %v1020, %v1025
  %1029 = vrot.lane.b32.xlu0 %v1027, 32
  %v1030 = vpop.permute.xlu0 %1029
  %v1032 = vadd.f32 %v1022, %v1030
  %v1033 = vtanh.pop %v1032
  %1035 = vrot.lane.b32.xlu0 %v1033, 64
  %v1036 = vpop.permute.xlu0 %1035
  %v1038 = vmul.f32 %v1020, %v1036
  %v1039 = vxor.u32 %v1014, 2147483648
  %v1040 = vmul.f32 %v1039, 1.442695
  %v1041 = vpow.pop %v1040
  %v1042 = vadd.f32 %v1041, 1.0
  %v1043 = vrcp.pop %v1042
  %v1044 = vmul.f32 1.0, %v1043
  %v1045 = vtanh.pop %v1014
  %v1046 = vmul.f32 %v1044, %v941
  %1048 = vrot.lane.b32.xlu0 %v1045, 64
  %v1049 = vpop.permute.xlu0 %1048
  %v1051 = vmul.f32 %v1044, %v1049
  %1053 = vrot.lane.b32.xlu0 %v1051, 32
  %v1054 = vpop.permute.xlu0 %1053
  %v1056 = vadd.f32 %v1046, %v1054
  %v1057 = vtanh.pop %v1056
  %1059 = vrot.lane.b32.xlu0 %v1057, 64
  %v1060 = vpop.permute.xlu0 %1059
  %v1062 = vmul.f32 %v1044, %v1060
  %v1063 = vld [vmem:[%s722] sm:$0xff]
  %1065 = vrot.lane.b32.xlu0 %v1038, 32
  %v1066 = vpop.permute.xlu0 %1065
  %v1068 = vadd.f32 %v1063, %v1066
  %1069 = vst.msk [vmem:[%s722] sm:$0xff] %vm48, %v1068
  %v1070 = vld [vmem:[%s714] sm:$0xff]
  %1072 = vrot.lane.b32.xlu0 %v1062, 32
  %v1073 = vpop.permute.xlu0 %1072
  %v1075 = vadd.f32 %v1070, %v1073
  %1076 = vst.msk [vmem:[%s714] sm:$0xff] %vm48, %v1075
  %v1077 = vld [vmem:[#allocation2 + $0x60] sm:$0xff]
  %v1078 = vld [vmem:[#allocation2 + $0x18] sm:$0xff]
  %1079 = vrot.lane.b32.xlu0 %v1062, 64
  %v1080 = vpop.permute.xlu0 %1079
  %v1082 = vsel %vm48, %v1066, %v1080
  %v1083 = vpack.c.bf16 %v1082, %v1082
  %v1085 = vsel %vm385, %v1083, 0
  %1087 = vmatprep.subr.bf16.mxu0 0
  %1088 = vmatpush1.bf16.msra.mxu0 0
  %1089 = vmatprep.subr.bf16.mxu0 0
  %1090 = vmatpush1.bf16.msra.mxu0 0
  %1091 = vmatprep.subr.bf16.mxu0 0
  %1092 = vmatpush1.bf16.msra.mxu0 0
  %1093 = vmatprep.subr.bf16.mxu0 0
  %1094 = vmatpush1.bf16.msra.mxu0 0
  %1095 = vmatprep.subr.bf16.mxu0 %v376
  %1096 = vmatpush1.bf16.msra.mxu0 %v375
  %1097 = vmatprep.subr.bf16.mxu0 %v374
  %1098 = vmatpush1.bf16.msra.mxu0 %v373
  %1099 = vmatprep.subr.bf16.mxu0 %v372
  %1100 = vmatpush1.bf16.msra.mxu0 %v371
  %1101 = vmatprep.subr.bf16.mxu0 %v370
  %1102 = vmatpush1.bf16.msra.mxu0 %v369
  %1103 = vmatprep.subr.bf16.mxu0 0
  %1104 = vmatpush2.bf16.msra.mxu0 0
  %1105 = vmatprep.subr.bf16.mxu0 0
  %1106 = vmatpush2.bf16.msra.mxu0 0
  %1107 = vmatprep.subr.bf16.mxu0 0
  %1108 = vmatpush2.bf16.msra.mxu0 0
  %1109 = vmatprep.subr.bf16.mxu0 0
  %1110 = vmatpush2.bf16.msra.mxu0 0
  %1111 = vmatprep.subr.bf16.mxu0 0
  %1112 = vmatpush2.bf16.msra.mxu0 0
  %1113 = vmatprep.subr.bf16.mxu0 0
  %1114 = vmatpush2.bf16.msra.mxu0 0
  %1115 = vmatprep.subr.bf16.mxu0 0
  %1116 = vmatpush2.bf16.msra.mxu0 0
  %1117 = vmatprep.subr.bf16.mxu0 0
  %1118 = vmatpush2.bf16.msra.mxu0 0
  %1119 = vmatprep.mubr.bf16.mxu0 0
  %1120 = vmatmul.mubr.bf16.gmra.mxu0 %v1085
  %v1121 = vpop.f32.mrf.mxu0
  %v1122 = vadd.f32 0.0, %v1121
  %v1123 = vpop.f32.mrf.mxu0
  %v1124 = vadd.f32 0.0, %v1123
  %v1125 = vpop.f32.mrf.mxu0
  %v1126 = vpop.f32.mrf.mxu0
  %1127 = vdwg.mxu0
  %v1128 = vadd.f32 %v1077, %v1122
  %v1129 = vadd.f32 %v1078, %v1124
  %v1130 = vxor.u32 %v1128, 2147483648
  %v1131 = vmul.f32 %v1130, 1.442695
  %v1132 = vpow.pop %v1131
  %v1133 = vadd.f32 %v1132, 1.0
  %v1134 = vrcp.pop %v1133
  %v1135 = vmul.f32 1.0, %v1134
  %v1136 = vtanh.pop %v1128
  %v1137 = vmul.f32 %v1135, %v1032
  %1139 = vrot.lane.b32.xlu0 %v1136, 64
  %v1140 = vpop.permute.xlu0 %1139
  %v1142 = vmul.f32 %v1135, %v1140
  %1144 = vrot.lane.b32.xlu0 %v1142, 32
  %v1145 = vpop.permute.xlu0 %1144
  %v1147 = vadd.f32 %v1137, %v1145
  %v1148 = vtanh.pop %v1147
  %1150 = vrot.lane.b32.xlu0 %v1148, 64
  %v1151 = vpop.permute.xlu0 %1150
  %v1153 = vmul.f32 %v1135, %v1151
  %v1154 = vxor.u32 %v1129, 2147483648
  %v1155 = vmul.f32 %v1154, 1.442695
  %v1156 = vpow.pop %v1155
  %v1157 = vadd.f32 %v1156, 1.0
  %v1158 = vrcp.pop %v1157
  %v1159 = vmul.f32 1.0, %v1158
  %v1160 = vtanh.pop %v1129
  %v1161 = vmul.f32 %v1159, %v1056
  %1163 = vrot.lane.b32.xlu0 %v1160, 64
  %v1164 = vpop.permute.xlu0 %1163
  %v1166 = vmul.f32 %v1159, %v1164
  %1168 = vrot.lane.b32.xlu0 %v1166, 32
  %v1169 = vpop.permute.xlu0 %1168
  %v1171 = vadd.f32 %v1161, %v1169
  %v1172 = vtanh.pop %v1171
  %1174 = vrot.lane.b32.xlu0 %v1172, 64
  %v1175 = vpop.permute.xlu0 %1174
  %v1177 = vmul.f32 %v1159, %v1175
  %v1178 = vld [vmem:[%s605] sm:$0xff]
  %1180 = vrot.lane.b32.xlu0 %v1153, 32
  %v1181 = vpop.permute.xlu0 %1180
  %v1183 = vadd.f32 %v1178, %v1181
  %1184 = vst.msk [vmem:[%s605] sm:$0xff] %vm48, %v1183
  %v1185 = vld [vmem:[%s597] sm:$0xff]
  %1187 = vrot.lane.b32.xlu0 %v1177, 32
  %v1188 = vpop.permute.xlu0 %1187
  %v1190 = vadd.f32 %v1185, %v1188
  %1191 = vst.msk [vmem:[%s597] sm:$0xff] %vm48, %v1190
  %v1192 = vld [vmem:[#allocation2 + $0x70] sm:$0xff]
  %v1193 = vld [vmem:[#allocation2 + $0x8] sm:$0xff]
  %1194 = vrot.lane.b32.xlu0 %v1177, 64
  %v1195 = vpop.permute.xlu0 %1194
  %v1197 = vsel %vm48, %v1181, %v1195
  %v1198 = vpack.c.bf16 %v1197, %v1197
  %v1200 = vsel %vm385, %v1198, 0
  %1202 = vmatprep.subr.bf16.mxu0 0
  %1203 = vmatpush1.bf16.msra.mxu0 0
  %1204 = vmatprep.subr.bf16.mxu0 0
  %1205 = vmatpush1.bf16.msra.mxu0 0
  %1206 = vmatprep.subr.bf16.mxu0 0
  %1207 = vmatpush1.bf16.msra.mxu0 0
  %1208 = vmatprep.subr.bf16.mxu0 0
  %1209 = vmatpush1.bf16.msra.mxu0 0
  %1210 = vmatprep.subr.bf16.mxu0 %v376
  %1211 = vmatpush1.bf16.msra.mxu0 %v375
  %1212 = vmatprep.subr.bf16.mxu0 %v374
  %1213 = vmatpush1.bf16.msra.mxu0 %v373
  %1214 = vmatprep.subr.bf16.mxu0 %v372
  %1215 = vmatpush1.bf16.msra.mxu0 %v371
  %1216 = vmatprep.subr.bf16.mxu0 %v370
  %1217 = vmatpush1.bf16.msra.mxu0 %v369
  %1218 = vmatprep.subr.bf16.mxu0 0
  %1219 = vmatpush2.bf16.msra.mxu0 0
  %1220 = vmatprep.subr.bf16.mxu0 0
  %1221 = vmatpush2.bf16.msra.mxu0 0
  %1222 = vmatprep.subr.bf16.mxu0 0
  %1223 = vmatpush2.bf16.msra.mxu0 0
  %1224 = vmatprep.subr.bf16.mxu0 0
  %1225 = vmatpush2.bf16.msra.mxu0 0
  %1226 = vmatprep.subr.bf16.mxu0 0
  %1227 = vmatpush2.bf16.msra.mxu0 0
  %1228 = vmatprep.subr.bf16.mxu0 0
  %1229 = vmatpush2.bf16.msra.mxu0 0
  %1230 = vmatprep.subr.bf16.mxu0 0
  %1231 = vmatpush2.bf16.msra.mxu0 0
  %1232 = vmatprep.subr.bf16.mxu0 0
  %1233 = vmatpush2.bf16.msra.mxu0 0
  %1234 = vmatprep.mubr.bf16.mxu0 0
  %1235 = vmatmul.mubr.bf16.gmra.mxu0 %v1200
  %v1236 = vpop.f32.mrf.mxu0
  %v1237 = vadd.f32 0.0, %v1236
  %v1238 = vpop.f32.mrf.mxu0
  %v1239 = vadd.f32 0.0, %v1238
  %v1240 = vpop.f32.mrf.mxu0
  %v1241 = vpop.f32.mrf.mxu0
  %1242 = vdwg.mxu0
  %v1243 = vadd.f32 %v1192, %v1237
  %v1244 = vadd.f32 %v1193, %v1239
  %v1245 = vxor.u32 %v1243, 2147483648
  %v1246 = vmul.f32 %v1245, 1.442695
  %v1247 = vpow.pop %v1246
  %v1248 = vadd.f32 %v1247, 1.0
  %v1249 = vrcp.pop %v1248
  %v1250 = vmul.f32 1.0, %v1249
  %v1251 = vtanh.pop %v1243
  %v1252 = vmul.f32 %v1250, %v1147
  %1254 = vrot.lane.b32.xlu0 %v1251, 64
  %v1255 = vpop.permute.xlu0 %1254
  %v1257 = vmul.f32 %v1250, %v1255
  %1259 = vrot.lane.b32.xlu0 %v1257, 32
  %v1260 = vpop.permute.xlu0 %1259
  %v1262 = vadd.f32 %v1252, %v1260
  %v1263 = vtanh.pop %v1262
  %1265 = vrot.lane.b32.xlu0 %v1263, 64
  %v1266 = vpop.permute.xlu0 %1265
  %v1268 = vmul.f32 %v1250, %v1266
  %v1269 = vxor.u32 %v1244, 2147483648
  %v1270 = vmul.f32 %v1269, 1.442695
  %v1271 = vpow.pop %v1270
  %v1272 = vadd.f32 %v1271, 1.0
  %v1273 = vrcp.pop %v1272
  %v1274 = vmul.f32 1.0, %v1273
  %v1275 = vtanh.pop %v1244
  %v1276 = vmul.f32 %v1274, %v1171
  %1278 = vrot.lane.b32.xlu0 %v1275, 64
  %v1279 = vpop.permute.xlu0 %1278
  %v1281 = vmul.f32 %v1274, %v1279
  %1283 = vrot.lane.b32.xlu0 %v1281, 32
  %v1284 = vpop.permute.xlu0 %1283
  %v1286 = vadd.f32 %v1276, %v1284
  %v1287 = vtanh.pop %v1286
  %1289 = vrot.lane.b32.xlu0 %v1287, 64
  %v1290 = vpop.permute.xlu0 %1289
  %v1292 = vmul.f32 %v1274, %v1290
  %v1293 = vld [vmem:[%s488] sm:$0xff]
  %1295 = vrot.lane.b32.xlu0 %v1268, 32
  %v1296 = vpop.permute.xlu0 %1295
  %v1298 = vadd.f32 %v1293, %v1296
  %1299 = vst.msk [vmem:[%s488] sm:$0xff] %vm48, %v1298
  %v1300 = vld [vmem:[%s480] sm:$0xff]
  %1302 = vrot.lane.b32.xlu0 %v1292, 32
  %v1303 = vpop.permute.xlu0 %1302
  %v1305 = vadd.f32 %v1300, %v1303
  %1306 = vst.msk [vmem:[%s480] sm:$0xff] %vm48, %v1305
  %v1307 = vld [vmem:[#allocation3] sm:$0xff]
  %v1308 = vld [vmem:[#allocation3 + $0x8] sm:$0xff]
  %v1309 = vld [vmem:[#allocation3 + $0x10] sm:$0xff]
  %v1310 = vld [vmem:[#allocation3 + $0x18] sm:$0xff]
  %v1311 = vld [vmem:[#allocation3 + $0x20] sm:$0xff]
  %v1312 = vld [vmem:[#allocation3 + $0x28] sm:$0xff]
  %v1313 = vld [vmem:[#allocation3 + $0x30] sm:$0xff]
  %v1314 = vld [vmem:[#allocation3 + $0x38] sm:$0xff]
  %v1315 = vpack.c.bf16 %v1308, %v1307
  %v1316 = vpack.c.bf16 %v1310, %v1309
  %v1317 = vpack.c.bf16 %v1312, %v1311
  %v1318 = vpack.c.bf16 %v1314, %v1313
  %v1319 = vld [vmem:[%s6] sm:$0xff]
  %v1320 = vld [vmem:[%s6 + $0x8] sm:$0xff]
  %v1321 = vld [vmem:[%s6 + $0x10] sm:$0xff]
  %v1322 = vld [vmem:[%s6 + $0x18] sm:$0xff]
  %v1323 = vld [vmem:[%s480] sm:$0xff]
  %v1324 = vld [vmem:[%s480 + $0x8] sm:$0xff]
  %v1325 = vld [vmem:[%s480 + $0x10] sm:$0xff]
  %v1326 = vld [vmem:[%s480 + $0x18] sm:$0xff]
  %v1327 = vld [vmem:[%s480 + $0x20] sm:$0xff]
  %v1328 = vld [vmem:[%s480 + $0x28] sm:$0xff]
  %v1329 = vld [vmem:[%s480 + $0x30] sm:$0xff]
  %v1330 = vld [vmem:[%s480 + $0x38] sm:$0xff]
  %v1331 = vpack.c.bf16 %v1324, %v1323
  %v1332 = vpack.c.bf16 %v1326, %v1325
  %v1333 = vpack.c.bf16 %v1328, %v1327
  %v1334 = vpack.c.bf16 %v1330, %v1329
  %s1335 = scalar_lea.vmem %s6, 32
  %v1336 = vld [vmem:[%s1335] sm:$0xff]
  %v1337 = vld [vmem:[%s1335 + $0x8] sm:$0xff]
  %v1338 = vld [vmem:[%s1335 + $0x10] sm:$0xff]
  %v1339 = vld [vmem:[%s1335 + $0x18] sm:$0xff]
  %v1344 = vunpack.c.l.b16 %v1336
  %v1345 = vunpack.c.h.b16 %v1336
  %v1346 = vunpack.c.l.b16 %v1337
  %v1347 = vunpack.c.h.b16 %v1337
  %v1348 = vunpack.c.l.b16 %v1338
  %v1349 = vunpack.c.h.b16 %v1338
  %v1350 = vunpack.c.l.b16 %v1339
  %v1351 = vunpack.c.h.b16 %v1339
  %v1352 = vpack.c.b16 %v1346, %v1344
  %v1353 = vpack.c.b16 %v1347, %v1345
  %v1354 = vpack.c.b16 %v1350, %v1348
  %v1355 = vpack.c.b16 %v1351, %v1349
  %v1361 = vsel %vm48, %v1331, 0
  %v1364 = vsel %vm48, %v1332, 0
  %v1367 = vsel %vm48, %v1333, 0
  %v1370 = vsel %vm48, %v1334, 0
  %1372 = vmatprep.subr.bf16.mxu0 0
  %1373 = vmatpush1.bf16.msra.mxu0 0
  %1374 = vmatprep.subr.bf16.mxu0 0
  %1375 = vmatpush1.bf16.msra.mxu0 0
  %1376 = vmatprep.subr.bf16.mxu0 0
  %1377 = vmatpush1.bf16.msra.mxu0 0
  %1378 = vmatprep.subr.bf16.mxu0 0
  %1379 = vmatpush1.bf16.msra.mxu0 0
  %1380 = vmatprep.subr.bf16.mxu0 0
  %1381 = vmatpush1.bf16.msra.mxu0 0
  %1382 = vmatprep.subr.bf16.mxu0 0
  %1383 = vmatpush1.bf16.msra.mxu0 0
  %1384 = vmatprep.subr.bf16.mxu0 %v1355
  %1385 = vmatpush1.bf16.msra.mxu0 %v1354
  %1386 = vmatprep.subr.bf16.mxu0 %v1353
  %1387 = vmatpush1.bf16.msra.mxu0 %v1352
  %1388 = vmatprep.subr.bf16.mxu0 0
  %1389 = vmatpush2.bf16.msra.mxu0 0
  %1390 = vmatprep.subr.bf16.mxu0 0
  %1391 = vmatpush2.bf16.msra.mxu0 0
  %1392 = vmatprep.subr.bf16.mxu0 0
  %1393 = vmatpush2.bf16.msra.mxu0 0
  %1394 = vmatprep.subr.bf16.mxu0 0
  %1395 = vmatpush2.bf16.msra.mxu0 0
  %1396 = vmatprep.subr.bf16.mxu0 0
  %1397 = vmatpush2.bf16.msra.mxu0 0
  %1398 = vmatprep.subr.bf16.mxu0 0
  %1399 = vmatpush2.bf16.msra.mxu0 0
  %1400 = vmatprep.subr.bf16.mxu0 0
  %1401 = vmatpush2.bf16.msra.mxu0 0
  %1402 = vmatprep.subr.bf16.mxu0 0
  %1403 = vmatpush2.bf16.msra.mxu0 0
  %1404 = vmatprep.mubr.bf16.mxu0 0
  %1405 = vmatmul.mubr.bf16.gmra.mxu0 %v1361
  %v1406 = vpop.f32.mrf.mxu0
  %v1407 = vadd.f32 0.0, %v1406
  %v1408 = vpop.f32.mrf.mxu0
  %v1409 = vadd.f32 0.0, %v1408
  %v1410 = vpop.f32.mrf.mxu0
  %v1411 = vadd.f32 0.0, %v1410
  %v1412 = vpop.f32.mrf.mxu0
  %v1413 = vadd.f32 0.0, %v1412
  %1414 = vmatprep.mubr.bf16.mxu0 0
  %1415 = vmatmul.mubr.bf16.gmra.mxu0 %v1364
  %v1416 = vpop.f32.mrf.mxu0
  %v1417 = vadd.f32 0.0, %v1416
  %v1418 = vpop.f32.mrf.mxu0
  %v1419 = vadd.f32 0.0, %v1418
  %v1420 = vpop.f32.mrf.mxu0
  %v1421 = vadd.f32 0.0, %v1420
  %v1422 = vpop.f32.mrf.mxu0
  %v1423 = vadd.f32 0.0, %v1422
  %1424 = vmatprep.mubr.bf16.mxu0 0
  %1425 = vmatmul.mubr.bf16.gmra.mxu0 %v1367
  %v1426 = vpop.f32.mrf.mxu0
  %v1427 = vadd.f32 0.0, %v1426
  %v1428 = vpop.f32.mrf.mxu0
  %v1429 = vadd.f32 0.0, %v1428
  %v1430 = vpop.f32.mrf.mxu0
  %v1431 = vadd.f32 0.0, %v1430
  %v1432 = vpop.f32.mrf.mxu0
  %v1433 = vadd.f32 0.0, %v1432
  %1434 = vmatprep.mubr.bf16.mxu0 0
  %1435 = vmatmul.mubr.bf16.gmra.mxu0 %v1370
  %v1436 = vpop.f32.mrf.mxu0
  %v1437 = vadd.f32 0.0, %v1436
  %v1438 = vpop.f32.mrf.mxu0
  %v1439 = vadd.f32 0.0, %v1438
  %v1440 = vpop.f32.mrf.mxu0
  %v1441 = vadd.f32 0.0, %v1440
  %v1442 = vpop.f32.mrf.mxu0
  %v1443 = vadd.f32 0.0, %v1442
  %1444 = vdwg.mxu0
  %v1449 = vunpack.c.l.b16 %v1319
  %v1450 = vunpack.c.h.b16 %v1319
  %v1451 = vunpack.c.l.b16 %v1320
  %v1452 = vunpack.c.h.b16 %v1320
  %v1453 = vunpack.c.l.b16 %v1321
  %v1454 = vunpack.c.h.b16 %v1321
  %v1455 = vunpack.c.l.b16 %v1322
  %v1456 = vunpack.c.h.b16 %v1322
  %v1457 = vpack.c.b16 %v1451, %v1449
  %v1458 = vpack.c.b16 %v1452, %v1450
  %v1459 = vpack.c.b16 %v1455, %v1453
  %v1460 = vpack.c.b16 %v1456, %v1454
  %v1466 = vsel %vm48, %v1315, 0
  %v1469 = vsel %vm48, %v1316, 0
  %v1472 = vsel %vm48, %v1317, 0
  %v1475 = vsel %vm48, %v1318, 0
  %1477 = vmatprep.subr.bf16.mxu0 0
  %1478 = vmatpush1.bf16.msra.mxu0 0
  %1479 = vmatprep.subr.bf16.mxu0 0
  %1480 = vmatpush1.bf16.msra.mxu0 0
  %1481 = vmatprep.subr.bf16.mxu0 0
  %1482 = vmatpush1.bf16.msra.mxu0 0
  %1483 = vmatprep.subr.bf16.mxu0 0
  %1484 = vmatpush1.bf16.msra.mxu0 0
  %1485 = vmatprep.subr.bf16.mxu0 0
  %1486 = vmatpush1.bf16.msra.mxu0 0
  %1487 = vmatprep.subr.bf16.mxu0 0
  %1488 = vmatpush1.bf16.msra.mxu0 0
  %1489 = vmatprep.subr.bf16.mxu0 %v1460
  %1490 = vmatpush1.bf16.msra.mxu0 %v1459
  %1491 = vmatprep.subr.bf16.mxu0 %v1458
  %1492 = vmatpush1.bf16.msra.mxu0 %v1457
  %1493 = vmatprep.subr.bf16.mxu0 0
  %1494 = vmatpush2.bf16.msra.mxu0 0
  %1495 = vmatprep.subr.bf16.mxu0 0
  %1496 = vmatpush2.bf16.msra.mxu0 0
  %1497 = vmatprep.subr.bf16.mxu0 0
  %1498 = vmatpush2.bf16.msra.mxu0 0
  %1499 = vmatprep.subr.bf16.mxu0 0
  %1500 = vmatpush2.bf16.msra.mxu0 0
  %1501 = vmatprep.subr.bf16.mxu0 0
  %1502 = vmatpush2.bf16.msra.mxu0 0
  %1503 = vmatprep.subr.bf16.mxu0 0
  %1504 = vmatpush2.bf16.msra.mxu0 0
  %1505 = vmatprep.subr.bf16.mxu0 0
  %1506 = vmatpush2.bf16.msra.mxu0 0
  %1507 = vmatprep.subr.bf16.mxu0 0
  %1508 = vmatpush2.bf16.msra.mxu0 0
  %1509 = vmatprep.mubr.bf16.mxu0 0
  %1510 = vmatmul.mubr.bf16.gmra.mxu0 %v1466
  %v1511 = vpop.f32.mrf.mxu0
  %v1512 = vadd.f32 %v1407, %v1511
  %v1513 = vpop.f32.mrf.mxu0
  %v1514 = vadd.f32 %v1409, %v1513
  %v1515 = vpop.f32.mrf.mxu0
  %v1516 = vadd.f32 %v1411, %v1515
  %v1517 = vpop.f32.mrf.mxu0
  %v1518 = vadd.f32 %v1413, %v1517
  %1519 = vmatprep.mubr.bf16.mxu0 0
  %1520 = vmatmul.mubr.bf16.gmra.mxu0 %v1469
  %v1521 = vpop.f32.mrf.mxu0
  %v1522 = vadd.f32 %v1417, %v1521
  %v1523 = vpop.f32.mrf.mxu0
  %v1524 = vadd.f32 %v1419, %v1523
  %v1525 = vpop.f32.mrf.mxu0
  %v1526 = vadd.f32 %v1421, %v1525
  %v1527 = vpop.f32.mrf.mxu0
  %v1528 = vadd.f32 %v1423, %v1527
  %1529 = vmatprep.mubr.bf16.mxu0 0
  %1530 = vmatmul.mubr.bf16.gmra.mxu0 %v1472
  %v1531 = vpop.f32.mrf.mxu0
  %v1532 = vadd.f32 %v1427, %v1531
  %v1533 = vpop.f32.mrf.mxu0
  %v1534 = vadd.f32 %v1429, %v1533
  %v1535 = vpop.f32.mrf.mxu0
  %v1536 = vadd.f32 %v1431, %v1535
  %v1537 = vpop.f32.mrf.mxu0
  %v1538 = vadd.f32 %v1433, %v1537
  %1539 = vmatprep.mubr.bf16.mxu0 0
  %1540 = vmatmul.mubr.bf16.gmra.mxu0 %v1475
  %v1541 = vpop.f32.mrf.mxu0
  %v1542 = vadd.f32 %v1437, %v1541
  %v1543 = vpop.f32.mrf.mxu0
  %v1544 = vadd.f32 %v1439, %v1543
  %v1545 = vpop.f32.mrf.mxu0
  %v1546 = vadd.f32 %v1441, %v1545
  %v1547 = vpop.f32.mrf.mxu0
  %v1548 = vadd.f32 %v1443, %v1547
  %1549 = vdwg.mxu0
  %v1550 = vld [vmem:[%s597] sm:$0xff]
  %v1551 = vld [vmem:[%s597 + $0x8] sm:$0xff]
  %v1552 = vld [vmem:[%s597 + $0x10] sm:$0xff]
  %v1553 = vld [vmem:[%s597 + $0x18] sm:$0xff]
  %v1554 = vld [vmem:[%s597 + $0x20] sm:$0xff]
  %v1555 = vld [vmem:[%s597 + $0x28] sm:$0xff]
  %v1556 = vld [vmem:[%s597 + $0x30] sm:$0xff]
  %v1557 = vld [vmem:[%s597 + $0x38] sm:$0xff]
  %v1558 = vpack.c.bf16 %v1551, %v1550
  %v1559 = vpack.c.bf16 %v1553, %v1552
  %v1560 = vpack.c.bf16 %v1555, %v1554
  %v1561 = vpack.c.bf16 %v1557, %v1556
  %s1562 = scalar_lea.vmem %s6, 64
  %v1563 = vld [vmem:[%s1562] sm:$0xff]
  %v1564 = vld [vmem:[%s1562 + $0x8] sm:$0xff]
  %v1565 = vld [vmem:[%s1562 + $0x10] sm:$0xff]
  %v1566 = vld [vmem:[%s1562 + $0x18] sm:$0xff]
  %v1571 = vunpack.c.l.b16 %v1563
  %v1572 = vunpack.c.h.b16 %v1563
  %v1573 = vunpack.c.l.b16 %v1564
  %v1574 = vunpack.c.h.b16 %v1564
  %v1575 = vunpack.c.l.b16 %v1565
  %v1576 = vunpack.c.h.b16 %v1565
  %v1577 = vunpack.c.l.b16 %v1566
  %v1578 = vunpack.c.h.b16 %v1566
  %v1579 = vpack.c.b16 %v1573, %v1571
  %v1580 = vpack.c.b16 %v1574, %v1572
  %v1581 = vpack.c.b16 %v1577, %v1575
  %v1582 = vpack.c.b16 %v1578, %v1576
  %v1588 = vsel %vm48, %v1558, 0
  %v1591 = vsel %vm48, %v1559, 0
  %v1594 = vsel %vm48, %v1560, 0
  %v1597 = vsel %vm48, %v1561, 0
  %1599 = vmatprep.subr.bf16.mxu0 0
  %1600 = vmatpush1.bf16.msra.mxu0 0
  %1601 = vmatprep.subr.bf16.mxu0 0
  %1602 = vmatpush1.bf16.msra.mxu0 0
  %1603 = vmatprep.subr.bf16.mxu0 0
  %1604 = vmatpush1.bf16.msra.mxu0 0
  %1605 = vmatprep.subr.bf16.mxu0 0
  %1606 = vmatpush1.bf16.msra.mxu0 0
  %1607 = vmatprep.subr.bf16.mxu0 0
  %1608 = vmatpush1.bf16.msra.mxu0 0
  %1609 = vmatprep.subr.bf16.mxu0 0
  %1610 = vmatpush1.bf16.msra.mxu0 0
  %1611 = vmatprep.subr.bf16.mxu0 %v1582
  %1612 = vmatpush1.bf16.msra.mxu0 %v1581
  %1613 = vmatprep.subr.bf16.mxu0 %v1580
  %1614 = vmatpush1.bf16.msra.mxu0 %v1579
  %1615 = vmatprep.subr.bf16.mxu0 0
  %1616 = vmatpush2.bf16.msra.mxu0 0
  %1617 = vmatprep.subr.bf16.mxu0 0
  %1618 = vmatpush2.bf16.msra.mxu0 0
  %1619 = vmatprep.subr.bf16.mxu0 0
  %1620 = vmatpush2.bf16.msra.mxu0 0
  %1621 = vmatprep.subr.bf16.mxu0 0
  %1622 = vmatpush2.bf16.msra.mxu0 0
  %1623 = vmatprep.subr.bf16.mxu0 0
  %1624 = vmatpush2.bf16.msra.mxu0 0
  %1625 = vmatprep.subr.bf16.mxu0 0
  %1626 = vmatpush2.bf16.msra.mxu0 0
  %1627 = vmatprep.subr.bf16.mxu0 0
  %1628 = vmatpush2.bf16.msra.mxu0 0
  %1629 = vmatprep.subr.bf16.mxu0 0
  %1630 = vmatpush2.bf16.msra.mxu0 0
  %1631 = vmatprep.mubr.bf16.mxu0 0
  %1632 = vmatmul.mubr.bf16.gmra.mxu0 %v1588
  %v1633 = vpop.f32.mrf.mxu0
  %v1634 = vadd.f32 0.0, %v1633
  %v1635 = vpop.f32.mrf.mxu0
  %v1636 = vadd.f32 0.0, %v1635
  %v1637 = vpop.f32.mrf.mxu0
  %v1638 = vadd.f32 0.0, %v1637
  %v1639 = vpop.f32.mrf.mxu0
  %v1640 = vadd.f32 0.0, %v1639
  %1641 = vmatprep.mubr.bf16.mxu0 0
  %1642 = vmatmul.mubr.bf16.gmra.mxu0 %v1591
  %v1643 = vpop.f32.mrf.mxu0
  %v1644 = vadd.f32 0.0, %v1643
  %v1645 = vpop.f32.mrf.mxu0
  %v1646 = vadd.f32 0.0, %v1645
  %v1647 = vpop.f32.mrf.mxu0
  %v1648 = vadd.f32 0.0, %v1647
  %v1649 = vpop.f32.mrf.mxu0
  %v1650 = vadd.f32 0.0, %v1649
  %1651 = vmatprep.mubr.bf16.mxu0 0
  %1652 = vmatmul.mubr.bf16.gmra.mxu0 %v1594
  %v1653 = vpop.f32.mrf.mxu0
  %v1654 = vadd.f32 0.0, %v1653
  %v1655 = vpop.f32.mrf.mxu0
  %v1656 = vadd.f32 0.0, %v1655
  %v1657 = vpop.f32.mrf.mxu0
  %v1658 = vadd.f32 0.0, %v1657
  %v1659 = vpop.f32.mrf.mxu0
  %v1660 = vadd.f32 0.0, %v1659
  %1661 = vmatprep.mubr.bf16.mxu0 0
  %1662 = vmatmul.mubr.bf16.gmra.mxu0 %v1597
  %v1663 = vpop.f32.mrf.mxu0
  %v1664 = vadd.f32 0.0, %v1663
  %v1665 = vpop.f32.mrf.mxu0
  %v1666 = vadd.f32 0.0, %v1665
  %v1667 = vpop.f32.mrf.mxu0
  %v1668 = vadd.f32 0.0, %v1667
  %v1669 = vpop.f32.mrf.mxu0
  %v1670 = vadd.f32 0.0, %v1669
  %1671 = vdwg.mxu0
  %v1672 = vadd.f32 %v1512, %v1634
  %v1673 = vadd.f32 %v1514, %v1636
  %v1674 = vadd.f32 %v1516, %v1638
  %v1675 = vadd.f32 %v1518, %v1640
  %v1676 = vadd.f32 %v1522, %v1644
  %v1677 = vadd.f32 %v1524, %v1646
  %v1678 = vadd.f32 %v1526, %v1648
  %v1679 = vadd.f32 %v1528, %v1650
  %v1680 = vadd.f32 %v1532, %v1654
  %v1681 = vadd.f32 %v1534, %v1656
  %v1682 = vadd.f32 %v1536, %v1658
  %v1683 = vadd.f32 %v1538, %v1660
  %v1684 = vadd.f32 %v1542, %v1664
  %v1685 = vadd.f32 %v1544, %v1666
  %v1686 = vadd.f32 %v1546, %v1668
  %v1687 = vadd.f32 %v1548, %v1670
  %v1688 = vld [vmem:[%s7] sm:$0x3]
  %v1690 = vlaneseq
  %v1691 = vshrl.u32 %v1690, 7
  %v1692 = vsub.s32 0, %v1691
  %v1693 = vrot.slane %v1688, %v1692
  %v1694 = vlaneseq
  %v1695 = vshrl.u32 %v1694, 7
  %v1696 = vsub.s32 1, %v1695
  %v1697 = vrot.slane %v1688, %v1696
  %v1700 = vadd.f32 %v1672, %v1693
  %v1701 = vadd.f32 %v1673, %v1697
  %v1702 = vadd.f32 %v1674, %v1693
  %v1703 = vadd.f32 %v1675, %v1697
  %v1704 = vadd.f32 %v1676, %v1693
  %v1705 = vadd.f32 %v1677, %v1697
  %v1706 = vadd.f32 %v1678, %v1693
  %v1707 = vadd.f32 %v1679, %v1697
  %v1708 = vadd.f32 %v1680, %v1693
  %v1709 = vadd.f32 %v1681, %v1697
  %v1710 = vadd.f32 %v1682, %v1693
  %v1711 = vadd.f32 %v1683, %v1697
  %v1712 = vadd.f32 %v1684, %v1693
  %v1713 = vadd.f32 %v1685, %v1697
  %v1714 = vadd.f32 %v1686, %v1693
  %v1715 = vadd.f32 %v1687, %v1697
  %v1716 = vmax.f32 %v1700, 0.0
  %v1717 = vmax.f32 %v1701, 0.0
  %v1718 = vmax.f32 %v1702, 0.0
  %v1719 = vmax.f32 %v1703, 0.0
  %v1720 = vmax.f32 %v1704, 0.0
  %v1721 = vmax.f32 %v1705, 0.0
  %v1722 = vmax.f32 %v1706, 0.0
  %v1723 = vmax.f32 %v1707, 0.0
  %v1724 = vmax.f32 %v1708, 0.0
  %v1725 = vmax.f32 %v1709, 0.0
  %v1726 = vmax.f32 %v1710, 0.0
  %v1727 = vmax.f32 %v1711, 0.0
  %v1728 = vmax.f32 %v1712, 0.0
  %v1729 = vmax.f32 %v1713, 0.0
  %v1730 = vmax.f32 %v1714, 0.0
  %v1731 = vmax.f32 %v1715, 0.0
  %s1732 = scalar_lea.vmem [#allocation4], 16
  %1733 = vst [vmem:[%s1732] sm:$0xff] %v1716
  %1734 = vst [vmem:[%s1732 + $0x8] sm:$0xff] %v1717
  %1735 = vst [vmem:[%s1732 + $0x10] sm:$0xff] %v1718
  %1736 = vst [vmem:[%s1732 + $0x18] sm:$0xff] %v1719
  %1737 = vst [vmem:[%s1732 + $0x20] sm:$0xff] %v1720
  %1738 = vst [vmem:[%s1732 + $0x28] sm:$0xff] %v1721
  %1739 = vst [vmem:[%s1732 + $0x30] sm:$0xff] %v1722
  %1740 = vst [vmem:[%s1732 + $0x38] sm:$0xff] %v1723
  %1741 = vst [vmem:[%s1732 + $0x40] sm:$0xff] %v1724
  %1742 = vst [vmem:[%s1732 + $0x48] sm:$0xff] %v1725
  %1743 = vst [vmem:[%s1732 + $0x50] sm:$0xff] %v1726
  %1744 = vst [vmem:[%s1732 + $0x58] sm:$0xff] %v1727
  %1745 = vst [vmem:[%s1732 + $0x60] sm:$0xff] %v1728
  %1746 = vst [vmem:[%s1732 + $0x68] sm:$0xff] %v1729
  %1747 = vst [vmem:[%s1732 + $0x70] sm:$0xff] %v1730
  %1748 = vst [vmem:[%s1732 + $0x78] sm:$0xff] %v1731
  %v1749 = vld [vmem:[#allocation4] sm:$0xff]
  %v1750 = vld [vmem:[#allocation4 + $0x8] sm:$0xff]
  %v1751 = vld [vmem:[#allocation4 + $0x10] sm:$0xff]
  %v1752 = vld [vmem:[#allocation4 + $0x18] sm:$0xff]
  %v1753 = vld [vmem:[#allocation4 + $0x20] sm:$0xff]
  %v1754 = vld [vmem:[#allocation4 + $0x28] sm:$0xff]
  %v1755 = vld [vmem:[#allocation4 + $0x30] sm:$0xff]
  %v1756 = vld [vmem:[#allocation4 + $0x38] sm:$0xff]
  %v1757 = vld [vmem:[#allocation4 + $0x40] sm:$0xff]
  %v1758 = vld [vmem:[#allocation4 + $0x48] sm:$0xff]
  %v1759 = vld [vmem:[#allocation4 + $0x50] sm:$0xff]
  %v1760 = vld [vmem:[#allocation4 + $0x58] sm:$0xff]
  %v1761 = vld [vmem:[#allocation4 + $0x60] sm:$0xff]
  %v1762 = vld [vmem:[#allocation4 + $0x68] sm:$0xff]
  %v1763 = vld [vmem:[#allocation4 + $0x70] sm:$0xff]
  %v1764 = vld [vmem:[#allocation4 + $0x78] sm:$0xff]
  %v1765 = vpack.c.bf16 %v1751, %v1749
  %v1766 = vpack.c.bf16 %v1752, %v1750
  %v1767 = vpack.c.bf16 %v1755, %v1753
  %v1768 = vpack.c.bf16 %v1756, %v1754
  %v1769 = vpack.c.bf16 %v1759, %v1757
  %v1770 = vpack.c.bf16 %v1760, %v1758
  %v1771 = vpack.c.bf16 %v1763, %v1761
  %v1772 = vpack.c.bf16 %v1764, %v1762
  %v1773 = vld [vmem:[%s8] sm:$0xff]
  %v1774 = vld [vmem:[%s8 + $0x8] sm:$0xff]
  %v1775 = vld [vmem:[%s8 + $0x10] sm:$0xff]
  %v1776 = vld [vmem:[%s8 + $0x18] sm:$0xff]
  %v1777 = vld [vmem:[%s8 + $0x20] sm:$0xff]
  %v1778 = vld [vmem:[%s8 + $0x28] sm:$0xff]
  %v1779 = vld [vmem:[%s8 + $0x30] sm:$0xff]
  %v1780 = vld [vmem:[%s8 + $0x38] sm:$0xff]
  %v1781 = vld [vmem:[%s8 + $0x40] sm:$0xff]
  %v1782 = vld [vmem:[%s8 + $0x48] sm:$0xff]
  %v1783 = vld [vmem:[%s8 + $0x50] sm:$0xff]
  %v1784 = vld [vmem:[%s8 + $0x58] sm:$0xff]
  %v1785 = vld [vmem:[%s8 + $0x60] sm:$0xff]
  %v1786 = vld [vmem:[%s8 + $0x68] sm:$0xff]
  %v1787 = vld [vmem:[%s8 + $0x70] sm:$0xff]
  %v1788 = vld [vmem:[%s8 + $0x78] sm:$0xff]
  %v1789 = vld [vmem:[%s8 + $0x80] sm:$0xff]
  %v1790 = vld [vmem:[%s8 + $0x88] sm:$0xff]
  %v1791 = vld [vmem:[%s8 + $0x90] sm:$0xff]
  %v1792 = vld [vmem:[%s8 + $0x98] sm:$0xff]
  %v1793 = vld [vmem:[%s8 + $0xa0] sm:$0xff]
  %v1794 = vld [vmem:[%s8 + $0xa8] sm:$0xff]
  %v1795 = vld [vmem:[%s8 + $0xb0] sm:$0xff]
  %v1796 = vld [vmem:[%s8 + $0xb8] sm:$0xff]
  %v1797 = vld [vmem:[%s8 + $0xc0] sm:$0xff]
  %v1798 = vld [vmem:[%s8 + $0xc8] sm:$0xff]
  %v1799 = vld [vmem:[%s8 + $0xd0] sm:$0xff]
  %v1800 = vld [vmem:[%s8 + $0xd8] sm:$0xff]
  %v1801 = vld [vmem:[%s8 + $0xe0] sm:$0xff]
  %v1802 = vld [vmem:[%s8 + $0xe8] sm:$0xff]
  %v1803 = vld [vmem:[%s8 + $0xf0] sm:$0xff]
  %v1804 = vld [vmem:[%s8 + $0xf8] sm:$0xff]
  %v1805 = vld [vmem:[%s1732] sm:$0xff]
  %v1806 = vld [vmem:[%s1732 + $0x8] sm:$0xff]
  %v1807 = vld [vmem:[%s1732 + $0x10] sm:$0xff]
  %v1808 = vld [vmem:[%s1732 + $0x18] sm:$0xff]
  %v1809 = vld [vmem:[%s1732 + $0x20] sm:$0xff]
  %v1810 = vld [vmem:[%s1732 + $0x28] sm:$0xff]
  %v1811 = vld [vmem:[%s1732 + $0x30] sm:$0xff]
  %v1812 = vld [vmem:[%s1732 + $0x38] sm:$0xff]
  %v1813 = vld [vmem:[%s1732 + $0x40] sm:$0xff]
  %v1814 = vld [vmem:[%s1732 + $0x48] sm:$0xff]
  %v1815 = vld [vmem:[%s1732 + $0x50] sm:$0xff]
  %v1816 = vld [vmem:[%s1732 + $0x58] sm:$0xff]
  %v1817 = vld [vmem:[%s1732 + $0x60] sm:$0xff]
  %v1818 = vld [vmem:[%s1732 + $0x68] sm:$0xff]
  %v1819 = vld [vmem:[%s1732 + $0x70] sm:$0xff]
  %v1820 = vld [vmem:[%s1732 + $0x78] sm:$0xff]
  %v1821 = vpack.c.bf16 %v1807, %v1805
  %v1822 = vpack.c.bf16 %v1808, %v1806
  %v1823 = vpack.c.bf16 %v1811, %v1809
  %v1824 = vpack.c.bf16 %v1812, %v1810
  %v1825 = vpack.c.bf16 %v1815, %v1813
  %v1826 = vpack.c.bf16 %v1816, %v1814
  %v1827 = vpack.c.bf16 %v1819, %v1817
  %v1828 = vpack.c.bf16 %v1820, %v1818
  %s1829 = scalar_lea.vmem %s8, 256
  %v1830 = vld [vmem:[%s1829] sm:$0xff]
  %v1831 = vld [vmem:[%s1829 + $0x8] sm:$0xff]
  %v1832 = vld [vmem:[%s1829 + $0x10] sm:$0xff]
  %v1833 = vld [vmem:[%s1829 + $0x18] sm:$0xff]
  %v1834 = vld [vmem:[%s1829 + $0x20] sm:$0xff]
  %v1835 = vld [vmem:[%s1829 + $0x28] sm:$0xff]
  %v1836 = vld [vmem:[%s1829 + $0x30] sm:$0xff]
  %v1837 = vld [vmem:[%s1829 + $0x38] sm:$0xff]
  %v1838 = vld [vmem:[%s1829 + $0x40] sm:$0xff]
  %v1839 = vld [vmem:[%s1829 + $0x48] sm:$0xff]
  %v1840 = vld [vmem:[%s1829 + $0x50] sm:$0xff]
  %v1841 = vld [vmem:[%s1829 + $0x58] sm:$0xff]
  %v1842 = vld [vmem:[%s1829 + $0x60] sm:$0xff]
  %v1843 = vld [vmem:[%s1829 + $0x68] sm:$0xff]
  %v1844 = vld [vmem:[%s1829 + $0x70] sm:$0xff]
  %v1845 = vld [vmem:[%s1829 + $0x78] sm:$0xff]
  %v1846 = vld [vmem:[%s1829 + $0x80] sm:$0xff]
  %v1847 = vld [vmem:[%s1829 + $0x88] sm:$0xff]
  %v1848 = vld [vmem:[%s1829 + $0x90] sm:$0xff]
  %v1849 = vld [vmem:[%s1829 + $0x98] sm:$0xff]
  %v1850 = vld [vmem:[%s1829 + $0xa0] sm:$0xff]
  %v1851 = vld [vmem:[%s1829 + $0xa8] sm:$0xff]
  %v1852 = vld [vmem:[%s1829 + $0xb0] sm:$0xff]
  %v1853 = vld [vmem:[%s1829 + $0xb8] sm:$0xff]
  %v1854 = vld [vmem:[%s1829 + $0xc0] sm:$0xff]
  %v1855 = vld [vmem:[%s1829 + $0xc8] sm:$0xff]
  %v1856 = vld [vmem:[%s1829 + $0xd0] sm:$0xff]
  %v1857 = vld [vmem:[%s1829 + $0xd8] sm:$0xff]
  %v1858 = vld [vmem:[%s1829 + $0xe0] sm:$0xff]
  %v1859 = vld [vmem:[%s1829 + $0xe8] sm:$0xff]
  %v1860 = vld [vmem:[%s1829 + $0xf0] sm:$0xff]
  %v1861 = vld [vmem:[%s1829 + $0xf8] sm:$0xff]
  %v1894 = vunpack.c.l.b16 %v1830
  %v1895 = vunpack.c.h.b16 %v1830
  %v1896 = vunpack.c.l.b16 %v1831
  %v1897 = vunpack.c.h.b16 %v1831
  %v1898 = vunpack.c.l.b16 %v1832
  %v1899 = vunpack.c.h.b16 %v1832
  %v1900 = vunpack.c.l.b16 %v1833
  %v1901 = vunpack.c.h.b16 %v1833
  %v1902 = vunpack.c.l.b16 %v1834
  %v1903 = vunpack.c.h.b16 %v1834
  %v1904 = vunpack.c.l.b16 %v1835
  %v1905 = vunpack.c.h.b16 %v1835
  %v1906 = vunpack.c.l.b16 %v1836
  %v1907 = vunpack.c.h.b16 %v1836
  %v1908 = vunpack.c.l.b16 %v1837
  %v1909 = vunpack.c.h.b16 %v1837
  %v1910 = vunpack.c.l.b16 %v1838
  %v1911 = vunpack.c.h.b16 %v1838
  %v1912 = vunpack.c.l.b16 %v1839
  %v1913 = vunpack.c.h.b16 %v1839
  %v1914 = vunpack.c.l.b16 %v1840
  %v1915 = vunpack.c.h.b16 %v1840
  %v1916 = vunpack.c.l.b16 %v1841
  %v1917 = vunpack.c.h.b16 %v1841
  %v1918 = vunpack.c.l.b16 %v1842
  %v1919 = vunpack.c.h.b16 %v1842
  %v1920 = vunpack.c.l.b16 %v1843
  %v1921 = vunpack.c.h.b16 %v1843
  %v1922 = vunpack.c.l.b16 %v1844
  %v1923 = vunpack.c.h.b16 %v1844
  %v1924 = vunpack.c.l.b16 %v1845
  %v1925 = vunpack.c.h.b16 %v1845
  %v1926 = vunpack.c.l.b16 %v1846
  %v1927 = vunpack.c.h.b16 %v1846
  %v1928 = vunpack.c.l.b16 %v1847
  %v1929 = vunpack.c.h.b16 %v1847
  %v1930 = vunpack.c.l.b16 %v1848
  %v1931 = vunpack.c.h.b16 %v1848
  %v1932 = vunpack.c.l.b16 %v1849
  %v1933 = vunpack.c.h.b16 %v1849
  %v1934 = vunpack.c.l.b16 %v1850
  %v1935 = vunpack.c.h.b16 %v1850
  %v1936 = vunpack.c.l.b16 %v1851
  %v1937 = vunpack.c.h.b16 %v1851
  %v1938 = vunpack.c.l.b16 %v1852
  %v1939 = vunpack.c.h.b16 %v1852
  %v1940 = vunpack.c.l.b16 %v1853
  %v1941 = vunpack.c.h.b16 %v1853
  %v1942 = vunpack.c.l.b16 %v1854
  %v1943 = vunpack.c.h.b16 %v1854
  %v1944 = vunpack.c.l.b16 %v1855
  %v1945 = vunpack.c.h.b16 %v1855
  %v1946 = vunpack.c.l.b16 %v1856
  %v1947 = vunpack.c.h.b16 %v1856
  %v1948 = vunpack.c.l.b16 %v1857
  %v1949 = vunpack.c.h.b16 %v1857
  %v1950 = vunpack.c.l.b16 %v1858
  %v1951 = vunpack.c.h.b16 %v1858
  %v1952 = vunpack.c.l.b16 %v1859
  %v1953 = vunpack.c.h.b16 %v1859
  %v1954 = vunpack.c.l.b16 %v1860
  %v1955 = vunpack.c.h.b16 %v1860
  %v1956 = vunpack.c.l.b16 %v1861
  %v1957 = vunpack.c.h.b16 %v1861
  %v1958 = vpack.c.b16 %v1896, %v1894
  %v1959 = vpack.c.b16 %v1897, %v1895
  %v1960 = vpack.c.b16 %v1900, %v1898
  %v1961 = vpack.c.b16 %v1901, %v1899
  %v1962 = vpack.c.b16 %v1904, %v1902
  %v1963 = vpack.c.b16 %v1905, %v1903
  %v1964 = vpack.c.b16 %v1908, %v1906
  %v1965 = vpack.c.b16 %v1909, %v1907
  %v1966 = vpack.c.b16 %v1912, %v1910
  %v1967 = vpack.c.b16 %v1913, %v1911
  %v1968 = vpack.c.b16 %v1916, %v1914
  %v1969 = vpack.c.b16 %v1917, %v1915
  %v1970 = vpack.c.b16 %v1920, %v1918
  %v1971 = vpack.c.b16 %v1921, %v1919
  %v1972 = vpack.c.b16 %v1924, %v1922
  %v1973 = vpack.c.b16 %v1925, %v1923
  %v1974 = vpack.c.b16 %v1928, %v1926
  %v1975 = vpack.c.b16 %v1929, %v1927
  %v1976 = vpack.c.b16 %v1932, %v1930
  %v1977 = vpack.c.b16 %v1933, %v1931
  %v1978 = vpack.c.b16 %v1936, %v1934
  %v1979 = vpack.c.b16 %v1937, %v1935
  %v1980 = vpack.c.b16 %v1940, %v1938
  %v1981 = vpack.c.b16 %v1941, %v1939
  %v1982 = vpack.c.b16 %v1944, %v1942
  %v1983 = vpack.c.b16 %v1945, %v1943
  %v1984 = vpack.c.b16 %v1948, %v1946
  %v1985 = vpack.c.b16 %v1949, %v1947
  %v1986 = vpack.c.b16 %v1952, %v1950
  %v1987 = vpack.c.b16 %v1953, %v1951
  %v1988 = vpack.c.b16 %v1956, %v1954
  %v1989 = vpack.c.b16 %v1957, %v1955
  %2022 = vmatprep.subr.bf16.mxu0 %v1973
  %2023 = vmatpush1.bf16.msra.mxu0 %v1972
  %2024 = vmatprep.subr.bf16.mxu0 %v1971
  %2025 = vmatpush1.bf16.msra.mxu0 %v1970
  %2026 = vmatprep.subr.bf16.mxu0 %v1969
  %2027 = vmatpush1.bf16.msra.mxu0 %v1968
  %2028 = vmatprep.subr.bf16.mxu0 %v1967
  %2029 = vmatpush1.bf16.msra.mxu0 %v1966
  %2030 = vmatprep.subr.bf16.mxu0 %v1965
  %2031 = vmatpush1.bf16.msra.mxu0 %v1964
  %2032 = vmatprep.subr.bf16.mxu0 %v1963
  %2033 = vmatpush1.bf16.msra.mxu0 %v1962
  %2034 = vmatprep.subr.bf16.mxu0 %v1961
  %2035 = vmatpush1.bf16.msra.mxu0 %v1960
  %2036 = vmatprep.subr.bf16.mxu0 %v1959
  %2037 = vmatpush1.bf16.msra.mxu0 %v1958
  %2038 = vmatprep.subr.bf16.mxu0 %v1989
  %2039 = vmatpush2.bf16.msra.mxu0 %v1988
  %2040 = vmatprep.subr.bf16.mxu0 %v1987
  %2041 = vmatpush2.bf16.msra.mxu0 %v1986
  %2042 = vmatprep.subr.bf16.mxu0 %v1985
  %2043 = vmatpush2.bf16.msra.mxu0 %v1984
  %2044 = vmatprep.subr.bf16.mxu0 %v1983
  %2045 = vmatpush2.bf16.msra.mxu0 %v1982
  %2046 = vmatprep.subr.bf16.mxu0 %v1981
  %2047 = vmatpush2.bf16.msra.mxu0 %v1980
  %2048 = vmatprep.subr.bf16.mxu0 %v1979
  %2049 = vmatpush2.bf16.msra.mxu0 %v1978
  %2050 = vmatprep.subr.bf16.mxu0 %v1977
  %2051 = vmatpush2.bf16.msra.mxu0 %v1976
  %2052 = vmatprep.subr.bf16.mxu0 %v1975
  %2053 = vmatpush2.bf16.msra.mxu0 %v1974
  %2054 = vmatprep.mubr.bf16.mxu0 %v1822
  %2055 = vmatmul.mubr.bf16.gmra.mxu0 %v1821
  %v2056 = vpop.f32.mrf.mxu0
  %v2057 = vadd.f32 0.0, %v2056
  %v2058 = vpop.f32.mrf.mxu0
  %v2059 = vadd.f32 0.0, %v2058
  %v2060 = vpop.f32.mrf.mxu0
  %v2061 = vadd.f32 0.0, %v2060
  %v2062 = vpop.f32.mrf.mxu0
  %v2063 = vadd.f32 0.0, %v2062
  %2064 = vmatprep.mubr.bf16.mxu0 %v1824
  %2065 = vmatmul.mubr.bf16.gmra.mxu0 %v1823
  %v2066 = vpop.f32.mrf.mxu0
  %v2067 = vadd.f32 0.0, %v2066
  %v2068 = vpop.f32.mrf.mxu0
  %v2069 = vadd.f32 0.0, %v2068
  %v2070 = vpop.f32.mrf.mxu0
  %v2071 = vadd.f32 0.0, %v2070
  %v2072 = vpop.f32.mrf.mxu0
  %v2073 = vadd.f32 0.0, %v2072
  %2074 = vmatprep.mubr.bf16.mxu0 %v1826
  %2075 = vmatmul.mubr.bf16.gmra.mxu0 %v1825
  %v2076 = vpop.f32.mrf.mxu0
  %v2077 = vadd.f32 0.0, %v2076
  %v2078 = vpop.f32.mrf.mxu0
  %v2079 = vadd.f32 0.0, %v2078
  %v2080 = vpop.f32.mrf.mxu0
  %v2081 = vadd.f32 0.0, %v2080
  %v2082 = vpop.f32.mrf.mxu0
  %v2083 = vadd.f32 0.0, %v2082
  %2084 = vmatprep.mubr.bf16.mxu0 %v1828
  %2085 = vmatmul.mubr.bf16.gmra.mxu0 %v1827
  %v2086 = vpop.f32.mrf.mxu0
  %v2087 = vadd.f32 0.0, %v2086
  %v2088 = vpop.f32.mrf.mxu0
  %v2089 = vadd.f32 0.0, %v2088
  %v2090 = vpop.f32.mrf.mxu0
  %v2091 = vadd.f32 0.0, %v2090
  %v2092 = vpop.f32.mrf.mxu0
  %v2093 = vadd.f32 0.0, %v2092
  %2094 = vdwg.mxu0
  %v2127 = vunpack.c.l.b16 %v1773
  %v2128 = vunpack.c.h.b16 %v1773
  %v2129 = vunpack.c.l.b16 %v1774
  %v2130 = vunpack.c.h.b16 %v1774
  %v2131 = vunpack.c.l.b16 %v1775
  %v2132 = vunpack.c.h.b16 %v1775
  %v2133 = vunpack.c.l.b16 %v1776
  %v2134 = vunpack.c.h.b16 %v1776
  %v2135 = vunpack.c.l.b16 %v1777
  %v2136 = vunpack.c.h.b16 %v1777
  %v2137 = vunpack.c.l.b16 %v1778
  %v2138 = vunpack.c.h.b16 %v1778
  %v2139 = vunpack.c.l.b16 %v1779
  %v2140 = vunpack.c.h.b16 %v1779
  %v2141 = vunpack.c.l.b16 %v1780
  %v2142 = vunpack.c.h.b16 %v1780
  %v2143 = vunpack.c.l.b16 %v1781
  %v2144 = vunpack.c.h.b16 %v1781
  %v2145 = vunpack.c.l.b16 %v1782
  %v2146 = vunpack.c.h.b16 %v1782
  %v2147 = vunpack.c.l.b16 %v1783
  %v2148 = vunpack.c.h.b16 %v1783
  %v2149 = vunpack.c.l.b16 %v1784
  %v2150 = vunpack.c.h.b16 %v1784
  %v2151 = vunpack.c.l.b16 %v1785
  %v2152 = vunpack.c.h.b16 %v1785
  %v2153 = vunpack.c.l.b16 %v1786
  %v2154 = vunpack.c.h.b16 %v1786
  %v2155 = vunpack.c.l.b16 %v1787
  %v2156 = vunpack.c.h.b16 %v1787
  %v2157 = vunpack.c.l.b16 %v1788
  %v2158 = vunpack.c.h.b16 %v1788
  %v2159 = vunpack.c.l.b16 %v1789
  %v2160 = vunpack.c.h.b16 %v1789
  %v2161 = vunpack.c.l.b16 %v1790
  %v2162 = vunpack.c.h.b16 %v1790
  %v2163 = vunpack.c.l.b16 %v1791
  %v2164 = vunpack.c.h.b16 %v1791
  %v2165 = vunpack.c.l.b16 %v1792
  %v2166 = vunpack.c.h.b16 %v1792
  %v2167 = vunpack.c.l.b16 %v1793
  %v2168 = vunpack.c.h.b16 %v1793
  %v2169 = vunpack.c.l.b16 %v1794
  %v2170 = vunpack.c.h.b16 %v1794
  %v2171 = vunpack.c.l.b16 %v1795
  %v2172 = vunpack.c.h.b16 %v1795
  %v2173 = vunpack.c.l.b16 %v1796
  %v2174 = vunpack.c.h.b16 %v1796
  %v2175 = vunpack.c.l.b16 %v1797
  %v2176 = vunpack.c.h.b16 %v1797
  %v2177 = vunpack.c.l.b16 %v1798
  %v2178 = vunpack.c.h.b16 %v1798
  %v2179 = vunpack.c.l.b16 %v1799
  %v2180 = vunpack.c.h.b16 %v1799
  %v2181 = vunpack.c.l.b16 %v1800
  %v2182 = vunpack.c.h.b16 %v1800
  %v2183 = vunpack.c.l.b16 %v1801
  %v2184 = vunpack.c.h.b16 %v1801
  %v2185 = vunpack.c.l.b16 %v1802
  %v2186 = vunpack.c.h.b16 %v1802
  %v2187 = vunpack.c.l.b16 %v1803
  %v2188 = vunpack.c.h.b16 %v1803
  %v2189 = vunpack.c.l.b16 %v1804
  %v2190 = vunpack.c.h.b16 %v1804
  %v2191 = vpack.c.b16 %v2129, %v2127
  %v2192 = vpack.c.b16 %v2130, %v2128
  %v2193 = vpack.c.b16 %v2133, %v2131
  %v2194 = vpack.c.b16 %v2134, %v2132
  %v2195 = vpack.c.b16 %v2137, %v2135
  %v2196 = vpack.c.b16 %v2138, %v2136
  %v2197 = vpack.c.b16 %v2141, %v2139
  %v2198 = vpack.c.b16 %v2142, %v2140
  %v2199 = vpack.c.b16 %v2145, %v2143
  %v2200 = vpack.c.b16 %v2146, %v2144
  %v2201 = vpack.c.b16 %v2149, %v2147
  %v2202 = vpack.c.b16 %v2150, %v2148
  %v2203 = vpack.c.b16 %v2153, %v2151
  %v2204 = vpack.c.b16 %v2154, %v2152
  %v2205 = vpack.c.b16 %v2157, %v2155
  %v2206 = vpack.c.b16 %v2158, %v2156
  %v2207 = vpack.c.b16 %v2161, %v2159
  %v2208 = vpack.c.b16 %v2162, %v2160
  %v2209 = vpack.c.b16 %v2165, %v2163
  %v2210 = vpack.c.b16 %v2166, %v2164
  %v2211 = vpack.c.b16 %v2169, %v2167
  %v2212 = vpack.c.b16 %v2170, %v2168
  %v2213 = vpack.c.b16 %v2173, %v2171
  %v2214 = vpack.c.b16 %v2174, %v2172
  %v2215 = vpack.c.b16 %v2177, %v2175
  %v2216 = vpack.c.b16 %v2178, %v2176
  %v2217 = vpack.c.b16 %v2181, %v2179
  %v2218 = vpack.c.b16 %v2182, %v2180
  %v2219 = vpack.c.b16 %v2185, %v2183
  %v2220 = vpack.c.b16 %v2186, %v2184
  %v2221 = vpack.c.b16 %v2189, %v2187
  %v2222 = vpack.c.b16 %v2190, %v2188
  %2255 = vmatprep.subr.bf16.mxu0 %v2206
  %2256 = vmatpush1.bf16.msra.mxu0 %v2205
  %2257 = vmatprep.subr.bf16.mxu0 %v2204
  %2258 = vmatpush1.bf16.msra.mxu0 %v2203
  %2259 = vmatprep.subr.bf16.mxu0 %v2202
  %2260 = vmatpush1.bf16.msra.mxu0 %v2201
  %2261 = vmatprep.subr.bf16.mxu0 %v2200
  %2262 = vmatpush1.bf16.msra.mxu0 %v2199
  %2263 = vmatprep.subr.bf16.mxu0 %v2198
  %2264 = vmatpush1.bf16.msra.mxu0 %v2197
  %2265 = vmatprep.subr.bf16.mxu0 %v2196
  %2266 = vmatpush1.bf16.msra.mxu0 %v2195
  %2267 = vmatprep.subr.bf16.mxu0 %v2194
  %2268 = vmatpush1.bf16.msra.mxu0 %v2193
  %2269 = vmatprep.subr.bf16.mxu0 %v2192
  %2270 = vmatpush1.bf16.msra.mxu0 %v2191
  %2271 = vmatprep.subr.bf16.mxu0 %v2222
  %2272 = vmatpush2.bf16.msra.mxu0 %v2221
  %2273 = vmatprep.subr.bf16.mxu0 %v2220
  %2274 = vmatpush2.bf16.msra.mxu0 %v2219
  %2275 = vmatprep.subr.bf16.mxu0 %v2218
  %2276 = vmatpush2.bf16.msra.mxu0 %v2217
  %2277 = vmatprep.subr.bf16.mxu0 %v2216
  %2278 = vmatpush2.bf16.msra.mxu0 %v2215
  %2279 = vmatprep.subr.bf16.mxu0 %v2214
  %2280 = vmatpush2.bf16.msra.mxu0 %v2213
  %2281 = vmatprep.subr.bf16.mxu0 %v2212
  %2282 = vmatpush2.bf16.msra.mxu0 %v2211
  %2283 = vmatprep.subr.bf16.mxu0 %v2210
  %2284 = vmatpush2.bf16.msra.mxu0 %v2209
  %2285 = vmatprep.subr.bf16.mxu0 %v2208
  %2286 = vmatpush2.bf16.msra.mxu0 %v2207
  %2287 = vmatprep.mubr.bf16.mxu0 %v1766
  %2288 = vmatmul.mubr.bf16.gmra.mxu0 %v1765
  %v2289 = vpop.f32.mrf.mxu0
  %v2290 = vadd.f32 %v2057, %v2289
  %v2291 = vpop.f32.mrf.mxu0
  %v2292 = vadd.f32 %v2059, %v2291
  %v2293 = vpop.f32.mrf.mxu0
  %v2294 = vadd.f32 %v2061, %v2293
  %v2295 = vpop.f32.mrf.mxu0
  %v2296 = vadd.f32 %v2063, %v2295
  %2297 = vmatprep.mubr.bf16.mxu0 %v1768
  %2298 = vmatmul.mubr.bf16.gmra.mxu0 %v1767
  %v2299 = vpop.f32.mrf.mxu0
  %v2300 = vadd.f32 %v2067, %v2299
  %v2301 = vpop.f32.mrf.mxu0
  %v2302 = vadd.f32 %v2069, %v2301
  %v2303 = vpop.f32.mrf.mxu0
  %v2304 = vadd.f32 %v2071, %v2303
  %v2305 = vpop.f32.mrf.mxu0
  %v2306 = vadd.f32 %v2073, %v2305
  %2307 = vmatprep.mubr.bf16.mxu0 %v1770
  %2308 = vmatmul.mubr.bf16.gmra.mxu0 %v1769
  %v2309 = vpop.f32.mrf.mxu0
  %v2310 = vadd.f32 %v2077, %v2309
  %v2311 = vpop.f32.mrf.mxu0
  %v2312 = vadd.f32 %v2079, %v2311
  %v2313 = vpop.f32.mrf.mxu0
  %v2314 = vadd.f32 %v2081, %v2313
  %v2315 = vpop.f32.mrf.mxu0
  %v2316 = vadd.f32 %v2083, %v2315
  %2317 = vmatprep.mubr.bf16.mxu0 %v1772
  %2318 = vmatmul.mubr.bf16.gmra.mxu0 %v1771
  %v2319 = vpop.f32.mrf.mxu0
  %v2320 = vadd.f32 %v2087, %v2319
  %v2321 = vpop.f32.mrf.mxu0
  %v2322 = vadd.f32 %v2089, %v2321
  %v2323 = vpop.f32.mrf.mxu0
  %v2324 = vadd.f32 %v2091, %v2323
  %v2325 = vpop.f32.mrf.mxu0
  %v2326 = vadd.f32 %v2093, %v2325
  %2327 = vdwg.mxu0
  %s2328 = scalar_lea.vmem [#allocation4], 32
  %v2329 = vld [vmem:[%s2328] sm:$0xff]
  %v2330 = vld [vmem:[%s2328 + $0x8] sm:$0xff]
  %v2331 = vld [vmem:[%s2328 + $0x10] sm:$0xff]
  %v2332 = vld [vmem:[%s2328 + $0x18] sm:$0xff]
  %v2333 = vld [vmem:[%s2328 + $0x20] sm:$0xff]
  %v2334 = vld [vmem:[%s2328 + $0x28] sm:$0xff]
  %v2335 = vld [vmem:[%s2328 + $0x30] sm:$0xff]
  %v2336 = vld [vmem:[%s2328 + $0x38] sm:$0xff]
  %v2337 = vld [vmem:[%s2328 + $0x40] sm:$0xff]
  %v2338 = vld [vmem:[%s2328 + $0x48] sm:$0xff]
  %v2339 = vld [vmem:[%s2328 + $0x50] sm:$0xff]
  %v2340 = vld [vmem:[%s2328 + $0x58] sm:$0xff]
  %v2341 = vld [vmem:[%s2328 + $0x60] sm:$0xff]
  %v2342 = vld [vmem:[%s2328 + $0x68] sm:$0xff]
  %v2343 = vld [vmem:[%s2328 + $0x70] sm:$0xff]
  %v2344 = vld [vmem:[%s2328 + $0x78] sm:$0xff]
  %v2345 = vpack.c.bf16 %v2331, %v2329
  %v2346 = vpack.c.bf16 %v2332, %v2330
  %v2347 = vpack.c.bf16 %v2335, %v2333
  %v2348 = vpack.c.bf16 %v2336, %v2334
  %v2349 = vpack.c.bf16 %v2339, %v2337
  %v2350 = vpack.c.bf16 %v2340, %v2338
  %v2351 = vpack.c.bf16 %v2343, %v2341
  %v2352 = vpack.c.bf16 %v2344, %v2342
  %s2353 = scalar_lea.vmem %s8, 512
  %v2354 = vld [vmem:[%s2353] sm:$0xff]
  %v2355 = vld [vmem:[%s2353 + $0x8] sm:$0xff]
  %v2356 = vld [vmem:[%s2353 + $0x10] sm:$0xff]
  %v2357 = vld [vmem:[%s2353 + $0x18] sm:$0xff]
  %v2358 = vld [vmem:[%s2353 + $0x20] sm:$0xff]
  %v2359 = vld [vmem:[%s2353 + $0x28] sm:$0xff]
  %v2360 = vld [vmem:[%s2353 + $0x30] sm:$0xff]
  %v2361 = vld [vmem:[%s2353 + $0x38] sm:$0xff]
  %v2362 = vld [vmem:[%s2353 + $0x40] sm:$0xff]
  %v2363 = vld [vmem:[%s2353 + $0x48] sm:$0xff]
  %v2364 = vld [vmem:[%s2353 + $0x50] sm:$0xff]
  %v2365 = vld [vmem:[%s2353 + $0x58] sm:$0xff]
  %v2366 = vld [vmem:[%s2353 + $0x60] sm:$0xff]
  %v2367 = vld [vmem:[%s2353 + $0x68] sm:$0xff]
  %v2368 = vld [vmem:[%s2353 + $0x70] sm:$0xff]
  %v2369 = vld [vmem:[%s2353 + $0x78] sm:$0xff]
  %v2370 = vld [vmem:[%s2353 + $0x80] sm:$0xff]
  %v2371 = vld [vmem:[%s2353 + $0x88] sm:$0xff]
  %v2372 = vld [vmem:[%s2353 + $0x90] sm:$0xff]
  %v2373 = vld [vmem:[%s2353 + $0x98] sm:$0xff]
  %v2374 = vld [vmem:[%s2353 + $0xa0] sm:$0xff]
  %v2375 = vld [vmem:[%s2353 + $0xa8] sm:$0xff]
  %v2376 = vld [vmem:[%s2353 + $0xb0] sm:$0xff]
  %v2377 = vld [vmem:[%s2353 + $0xb8] sm:$0xff]
  %v2378 = vld [vmem:[%s2353 + $0xc0] sm:$0xff]
  %v2379 = vld [vmem:[%s2353 + $0xc8] sm:$0xff]
  %v2380 = vld [vmem:[%s2353 + $0xd0] sm:$0xff]
  %v2381 = vld [vmem:[%s2353 + $0xd8] sm:$0xff]
  %v2382 = vld [vmem:[%s2353 + $0xe0] sm:$0xff]
  %v2383 = vld [vmem:[%s2353 + $0xe8] sm:$0xff]
  %v2384 = vld [vmem:[%s2353 + $0xf0] sm:$0xff]
  %v2385 = vld [vmem:[%s2353 + $0xf8] sm:$0xff]
  %v2418 = vunpack.c.l.b16 %v2354
  %v2419 = vunpack.c.h.b16 %v2354
  %v2420 = vunpack.c.l.b16 %v2355
  %v2421 = vunpack.c.h.b16 %v2355
  %v2422 = vunpack.c.l.b16 %v2356
  %v2423 = vunpack.c.h.b16 %v2356
  %v2424 = vunpack.c.l.b16 %v2357
  %v2425 = vunpack.c.h.b16 %v2357
  %v2426 = vunpack.c.l.b16 %v2358
  %v2427 = vunpack.c.h.b16 %v2358
  %v2428 = vunpack.c.l.b16 %v2359
  %v2429 = vunpack.c.h.b16 %v2359
  %v2430 = vunpack.c.l.b16 %v2360
  %v2431 = vunpack.c.h.b16 %v2360
  %v2432 = vunpack.c.l.b16 %v2361
  %v2433 = vunpack.c.h.b16 %v2361
  %v2434 = vunpack.c.l.b16 %v2362
  %v2435 = vunpack.c.h.b16 %v2362
  %v2436 = vunpack.c.l.b16 %v2363
  %v2437 = vunpack.c.h.b16 %v2363
  %v2438 = vunpack.c.l.b16 %v2364
  %v2439 = vunpack.c.h.b16 %v2364
  %v2440 = vunpack.c.l.b16 %v2365
  %v2441 = vunpack.c.h.b16 %v2365
  %v2442 = vunpack.c.l.b16 %v2366
  %v2443 = vunpack.c.h.b16 %v2366
  %v2444 = vunpack.c.l.b16 %v2367
  %v2445 = vunpack.c.h.b16 %v2367
  %v2446 = vunpack.c.l.b16 %v2368
  %v2447 = vunpack.c.h.b16 %v2368
  %v2448 = vunpack.c.l.b16 %v2369
  %v2449 = vunpack.c.h.b16 %v2369
  %v2450 = vunpack.c.l.b16 %v2370
  %v2451 = vunpack.c.h.b16 %v2370
  %v2452 = vunpack.c.l.b16 %v2371
  %v2453 = vunpack.c.h.b16 %v2371
  %v2454 = vunpack.c.l.b16 %v2372
  %v2455 = vunpack.c.h.b16 %v2372
  %v2456 = vunpack.c.l.b16 %v2373
  %v2457 = vunpack.c.h.b16 %v2373
  %v2458 = vunpack.c.l.b16 %v2374
  %v2459 = vunpack.c.h.b16 %v2374
  %v2460 = vunpack.c.l.b16 %v2375
  %v2461 = vunpack.c.h.b16 %v2375
  %v2462 = vunpack.c.l.b16 %v2376
  %v2463 = vunpack.c.h.b16 %v2376
  %v2464 = vunpack.c.l.b16 %v2377
  %v2465 = vunpack.c.h.b16 %v2377
  %v2466 = vunpack.c.l.b16 %v2378
  %v2467 = vunpack.c.h.b16 %v2378
  %v2468 = vunpack.c.l.b16 %v2379
  %v2469 = vunpack.c.h.b16 %v2379
  %v2470 = vunpack.c.l.b16 %v2380
  %v2471 = vunpack.c.h.b16 %v2380
  %v2472 = vunpack.c.l.b16 %v2381
  %v2473 = vunpack.c.h.b16 %v2381
  %v2474 = vunpack.c.l.b16 %v2382
  %v2475 = vunpack.c.h.b16 %v2382
  %v2476 = vunpack.c.l.b16 %v2383
  %v2477 = vunpack.c.h.b16 %v2383
  %v2478 = vunpack.c.l.b16 %v2384
  %v2479 = vunpack.c.h.b16 %v2384
  %v2480 = vunpack.c.l.b16 %v2385
  %v2481 = vunpack.c.h.b16 %v2385
  %v2482 = vpack.c.b16 %v2420, %v2418
  %v2483 = vpack.c.b16 %v2421, %v2419
  %v2484 = vpack.c.b16 %v2424, %v2422
  %v2485 = vpack.c.b16 %v2425, %v2423
  %v2486 = vpack.c.b16 %v2428, %v2426
  %v2487 = vpack.c.b16 %v2429, %v2427
  %v2488 = vpack.c.b16 %v2432, %v2430
  %v2489 = vpack.c.b16 %v2433, %v2431
  %v2490 = vpack.c.b16 %v2436, %v2434
  %v2491 = vpack.c.b16 %v2437, %v2435
  %v2492 = vpack.c.b16 %v2440, %v2438
  %v2493 = vpack.c.b16 %v2441, %v2439
  %v2494 = vpack.c.b16 %v2444, %v2442
  %v2495 = vpack.c.b16 %v2445, %v2443
  %v2496 = vpack.c.b16 %v2448, %v2446
  %v2497 = vpack.c.b16 %v2449, %v2447
  %v2498 = vpack.c.b16 %v2452, %v2450
  %v2499 = vpack.c.b16 %v2453, %v2451
  %v2500 = vpack.c.b16 %v2456, %v2454
  %v2501 = vpack.c.b16 %v2457, %v2455
  %v2502 = vpack.c.b16 %v2460, %v2458
  %v2503 = vpack.c.b16 %v2461, %v2459
  %v2504 = vpack.c.b16 %v2464, %v2462
  %v2505 = vpack.c.b16 %v2465, %v2463
  %v2506 = vpack.c.b16 %v2468, %v2466
  %v2507 = vpack.c.b16 %v2469, %v2467
  %v2508 = vpack.c.b16 %v2472, %v2470
  %v2509 = vpack.c.b16 %v2473, %v2471
  %v2510 = vpack.c.b16 %v2476, %v2474
  %v2511 = vpack.c.b16 %v2477, %v2475
  %v2512 = vpack.c.b16 %v2480, %v2478
  %v2513 = vpack.c.b16 %v2481, %v2479
  %2546 = vmatprep.subr.bf16.mxu0 %v2497
  %2547 = vmatpush1.bf16.msra.mxu0 %v2496
  %2548 = vmatprep.subr.bf16.mxu0 %v2495
  %2549 = vmatpush1.bf16.msra.mxu0 %v2494
  %2550 = vmatprep.subr.bf16.mxu0 %v2493
  %2551 = vmatpush1.bf16.msra.mxu0 %v2492
  %2552 = vmatprep.subr.bf16.mxu0 %v2491
  %2553 = vmatpush1.bf16.msra.mxu0 %v2490
  %2554 = vmatprep.subr.bf16.mxu0 %v2489
  %2555 = vmatpush1.bf16.msra.mxu0 %v2488
  %2556 = vmatprep.subr.bf16.mxu0 %v2487
  %2557 = vmatpush1.bf16.msra.mxu0 %v2486
  %2558 = vmatprep.subr.bf16.mxu0 %v2485
  %2559 = vmatpush1.bf16.msra.mxu0 %v2484
  %2560 = vmatprep.subr.bf16.mxu0 %v2483
  %2561 = vmatpush1.bf16.msra.mxu0 %v2482
  %2562 = vmatprep.subr.bf16.mxu0 %v2513
  %2563 = vmatpush2.bf16.msra.mxu0 %v2512
  %2564 = vmatprep.subr.bf16.mxu0 %v2511
  %2565 = vmatpush2.bf16.msra.mxu0 %v2510
  %2566 = vmatprep.subr.bf16.mxu0 %v2509
  %2567 = vmatpush2.bf16.msra.mxu0 %v2508
  %2568 = vmatprep.subr.bf16.mxu0 %v2507
  %2569 = vmatpush2.bf16.msra.mxu0 %v2506
  %2570 = vmatprep.subr.bf16.mxu0 %v2505
  %2571 = vmatpush2.bf16.msra.mxu0 %v2504
  %2572 = vmatprep.subr.bf16.mxu0 %v2503
  %2573 = vmatpush2.bf16.msra.mxu0 %v2502
  %2574 = vmatprep.subr.bf16.mxu0 %v2501
  %2575 = vmatpush2.bf16.msra.mxu0 %v2500
  %2576 = vmatprep.subr.bf16.mxu0 %v2499
  %2577 = vmatpush2.bf16.msra.mxu0 %v2498
  %2578 = vmatprep.mubr.bf16.mxu0 %v2346
  %2579 = vmatmul.mubr.bf16.gmra.mxu0 %v2345
  %v2580 = vpop.f32.mrf.mxu0
  %v2581 = vadd.f32 0.0, %v2580
  %v2582 = vpop.f32.mrf.mxu0
  %v2583 = vadd.f32 0.0, %v2582
  %v2584 = vpop.f32.mrf.mxu0
  %v2585 = vadd.f32 0.0, %v2584
  %v2586 = vpop.f32.mrf.mxu0
  %v2587 = vadd.f32 0.0, %v2586
  %2588 = vmatprep.mubr.bf16.mxu0 %v2348
  %2589 = vmatmul.mubr.bf16.gmra.mxu0 %v2347
  %v2590 = vpop.f32.mrf.mxu0
  %v2591 = vadd.f32 0.0, %v2590
  %v2592 = vpop.f32.mrf.mxu0
  %v2593 = vadd.f32 0.0, %v2592
  %v2594 = vpop.f32.mrf.mxu0
  %v2595 = vadd.f32 0.0, %v2594
  %v2596 = vpop.f32.mrf.mxu0
  %v2597 = vadd.f32 0.0, %v2596
  %2598 = vmatprep.mubr.bf16.mxu0 %v2350
  %2599 = vmatmul.mubr.bf16.gmra.mxu0 %v2349
  %v2600 = vpop.f32.mrf.mxu0
  %v2601 = vadd.f32 0.0, %v2600
  %v2602 = vpop.f32.mrf.mxu0
  %v2603 = vadd.f32 0.0, %v2602
  %v2604 = vpop.f32.mrf.mxu0
  %v2605 = vadd.f32 0.0, %v2604
  %v2606 = vpop.f32.mrf.mxu0
  %v2607 = vadd.f32 0.0, %v2606
  %2608 = vmatprep.mubr.bf16.mxu0 %v2352
  %2609 = vmatmul.mubr.bf16.gmra.mxu0 %v2351
  %v2610 = vpop.f32.mrf.mxu0
  %v2611 = vadd.f32 0.0, %v2610
  %v2612 = vpop.f32.mrf.mxu0
  %v2613 = vadd.f32 0.0, %v2612
  %v2614 = vpop.f32.mrf.mxu0
  %v2615 = vadd.f32 0.0, %v2614
  %v2616 = vpop.f32.mrf.mxu0
  %v2617 = vadd.f32 0.0, %v2616
  %2618 = vdwg.mxu0
  %v2619 = vadd.f32 %v2290, %v2581
  %v2620 = vadd.f32 %v2292, %v2583
  %v2621 = vadd.f32 %v2294, %v2585
  %v2622 = vadd.f32 %v2296, %v2587
  %v2623 = vadd.f32 %v2300, %v2591
  %v2624 = vadd.f32 %v2302, %v2593
  %v2625 = vadd.f32 %v2304, %v2595
  %v2626 = vadd.f32 %v2306, %v2597
  %v2627 = vadd.f32 %v2310, %v2601
  %v2628 = vadd.f32 %v2312, %v2603
  %v2629 = vadd.f32 %v2314, %v2605
  %v2630 = vadd.f32 %v2316, %v2607
  %v2631 = vadd.f32 %v2320, %v2611
  %v2632 = vadd.f32 %v2322, %v2613
  %v2633 = vadd.f32 %v2324, %v2615
  %v2634 = vadd.f32 %v2326, %v2617
  %v2635 = vld [vmem:[%s480] sm:$0xff]
  %v2636 = vld [vmem:[%s480 + $0x8] sm:$0xff]
  %v2637 = vld [vmem:[%s480 + $0x10] sm:$0xff]
  %v2638 = vld [vmem:[%s480 + $0x18] sm:$0xff]
  %v2639 = vld [vmem:[%s480 + $0x20] sm:$0xff]
  %v2640 = vld [vmem:[%s480 + $0x28] sm:$0xff]
  %v2641 = vld [vmem:[%s480 + $0x30] sm:$0xff]
  %v2642 = vld [vmem:[%s480 + $0x38] sm:$0xff]
  %v2643 = vpack.c.bf16 %v2636, %v2635
  %v2644 = vpack.c.bf16 %v2638, %v2637
  %v2645 = vpack.c.bf16 %v2640, %v2639
  %v2646 = vpack.c.bf16 %v2642, %v2641
  %v2647 = vld [vmem:[%s10] sm:$0xff]
  %v2648 = vld [vmem:[%s10 + $0x8] sm:$0xff]
  %v2649 = vld [vmem:[%s10 + $0x10] sm:$0xff]
  %v2650 = vld [vmem:[%s10 + $0x18] sm:$0xff]
  %v2651 = vld [vmem:[%s11] sm:$0x3]
  %v2653 = vlaneseq
  %v2654 = vshrl.u32 %v2653, 7
  %v2655 = vsub.s32 0, %v2654
  %v2656 = vrot.slane %v2651, %v2655
  %v2657 = vlaneseq
  %v2658 = vshrl.u32 %v2657, 7
  %v2659 = vsub.s32 1, %v2658
  %v2660 = vrot.slane %v2651, %v2659
  %v2667 = vunpack.c.l.b16 %v2647
  %v2668 = vunpack.c.h.b16 %v2647
  %v2669 = vunpack.c.l.b16 %v2648
  %v2670 = vunpack.c.h.b16 %v2648
  %v2671 = vunpack.c.l.b16 %v2649
  %v2672 = vunpack.c.h.b16 %v2649
  %v2673 = vunpack.c.l.b16 %v2650
  %v2674 = vunpack.c.h.b16 %v2650
  %v2675 = vpack.c.b16 %v2669, %v2667
  %v2676 = vpack.c.b16 %v2670, %v2668
  %v2677 = vpack.c.b16 %v2673, %v2671
  %v2678 = vpack.c.b16 %v2674, %v2672
  %v2684 = vsel %vm48, %v2643, 0
  %v2687 = vsel %vm48, %v2644, 0
  %v2690 = vsel %vm48, %v2645, 0
  %v2693 = vsel %vm48, %v2646, 0
  %2695 = vmatprep.subr.bf16.mxu0 0
  %2696 = vmatpush1.bf16.msra.mxu0 0
  %2697 = vmatprep.subr.bf16.mxu0 0
  %2698 = vmatpush1.bf16.msra.mxu0 0
  %2699 = vmatprep.subr.bf16.mxu0 0
  %2700 = vmatpush1.bf16.msra.mxu0 0
  %2701 = vmatprep.subr.bf16.mxu0 0
  %2702 = vmatpush1.bf16.msra.mxu0 0
  %2703 = vmatprep.subr.bf16.mxu0 0
  %2704 = vmatpush1.bf16.msra.mxu0 0
  %2705 = vmatprep.subr.bf16.mxu0 0
  %2706 = vmatpush1.bf16.msra.mxu0 0
  %2707 = vmatprep.subr.bf16.mxu0 %v2678
  %2708 = vmatpush1.bf16.msra.mxu0 %v2677
  %2709 = vmatprep.subr.bf16.mxu0 %v2676
  %2710 = vmatpush1.bf16.msra.mxu0 %v2675
  %2711 = vmatprep.subr.bf16.mxu0 0
  %2712 = vmatpush2.bf16.msra.mxu0 0
  %2713 = vmatprep.subr.bf16.mxu0 0
  %2714 = vmatpush2.bf16.msra.mxu0 0
  %2715 = vmatprep.subr.bf16.mxu0 0
  %2716 = vmatpush2.bf16.msra.mxu0 0
  %2717 = vmatprep.subr.bf16.mxu0 0
  %2718 = vmatpush2.bf16.msra.mxu0 0
  %2719 = vmatprep.subr.bf16.mxu0 0
  %2720 = vmatpush2.bf16.msra.mxu0 0
  %2721 = vmatprep.subr.bf16.mxu0 0
  %2722 = vmatpush2.bf16.msra.mxu0 0
  %2723 = vmatprep.subr.bf16.mxu0 0
  %2724 = vmatpush2.bf16.msra.mxu0 0
  %2725 = vmatprep.subr.bf16.mxu0 0
  %2726 = vmatpush2.bf16.msra.mxu0 0
  %2727 = vmatprep.mubr.bf16.mxu0 0
  %2728 = vmatmul.mubr.bf16.gmra.mxu0 %v2684
  %v2729 = vpop.f32.mrf.mxu0
  %v2730 = vadd.f32 %v2656, %v2729
  %v2731 = vpop.f32.mrf.mxu0
  %v2732 = vadd.f32 %v2660, %v2731
  %v2733 = vpop.f32.mrf.mxu0
  %v2734 = vadd.f32 %v2656, %v2733
  %v2735 = vpop.f32.mrf.mxu0
  %v2736 = vadd.f32 %v2660, %v2735
  %2737 = vmatprep.mubr.bf16.mxu0 0
  %2738 = vmatmul.mubr.bf16.gmra.mxu0 %v2687
  %v2739 = vpop.f32.mrf.mxu0
  %v2740 = vadd.f32 %v2656, %v2739
  %v2741 = vpop.f32.mrf.mxu0
  %v2742 = vadd.f32 %v2660, %v2741
  %v2743 = vpop.f32.mrf.mxu0
  %v2744 = vadd.f32 %v2656, %v2743
  %v2745 = vpop.f32.mrf.mxu0
  %v2746 = vadd.f32 %v2660, %v2745
  %2747 = vmatprep.mubr.bf16.mxu0 0
  %2748 = vmatmul.mubr.bf16.gmra.mxu0 %v2690
  %v2749 = vpop.f32.mrf.mxu0
  %v2750 = vadd.f32 %v2656, %v2749
  %v2751 = vpop.f32.mrf.mxu0
  %v2752 = vadd.f32 %v2660, %v2751
  %v2753 = vpop.f32.mrf.mxu0
  %v2754 = vadd.f32 %v2656, %v2753
  %v2755 = vpop.f32.mrf.mxu0
  %v2756 = vadd.f32 %v2660, %v2755
  %2757 = vmatprep.mubr.bf16.mxu0 0
  %2758 = vmatmul.mubr.bf16.gmra.mxu0 %v2693
  %v2759 = vpop.f32.mrf.mxu0
  %v2760 = vadd.f32 %v2656, %v2759
  %v2761 = vpop.f32.mrf.mxu0
  %v2762 = vadd.f32 %v2660, %v2761
  %v2763 = vpop.f32.mrf.mxu0
  %v2764 = vadd.f32 %v2656, %v2763
  %v2765 = vpop.f32.mrf.mxu0
  %v2766 = vadd.f32 %v2660, %v2765
  %2767 = vdwg.mxu0
  %v2768 = vld [vmem:[%s9] sm:$0x3]
  %v2770 = vlaneseq
  %v2771 = vshrl.u32 %v2770, 7
  %v2772 = vsub.s32 0, %v2771
  %v2773 = vrot.slane %v2768, %v2772
  %v2774 = vlaneseq
  %v2775 = vshrl.u32 %v2774, 7
  %v2776 = vsub.s32 1, %v2775
  %v2777 = vrot.slane %v2768, %v2776
  %v2780 = vadd.f32 %v2619, %v2773
  %v2781 = vadd.f32 %v2620, %v2777
  %v2782 = vadd.f32 %v2621, %v2773
  %v2783 = vadd.f32 %v2622, %v2777
  %v2784 = vadd.f32 %v2623, %v2773
  %v2785 = vadd.f32 %v2624, %v2777
  %v2786 = vadd.f32 %v2625, %v2773
  %v2787 = vadd.f32 %v2626, %v2777
  %v2788 = vadd.f32 %v2627, %v2773
  %v2789 = vadd.f32 %v2628, %v2777
  %v2790 = vadd.f32 %v2629, %v2773
  %v2791 = vadd.f32 %v2630, %v2777
  %v2792 = vadd.f32 %v2631, %v2773
  %v2793 = vadd.f32 %v2632, %v2777
  %v2794 = vadd.f32 %v2633, %v2773
  %v2795 = vadd.f32 %v2634, %v2777
  %v2796 = vadd.f32 %v2780, %v2730
  %v2797 = vadd.f32 %v2781, %v2732
  %v2798 = vadd.f32 %v2782, %v2734
  %v2799 = vadd.f32 %v2783, %v2736
  %v2800 = vadd.f32 %v2784, %v2740
  %v2801 = vadd.f32 %v2785, %v2742
  %v2802 = vadd.f32 %v2786, %v2744
  %v2803 = vadd.f32 %v2787, %v2746
  %v2804 = vadd.f32 %v2788, %v2750
  %v2805 = vadd.f32 %v2789, %v2752
  %v2806 = vadd.f32 %v2790, %v2754
  %v2807 = vadd.f32 %v2791, %v2756
  %v2808 = vadd.f32 %v2792, %v2760
  %v2809 = vadd.f32 %v2793, %v2762
  %v2810 = vadd.f32 %v2794, %v2764
  %v2811 = vadd.f32 %v2795, %v2766
  %v2812 = vmax.f32 %v2796, 0.0
  %v2813 = vmax.f32 %v2797, 0.0
  %v2814 = vmax.f32 %v2798, 0.0
  %v2815 = vmax.f32 %v2799, 0.0
  %v2816 = vmax.f32 %v2800, 0.0
  %v2817 = vmax.f32 %v2801, 0.0
  %v2818 = vmax.f32 %v2802, 0.0
  %v2819 = vmax.f32 %v2803, 0.0
  %v2820 = vmax.f32 %v2804, 0.0
  %v2821 = vmax.f32 %v2805, 0.0
  %v2822 = vmax.f32 %v2806, 0.0
  %v2823 = vmax.f32 %v2807, 0.0
  %v2824 = vmax.f32 %v2808, 0.0
  %v2825 = vmax.f32 %v2809, 0.0
  %v2826 = vmax.f32 %v2810, 0.0
  %v2827 = vmax.f32 %v2811, 0.0
  %v2828 = vpack.c.bf16 %v2814, %v2812
  %v2829 = vpack.c.bf16 %v2815, %v2813
  %v2830 = vpack.c.bf16 %v2818, %v2816
  %v2831 = vpack.c.bf16 %v2819, %v2817
  %v2832 = vpack.c.bf16 %v2822, %v2820
  %v2833 = vpack.c.bf16 %v2823, %v2821
  %v2834 = vpack.c.bf16 %v2826, %v2824
  %v2835 = vpack.c.bf16 %v2827, %v2825
  %v2836 = vld [vmem:[%s12] sm:$0xf]
  %v2837 = vld [vmem:[%s12 + $0x4] sm:$0xf]
  %v2838 = vld [vmem:[%s12 + $0x8] sm:$0xf]
  %v2839 = vld [vmem:[%s12 + $0xc] sm:$0xf]
  %v2840 = vld [vmem:[%s12 + $0x10] sm:$0xf]
  %v2841 = vld [vmem:[%s12 + $0x14] sm:$0xf]
  %v2842 = vld [vmem:[%s12 + $0x18] sm:$0xf]
  %v2843 = vld [vmem:[%s12 + $0x1c] sm:$0xf]
  %v2844 = vld [vmem:[%s12 + $0x20] sm:$0xf]
  %v2845 = vld [vmem:[%s12 + $0x24] sm:$0xf]
  %v2846 = vld [vmem:[%s12 + $0x28] sm:$0xf]
  %v2847 = vld [vmem:[%s12 + $0x2c] sm:$0xf]
  %v2848 = vld [vmem:[%s12 + $0x30] sm:$0xf]
  %v2849 = vld [vmem:[%s12 + $0x34] sm:$0xf]
  %v2850 = vld [vmem:[%s12 + $0x38] sm:$0xf]
  %v2851 = vld [vmem:[%s12 + $0x3c] sm:$0xf]
  %v2852 = vld [vmem:[%s12 + $0x40] sm:$0xf]
  %v2853 = vld [vmem:[%s12 + $0x44] sm:$0xf]
  %v2854 = vld [vmem:[%s12 + $0x48] sm:$0xf]
  %v2855 = vld [vmem:[%s12 + $0x4c] sm:$0xf]
  %v2856 = vld [vmem:[%s12 + $0x50] sm:$0xf]
  %v2857 = vld [vmem:[%s12 + $0x54] sm:$0xf]
  %v2858 = vld [vmem:[%s12 + $0x58] sm:$0xf]
  %v2859 = vld [vmem:[%s12 + $0x5c] sm:$0xf]
  %v2860 = vld [vmem:[%s12 + $0x60] sm:$0xf]
  %v2861 = vld [vmem:[%s12 + $0x64] sm:$0xf]
  %v2862 = vld [vmem:[%s12 + $0x68] sm:$0xf]
  %v2863 = vld [vmem:[%s12 + $0x6c] sm:$0xf]
  %v2864 = vld [vmem:[%s12 + $0x70] sm:$0xf]
  %v2865 = vld [vmem:[%s12 + $0x74] sm:$0xf]
  %v2866 = vld [vmem:[%s12 + $0x78] sm:$0xf]
  %v2867 = vld [vmem:[%s12 + $0x7c] sm:$0xf]
  %v2900 = vunpack.c.l.b16 %v2836
  %v2901 = vunpack.c.l.b16 %v2837
  %v2902 = vunpack.c.l.b16 %v2838
  %v2903 = vunpack.c.l.b16 %v2839
  %v2904 = vunpack.c.l.b16 %v2840
  %v2905 = vunpack.c.l.b16 %v2841
  %v2906 = vunpack.c.l.b16 %v2842
  %v2907 = vunpack.c.l.b16 %v2843
  %v2908 = vunpack.c.l.b16 %v2844
  %v2909 = vunpack.c.l.b16 %v2845
  %v2910 = vunpack.c.l.b16 %v2846
  %v2911 = vunpack.c.l.b16 %v2847
  %v2912 = vunpack.c.l.b16 %v2848
  %v2913 = vunpack.c.l.b16 %v2849
  %v2914 = vunpack.c.l.b16 %v2850
  %v2915 = vunpack.c.l.b16 %v2851
  %v2916 = vunpack.c.l.b16 %v2852
  %v2917 = vunpack.c.l.b16 %v2853
  %v2918 = vunpack.c.l.b16 %v2854
  %v2919 = vunpack.c.l.b16 %v2855
  %v2920 = vunpack.c.l.b16 %v2856
  %v2921 = vunpack.c.l.b16 %v2857
  %v2922 = vunpack.c.l.b16 %v2858
  %v2923 = vunpack.c.l.b16 %v2859
  %v2924 = vunpack.c.l.b16 %v2860
  %v2925 = vunpack.c.l.b16 %v2861
  %v2926 = vunpack.c.l.b16 %v2862
  %v2927 = vunpack.c.l.b16 %v2863
  %v2928 = vunpack.c.l.b16 %v2864
  %v2929 = vunpack.c.l.b16 %v2865
  %v2930 = vunpack.c.l.b16 %v2866
  %v2931 = vunpack.c.l.b16 %v2867
  %v2932 = vpack.c.b16 %v2901, %v2900
  %v2933 = vpack.c.b16 %v2903, %v2902
  %v2934 = vpack.c.b16 %v2905, %v2904
  %v2935 = vpack.c.b16 %v2907, %v2906
  %v2936 = vpack.c.b16 %v2909, %v2908
  %v2937 = vpack.c.b16 %v2911, %v2910
  %v2938 = vpack.c.b16 %v2913, %v2912
  %v2939 = vpack.c.b16 %v2915, %v2914
  %v2940 = vpack.c.b16 %v2917, %v2916
  %v2941 = vpack.c.b16 %v2919, %v2918
  %v2942 = vpack.c.b16 %v2921, %v2920
  %v2943 = vpack.c.b16 %v2923, %v2922
  %v2944 = vpack.c.b16 %v2925, %v2924
  %v2945 = vpack.c.b16 %v2927, %v2926
  %v2946 = vpack.c.b16 %v2929, %v2928
  %v2947 = vpack.c.b16 %v2931, %v2930
  %2964 = vmatprep.subr.bf16.mxu0 0
  %2965 = vmatpush1.bf16.msra.mxu0 %v2939
  %2966 = vmatprep.subr.bf16.mxu0 0
  %2967 = vmatpush1.bf16.msra.mxu0 %v2938
  %2968 = vmatprep.subr.bf16.mxu0 0
  %2969 = vmatpush1.bf16.msra.mxu0 %v2937
  %2970 = vmatprep.subr.bf16.mxu0 0
  %2971 = vmatpush1.bf16.msra.mxu0 %v2936
  %2972 = vmatprep.subr.bf16.mxu0 0
  %2973 = vmatpush1.bf16.msra.mxu0 %v2935
  %2974 = vmatprep.subr.bf16.mxu0 0
  %2975 = vmatpush1.bf16.msra.mxu0 %v2934
  %2976 = vmatprep.subr.bf16.mxu0 0
  %2977 = vmatpush1.bf16.msra.mxu0 %v2933
  %2978 = vmatprep.subr.bf16.mxu0 0
  %2979 = vmatpush1.bf16.msra.mxu0 %v2932
  %2980 = vmatprep.subr.bf16.mxu0 0
  %2981 = vmatpush2.bf16.msra.mxu0 %v2947
  %2982 = vmatprep.subr.bf16.mxu0 0
  %2983 = vmatpush2.bf16.msra.mxu0 %v2946
  %2984 = vmatprep.subr.bf16.mxu0 0
  %2985 = vmatpush2.bf16.msra.mxu0 %v2945
  %2986 = vmatprep.subr.bf16.mxu0 0
  %2987 = vmatpush2.bf16.msra.mxu0 %v2944
  %2988 = vmatprep.subr.bf16.mxu0 0
  %2989 = vmatpush2.bf16.msra.mxu0 %v2943
  %2990 = vmatprep.subr.bf16.mxu0 0
  %2991 = vmatpush2.bf16.msra.mxu0 %v2942
  %2992 = vmatprep.subr.bf16.mxu0 0
  %2993 = vmatpush2.bf16.msra.mxu0 %v2941
  %2994 = vmatprep.subr.bf16.mxu0 0
  %2995 = vmatpush2.bf16.msra.mxu0 %v2940
  %2996 = vmatprep.mubr.bf16.mxu0 %v2829
  %2997 = vmatmul.mubr.bf16.gmra.mxu0 %v2828
  %v2998 = vpop.f32.mrf.mxu0
  %v2999 = vadd.f32 0.0, %v2998
  %v3000 = vpop.f32.mrf.mxu0
  %v3001 = vpop.f32.mrf.mxu0
  %v3002 = vadd.f32 0.0, %v3001
  %v3003 = vpop.f32.mrf.mxu0
  %3004 = vmatprep.mubr.bf16.mxu0 %v2831
  %3005 = vmatmul.mubr.bf16.gmra.mxu0 %v2830
  %v3006 = vpop.f32.mrf.mxu0
  %v3007 = vadd.f32 0.0, %v3006
  %v3008 = vpop.f32.mrf.mxu0
  %v3009 = vpop.f32.mrf.mxu0
  %v3010 = vadd.f32 0.0, %v3009
  %v3011 = vpop.f32.mrf.mxu0
  %3012 = vmatprep.mubr.bf16.mxu0 %v2833
  %3013 = vmatmul.mubr.bf16.gmra.mxu0 %v2832
  %v3014 = vpop.f32.mrf.mxu0
  %v3015 = vadd.f32 0.0, %v3014
  %v3016 = vpop.f32.mrf.mxu0
  %v3017 = vpop.f32.mrf.mxu0
  %v3018 = vadd.f32 0.0, %v3017
  %v3019 = vpop.f32.mrf.mxu0
  %3020 = vmatprep.mubr.bf16.mxu0 %v2835
  %3021 = vmatmul.mubr.bf16.gmra.mxu0 %v2834
  %v3022 = vpop.f32.mrf.mxu0
  %v3023 = vadd.f32 0.0, %v3022
  %v3024 = vpop.f32.mrf.mxu0
  %v3025 = vpop.f32.mrf.mxu0
  %v3026 = vadd.f32 0.0, %v3025
  %v3027 = vpop.f32.mrf.mxu0
  %3028 = vdwg.mxu0
  %v3029 = vadd.f32 %v2999, %v3002
  %v3030 = vadd.f32 %v3029, %v3007
  %v3031 = vadd.f32 %v3030, %v3010
  %v3032 = vadd.f32 %v3031, %v3015
  %v3033 = vadd.f32 %v3032, %v3018
  %v3034 = vadd.f32 %v3033, %v3023
  %v3035 = vadd.f32 %v3034, %v3026
  %v3036 = vld [vmem:[%s13] sm:$0x1]
  %v3038 = vlaneseq
  %v3039 = vshrl.u32 %v3038, 7
  %v3040 = vsub.s32 0, %v3039
  %v3041 = vrot.slane %v3036, %v3040
  %v3043 = vadd.f32 %v3035, %v3041
  %v3044 = vlaneseq
  %v3045 = vshrl.u32 %v3044, 7
  %vm3046 = vcmp.lt.s32.totalorder %v3045, 2
  %v3047 = vsel %vm3046, %v3043, 0.0
  %v3048 = vmul.f32 %v3047, %v3047
  %3049 = vadd.xlane.f32.xlu0 %v3048
  %v3050 = vpop.xlane.xlu0 %3049
  %v3051 = vrot.slane %v3050, 4
  %v3052 = vadd.f32 %v3050, %v3051
  %v3053 = vrot.slane %v3052, 2
  %v3054 = vadd.f32 %v3052, %v3053
  %v3055 = vrot.slane %v3054, 1
  %v3056 = vadd.f32 %v3054, %v3055
  %s3057 = vtos %v3056
  %s3058 = sadd.f32 %s3057, 1e-12
  %v3059 = vstv %s3058
  %v3060 = vrsqrt.pop %v3059
  %s3061 = vtos %v3060
  %v3062 = vstv %s3061
  %v3063 = vmul.f32 %v3047, %v3062
  %3064 = vst [vmem:[%s14] sm:$0xff] %v3063
  // Predicated region
  $region58: #{speaker_encoder_forward.1} parent=0 // pred_check
    _
  $region59: #{speaker_encoder_forward.1} parent=0 // pred_check_branch
    %3066 = sbr.rel (0) target = $region61
  $region60: #{speaker_encoder_forward.1} parent=0 // pred_region
    _
  $region61: #{speaker_encoder_forward.1} parent=0 // pred_fallthru
    _
  // Predicated region
  $region62: #{speaker_encoder_forward.1} parent=0 // pred_check
    _
  $region63: #{speaker_encoder_forward.1} parent=0 // pred_check_branch
    %3068 = sbr.rel (0) target = $region65
  $region64: #{speaker_encoder_forward.1} parent=0 // pred_region
    _
  $region65: #{speaker_encoder_forward.1} parent=0 // pred_fallthru
    _

</llo_original>
